<compile_context>
chip_gen: v5e
topology: v5e:2x2
jax: 0.10.0
libtpu: 0.0.40
codegen_flags: <defaults>
</compile_context>

<pallas_src>
import functools
import math

import jax
import jax.numpy as jnp
from jax import lax
from jax.experimental import pallas as pl
from jax.experimental.pallas import tpu as pltpu


# ---------------------------------------------------------------------------
# Fused kernel: one grid step = one batch element
# ---------------------------------------------------------------------------

def _fused_spatial_mha_kernel(xq_ref, xk_ref, xv_ref,
                              wq_ref, wk_ref, wv_ref, wo_ref, b_ref,
                              o_ref, *, N, T, heads, d_k, scale):
    """Block shapes seen by the kernel:

      xq/xk/xv : [1, N, T, C]   this batch element, original layout
      wq/wk/wv : [C, C]         full projection matrices (all heads)
      wo       : [C, C]         output projection
      b        : [1, C]         output bias
      o        : [1, N, T, C]   written exactly once per grid step
    """
    C = heads * d_k
    TN = T * N

    # Weights: cast once to bf16 for the MXU (f32 accumulation below).
    wq = wq_ref[...].astype(jnp.bfloat16)
    wk = wk_ref[...].astype(jnp.bfloat16)
    wv = wv_ref[...].astype(jnp.bfloat16)
    wo = wo_ref[...].astype(jnp.bfloat16)

    def load_tn(ref):
        # [1, N, T, C] -> [T*N, C] with rows ordered (t, n).
        # Leading-dim swap only (lane dim C untouched), then a tile-aligned merge.
        x = ref[0]                              # [N, T, C]
        x = jnp.transpose(x, (1, 0, 2))         # [T, N, C]
        return x.reshape(TN, C).astype(jnp.bfloat16)

    xq = load_tn(xq_ref)
    xk = load_tn(xk_ref)
    xv = load_tn(xv_ref)

    # Full-width projections for all heads at once: [T*N, C] @ [C, C].
    q = jnp.dot(xq, wq, preferred_element_type=jnp.float32) * scale
    k = jnp.dot(xk, wk, preferred_element_type=jnp.float32)
    v = jnp.dot(xv, wv, preferred_element_type=jnp.float32)

    def split_heads(x2d):
        # [T*N, C] -> [heads*T, N, d_k]: static lane slices per head, stacked
        # along a new leading (major) axis, then a layout-preserving reshape.
        parts = [x2d[:, h * d_k:(h + 1) * d_k] for h in range(heads)]   # H x [TN, d_k]
        x3 = jnp.stack(parts, axis=0)                                   # [H, TN, d_k]
        return x3.reshape(heads * T, N, d_k)                            # [H*T, N, d_k]

    q_b = split_heads(q).astype(jnp.bfloat16)
    k_b = split_heads(k).astype(jnp.bfloat16)
    v_b = split_heads(v).astype(jnp.bfloat16)

    # Attention batched over (head, t):  scores[g, n, m] = sum_d q[g,n,d] k[g,m,d]
    scores = lax.dot_general(
        q_b, k_b,
        dimension_numbers=(((2,), (2,)), ((0,), (0,))),
        preferred_element_type=jnp.float32)                             # [H*T, N, N]

    # Stable softmax over N, all math in f32.
    m = jnp.max(scores, axis=-1, keepdims=True)
    p = jnp.exp(scores - m)
    l = jnp.sum(p, axis=-1, keepdims=True)
    attn = p * pl.reciprocal(l, approx=True)                            # EUP recip

    # ctx[g, n, d] = sum_m attn[g, n, m] * v[g, m, d]
    ctx = lax.dot_general(
        attn.astype(jnp.bfloat16), v_b,
        dimension_numbers=(((2,), (1,)), ((0,), (0,))),
        preferred_element_type=jnp.float32)                             # [H*T, N, d_k]

    # Merge heads back onto the lane axis: [H*T, N, d_k] -> [T, N, C].
    ctx4 = ctx.reshape(heads, T, N, d_k)
    ctx_tn = jnp.concatenate([ctx4[h] for h in range(heads)], axis=-1)  # [T, N, C]

    # Single output projection + bias; o_ref is written exactly once.
    out = jnp.dot(ctx_tn.reshape(TN, C).astype(jnp.bfloat16), wo,
                  preferred_element_type=jnp.float32) + b_ref[...]      # [T*N, C]
    out = out.reshape(T, N, C)
    o_ref[0] = jnp.transpose(out, (1, 0, 2)).astype(o_ref.dtype)        # [N, T, C]


# ---------------------------------------------------------------------------
# Forward wrapper (no layout ops outside the kernel)
# ---------------------------------------------------------------------------

def spatial_mha_forward(params, input_Q, input_K, input_V, heads):
    B, N, T, C = input_Q.shape
    assert C % heads == 0, "embed_size must be divisible by heads"
    d_k = C // heads
    scale = 1.0 / math.sqrt(d_k)

    bo = params["b_O"].reshape(1, C)   # only wrapper op: trivial bias reshape

    kernel = functools.partial(_fused_spatial_mha_kernel,
                               N=N, T=T, heads=heads, d_k=d_k, scale=scale)

    x_spec = pl.BlockSpec((1, N, T, C), lambda b: (b, 0, 0, 0))
    w_spec = pl.BlockSpec((C, C), lambda b: (0, 0))
    bias_spec = pl.BlockSpec((1, C), lambda b: (0, 0))

    return pl.pallas_call(
        kernel,
        out_shape=jax.ShapeDtypeStruct((B, N, T, C), jnp.float32),
        grid=(B,),
        in_specs=[x_spec, x_spec, x_spec,
                  w_spec, w_spec, w_spec, w_spec, bias_spec],
        out_specs=pl.BlockSpec((1, N, T, C), lambda b: (b, 0, 0, 0)),
        compiler_params=pltpu.CompilerParams(
            dimension_semantics=("parallel",)),   # one batch per TC on v7x
    )(input_Q, input_K, input_V,
      params["W_Q"], params["W_K"], params["W_V"], params["W_O"], bo)


# ---------------------------------------------------------------------------
# Pure-JAX f32 reference (for verification)
# ---------------------------------------------------------------------------

def reference_forward(params, input_Q, input_K, input_V, heads):
    B, N, T, C = input_Q.shape
    d_k = C // heads

    def project(x, w):
        y = (x.reshape(B * N * T, C) @ w).reshape(B, N, T, heads, d_k)
        return jnp.transpose(y, (0, 3, 2, 1, 4))            # [B, H, T, N, d_k]

    Q = project(input_Q, params["W_Q"])
    K = project(input_K, params["W_K"])
    V = project(input_V, params["W_V"])
    scores = jnp.einsum("bhtnd,bhtmd->bhtnm", Q, K) / math.sqrt(d_k)
    attn = jax.nn.softmax(scores, axis=-1)
    ctx = jnp.einsum("bhtnm,bhtmd->bhtnd", attn, V)
    ctx = jnp.transpose(ctx, (0, 3, 2, 1, 4)).reshape(B, N, T, heads * d_k)
    return ctx @ params["W_O"] + params["b_O"]


# ---------------------------------------------------------------------------
# Main
# ---------------------------------------------------------------------------

if __name__ == "__main__":
    B, N, T, C = 2, 16, 8, 32
    heads = 4

    key = jax.random.PRNGKey(0)
    kq, kk, kv, ko, kb, kx1, kx2, kx3 = jax.random.split(key, 8)

    wscale = 1.0 / math.sqrt(C)
    params = {
        # weights stored as [in, out] (equivalent to PyTorch weight.T)
        "W_Q": jax.random.uniform(kq, (C, C), jnp.float32, -wscale, wscale),
        "W_K": jax.random.uniform(kk, (C, C), jnp.float32, -wscale, wscale),
        "W_V": jax.random.uniform(kv, (C, C), jnp.float32, -wscale, wscale),
        "W_O": jax.random.uniform(ko, (C, C), jnp.float32, -wscale, wscale),
        "b_O": jax.random.uniform(kb, (C,), jnp.float32, -wscale, wscale),
    }

    input_Q = jax.random.normal(kx1, (B, N, T, C), jnp.float32)
    input_K = jax.random.normal(kx2, (B, N, T, C), jnp.float32)
    input_V = jax.random.normal(kx3, (B, N, T, C), jnp.float32)

    fwd = jax.jit(functools.partial(spatial_mha_forward, heads=heads))
    out = jax.block_until_ready(fwd(params, input_Q, input_K, input_V))

    ref = reference_forward(params, input_Q, input_K, input_V, heads)
    assert out.shape == (B, N, T, C)
    # bf16 MXU operands + approx reciprocal vs. a full-f32 reference.
    err = jnp.max(jnp.abs(out - ref))
    assert jnp.allclose(out, ref, atol=3e-2, rtol=3e-2), f"mismatch vs reference: {err}"

    print("KERNEL_OK")
</pallas_src>

<mosaic_0001>
module attributes {stable_mosaic.version = 11 : i64} {
  func.func @_fused_spatial_mha_kernel(%arg0: i32, %arg1: memref<1x16x8x32xf32, #tpu.memory_space<vmem>>, %arg2: memref<1x16x8x32xf32, #tpu.memory_space<vmem>>, %arg3: memref<1x16x8x32xf32, #tpu.memory_space<vmem>>, %arg4: memref<32x32xf32, #tpu.memory_space<vmem>>, %arg5: memref<32x32xf32, #tpu.memory_space<vmem>>, %arg6: memref<32x32xf32, #tpu.memory_space<vmem>>, %arg7: memref<32x32xf32, #tpu.memory_space<vmem>>, %arg8: memref<1x32xf32, #tpu.memory_space<vmem>>, %arg9: memref<1x16x8x32xf32, #tpu.memory_space<vmem>>) attributes {dimension_semantics = [#tpu.dimension_semantics<parallel>], iteration_bounds = array<i64: 2>, scalar_prefetch = 0 : i64, scratch_operands = 0 : i64, tpu.core_type = #tpu.core_type<tc>, window_params = [{transform_indices = @transform_0, window_bounds = array<i64: 1, 16, 8, 32>}, {transform_indices = @transform_1, window_bounds = array<i64: 1, 16, 8, 32>}, {transform_indices = @transform_2, window_bounds = array<i64: 1, 16, 8, 32>}, {pipeline_mode = #tpu.pipeline_mode<synchronous>, transform_indices = @transform_3, window_bounds = array<i64: 32, 32>}, {pipeline_mode = #tpu.pipeline_mode<synchronous>, transform_indices = @transform_4, window_bounds = array<i64: 32, 32>}, {pipeline_mode = #tpu.pipeline_mode<synchronous>, transform_indices = @transform_5, window_bounds = array<i64: 32, 32>}, {pipeline_mode = #tpu.pipeline_mode<synchronous>, transform_indices = @transform_6, window_bounds = array<i64: 32, 32>}, {pipeline_mode = #tpu.pipeline_mode<synchronous>, transform_indices = @transform_7, window_bounds = array<i64: 1, 32>}, {transform_indices = @transform_8, window_bounds = array<i64: 1, 16, 8, 32>}]} {
    %c0 = arith.constant 0 : index
    %c0_0 = arith.constant 0 : index
    %0 = vector.load %arg4[%c0, %c0_0] : memref<32x32xf32, #tpu.memory_space<vmem>>, vector<32x32xf32>
    %1 = arith.truncf %0 : vector<32x32xf32> to vector<32x32xbf16>
    %c0_1 = arith.constant 0 : index
    %c0_2 = arith.constant 0 : index
    %2 = vector.load %arg5[%c0_1, %c0_2] : memref<32x32xf32, #tpu.memory_space<vmem>>, vector<32x32xf32>
    %3 = arith.truncf %2 : vector<32x32xf32> to vector<32x32xbf16>
    %c0_3 = arith.constant 0 : index
    %c0_4 = arith.constant 0 : index
    %4 = vector.load %arg6[%c0_3, %c0_4] : memref<32x32xf32, #tpu.memory_space<vmem>>, vector<32x32xf32>
    %5 = arith.truncf %4 : vector<32x32xf32> to vector<32x32xbf16>
    %c0_5 = arith.constant 0 : index
    %c0_6 = arith.constant 0 : index
    %6 = vector.load %arg7[%c0_5, %c0_6] : memref<32x32xf32, #tpu.memory_space<vmem>>, vector<32x32xf32>
    %7 = arith.truncf %6 : vector<32x32xf32> to vector<32x32xbf16>
    %c0_7 = arith.constant 0 : index
    %c0_8 = arith.constant 0 : index
    %c0_9 = arith.constant 0 : index
    %c0_10 = arith.constant 0 : index
    %8 = vector.load %arg1[%c0_7, %c0_8, %c0_9, %c0_10] : memref<1x16x8x32xf32, #tpu.memory_space<vmem>>, vector<1x16x8x32xf32>
    %9 = vector.shape_cast %8 : vector<1x16x8x32xf32> to vector<16x8x32xf32>
    %10 = tpu.transpose %9, [1, 0, 2] : vector<16x8x32xf32> -> vector<8x16x32xf32>
    %11 = vector.shape_cast %10 : vector<8x16x32xf32> to vector<128x32xf32>
    %12 = arith.truncf %11 : vector<128x32xf32> to vector<128x32xbf16>
    %c0_11 = arith.constant 0 : index
    %c0_12 = arith.constant 0 : index
    %c0_13 = arith.constant 0 : index
    %c0_14 = arith.constant 0 : index
    %13 = vector.load %arg2[%c0_11, %c0_12, %c0_13, %c0_14] : memref<1x16x8x32xf32, #tpu.memory_space<vmem>>, vector<1x16x8x32xf32>
    %14 = vector.shape_cast %13 : vector<1x16x8x32xf32> to vector<16x8x32xf32>
    %15 = tpu.transpose %14, [1, 0, 2] : vector<16x8x32xf32> -> vector<8x16x32xf32>
    %16 = vector.shape_cast %15 : vector<8x16x32xf32> to vector<128x32xf32>
    %17 = arith.truncf %16 : vector<128x32xf32> to vector<128x32xbf16>
    %c0_15 = arith.constant 0 : index
    %c0_16 = arith.constant 0 : index
    %c0_17 = arith.constant 0 : index
    %c0_18 = arith.constant 0 : index
    %18 = vector.load %arg3[%c0_15, %c0_16, %c0_17, %c0_18] : memref<1x16x8x32xf32, #tpu.memory_space<vmem>>, vector<1x16x8x32xf32>
    %19 = vector.shape_cast %18 : vector<1x16x8x32xf32> to vector<16x8x32xf32>
    %20 = tpu.transpose %19, [1, 0, 2] : vector<16x8x32xf32> -> vector<8x16x32xf32>
    %21 = vector.shape_cast %20 : vector<8x16x32xf32> to vector<128x32xf32>
    %22 = arith.truncf %21 : vector<128x32xf32> to vector<128x32xbf16>
    %cst = arith.constant dense<0.000000e+00> : vector<128x32xf32>
    %23 = tpu.matmul %12, %1, %cst {dimension_numbers = #tpu.dot_dimension_numbers<[1], [0], [0], [1], [0, 0, 1, 1], [], []>} : vector<128x32xbf16>, vector<32x32xbf16>, vector<128x32xf32> -> vector<128x32xf32>
    %cst_19 = arith.constant 0.353553385 : f32
    %24 = vector.broadcast %cst_19 : f32 to vector<128x32xf32>
    %25 = arith.mulf %23, %24 : vector<128x32xf32>
    %cst_20 = arith.constant dense<0.000000e+00> : vector<128x32xf32>
    %26 = tpu.matmul %17, %3, %cst_20 {dimension_numbers = #tpu.dot_dimension_numbers<[1], [0], [0], [1], [0, 0, 1, 1], [], []>} : vector<128x32xbf16>, vector<32x32xbf16>, vector<128x32xf32> -> vector<128x32xf32>
    %cst_21 = arith.constant dense<0.000000e+00> : vector<128x32xf32>
    %27 = tpu.matmul %22, %5, %cst_21 {dimension_numbers = #tpu.dot_dimension_numbers<[1], [0], [0], [1], [0, 0, 1, 1], [], []>} : vector<128x32xbf16>, vector<32x32xbf16>, vector<128x32xf32> -> vector<128x32xf32>
    %28 = vector.extract_strided_slice %25 {offsets = [0, 0], sizes = [128, 8], strides = [1, 1]} : vector<128x32xf32> to vector<128x8xf32>
    %29 = vector.extract_strided_slice %25 {offsets = [0, 8], sizes = [128, 8], strides = [1, 1]} : vector<128x32xf32> to vector<128x8xf32>
    %30 = vector.extract_strided_slice %25 {offsets = [0, 16], sizes = [128, 8], strides = [1, 1]} : vector<128x32xf32> to vector<128x8xf32>
    %31 = vector.extract_strided_slice %25 {offsets = [0, 24], sizes = [128, 8], strides = [1, 1]} : vector<128x32xf32> to vector<128x8xf32>
    %32 = vector.shape_cast %28 : vector<128x8xf32> to vector<1x128x8xf32>
    %33 = vector.shape_cast %29 : vector<128x8xf32> to vector<1x128x8xf32>
    %34 = vector.shape_cast %30 : vector<128x8xf32> to vector<1x128x8xf32>
    %35 = vector.shape_cast %31 : vector<128x8xf32> to vector<1x128x8xf32>
    %36 = tpu.concatenate %32, %33, %34, %35 in 0 : vector<1x128x8xf32>, vector<1x128x8xf32>, vector<1x128x8xf32>, vector<1x128x8xf32> -> vector<4x128x8xf32>
    %37 = vector.shape_cast %36 : vector<4x128x8xf32> to vector<32x16x8xf32>
    %38 = arith.truncf %37 : vector<32x16x8xf32> to vector<32x16x8xbf16>
    %39 = vector.extract_strided_slice %26 {offsets = [0, 0], sizes = [128, 8], strides = [1, 1]} : vector<128x32xf32> to vector<128x8xf32>
    %40 = vector.extract_strided_slice %26 {offsets = [0, 8], sizes = [128, 8], strides = [1, 1]} : vector<128x32xf32> to vector<128x8xf32>
    %41 = vector.extract_strided_slice %26 {offsets = [0, 16], sizes = [128, 8], strides = [1, 1]} : vector<128x32xf32> to vector<128x8xf32>
    %42 = vector.extract_strided_slice %26 {offsets = [0, 24], sizes = [128, 8], strides = [1, 1]} : vector<128x32xf32> to vector<128x8xf32>
    %43 = vector.shape_cast %39 : vector<128x8xf32> to vector<1x128x8xf32>
    %44 = vector.shape_cast %40 : vector<128x8xf32> to vector<1x128x8xf32>
    %45 = vector.shape_cast %41 : vector<128x8xf32> to vector<1x128x8xf32>
    %46 = vector.shape_cast %42 : vector<128x8xf32> to vector<1x128x8xf32>
    %47 = tpu.concatenate %43, %44, %45, %46 in 0 : vector<1x128x8xf32>, vector<1x128x8xf32>, vector<1x128x8xf32>, vector<1x128x8xf32> -> vector<4x128x8xf32>
    %48 = vector.shape_cast %47 : vector<4x128x8xf32> to vector<32x16x8xf32>
    %49 = arith.truncf %48 : vector<32x16x8xf32> to vector<32x16x8xbf16>
    %50 = vector.extract_strided_slice %27 {offsets = [0, 0], sizes = [128, 8], strides = [1, 1]} : vector<128x32xf32> to vector<128x8xf32>
    %51 = vector.extract_strided_slice %27 {offsets = [0, 8], sizes = [128, 8], strides = [1, 1]} : vector<128x32xf32> to vector<128x8xf32>
    %52 = vector.extract_strided_slice %27 {offsets = [0, 16], sizes = [128, 8], strides = [1, 1]} : vector<128x32xf32> to vector<128x8xf32>
    %53 = vector.extract_strided_slice %27 {offsets = [0, 24], sizes = [128, 8], strides = [1, 1]} : vector<128x32xf32> to vector<128x8xf32>
    %54 = vector.shape_cast %50 : vector<128x8xf32> to vector<1x128x8xf32>
    %55 = vector.shape_cast %51 : vector<128x8xf32> to vector<1x128x8xf32>
    %56 = vector.shape_cast %52 : vector<128x8xf32> to vector<1x128x8xf32>
    %57 = vector.shape_cast %53 : vector<128x8xf32> to vector<1x128x8xf32>
    %58 = tpu.concatenate %54, %55, %56, %57 in 0 : vector<1x128x8xf32>, vector<1x128x8xf32>, vector<1x128x8xf32>, vector<1x128x8xf32> -> vector<4x128x8xf32>
    %59 = vector.shape_cast %58 : vector<4x128x8xf32> to vector<32x16x8xf32>
    %60 = arith.truncf %59 : vector<32x16x8xf32> to vector<32x16x8xbf16>
    %cst_22 = arith.constant dense<0.000000e+00> : vector<32x16x16xf32>
    %61 = tpu.matmul %38, %49, %cst_22 {dimension_numbers = #tpu.dot_dimension_numbers<[2], [2], [1], [1], [0, 0, 0, 1, 1, 1], [0], [0]>} : vector<32x16x8xbf16>, vector<32x16x8xbf16>, vector<32x16x16xf32> -> vector<32x16x16xf32>
    %cst_23 = arith.constant dense<0xFF800000> : vector<32x16xf32>
    %62 = vector.multi_reduction <maximumf>, %61, %cst_23 [2] : vector<32x16x16xf32> to vector<32x16xf32>
    %63 = vector.shape_cast %62 : vector<32x16xf32> to vector<32x16x1xf32>
    %64 = vector.broadcast %63 : vector<32x16x1xf32> to vector<32x16x16xf32>
    %65 = arith.subf %61, %64 : vector<32x16x16xf32>
    %66 = math.exp %65 : vector<32x16x16xf32>
    %cst_24 = arith.constant dense<0.000000e+00> : vector<32x16xf32>
    %67 = vector.multi_reduction <add>, %66, %cst_24 [2] : vector<32x16x16xf32> to vector<32x16xf32>
    %68 = vector.shape_cast %67 : vector<32x16xf32> to vector<32x16x1xf32>
    %69 = tpu.reciprocal %68 {approx = true} : vector<32x16x1xf32> -> vector<32x16x1xf32>
    %70 = vector.broadcast %69 : vector<32x16x1xf32> to vector<32x16x16xf32>
    %71 = arith.mulf %66, %70 : vector<32x16x16xf32>
    %72 = arith.truncf %71 : vector<32x16x16xf32> to vector<32x16x16xbf16>
    %cst_25 = arith.constant dense<0.000000e+00> : vector<32x16x8xf32>
    %73 = tpu.matmul %72, %60, %cst_25 {dimension_numbers = #tpu.dot_dimension_numbers<[2], [1], [1], [2], [0, 0, 0, 1, 1, 2], [0], [0]>} : vector<32x16x16xbf16>, vector<32x16x8xbf16>, vector<32x16x8xf32> -> vector<32x16x8xf32>
    %74 = vector.shape_cast %73 : vector<32x16x8xf32> to vector<4x8x16x8xf32>
    %75 = vector.extract_strided_slice %74 {offsets = [0, 0, 0, 0], sizes = [1, 8, 16, 8], strides = [1, 1, 1, 1]} : vector<4x8x16x8xf32> to vector<1x8x16x8xf32>
    %76 = vector.shape_cast %75 : vector<1x8x16x8xf32> to vector<8x16x8xf32>
    %77 = vector.extract_strided_slice %74 {offsets = [1, 0, 0, 0], sizes = [1, 8, 16, 8], strides = [1, 1, 1, 1]} : vector<4x8x16x8xf32> to vector<1x8x16x8xf32>
    %78 = vector.shape_cast %77 : vector<1x8x16x8xf32> to vector<8x16x8xf32>
    %79 = vector.extract_strided_slice %74 {offsets = [2, 0, 0, 0], sizes = [1, 8, 16, 8], strides = [1, 1, 1, 1]} : vector<4x8x16x8xf32> to vector<1x8x16x8xf32>
    %80 = vector.shape_cast %79 : vector<1x8x16x8xf32> to vector<8x16x8xf32>
    %81 = vector.extract_strided_slice %74 {offsets = [3, 0, 0, 0], sizes = [1, 8, 16, 8], strides = [1, 1, 1, 1]} : vector<4x8x16x8xf32> to vector<1x8x16x8xf32>
    %82 = vector.shape_cast %81 : vector<1x8x16x8xf32> to vector<8x16x8xf32>
    %83 = tpu.concatenate %76, %78, %80, %82 in 2 : vector<8x16x8xf32>, vector<8x16x8xf32>, vector<8x16x8xf32>, vector<8x16x8xf32> -> vector<8x16x32xf32>
    %84 = vector.shape_cast %83 : vector<8x16x32xf32> to vector<128x32xf32>
    %85 = arith.truncf %84 : vector<128x32xf32> to vector<128x32xbf16>
    %cst_26 = arith.constant dense<0.000000e+00> : vector<128x32xf32>
    %86 = tpu.matmul %85, %7, %cst_26 {dimension_numbers = #tpu.dot_dimension_numbers<[1], [0], [0], [1], [0, 0, 1, 1], [], []>} : vector<128x32xbf16>, vector<32x32xbf16>, vector<128x32xf32> -> vector<128x32xf32>
    %c0_27 = arith.constant 0 : index
    %c0_28 = arith.constant 0 : index
    %87 = vector.load %arg8[%c0_27, %c0_28] : memref<1x32xf32, #tpu.memory_space<vmem>>, vector<1x32xf32>
    %88 = vector.broadcast %87 : vector<1x32xf32> to vector<128x32xf32>
    %89 = arith.addf %86, %88 : vector<128x32xf32>
    %90 = vector.shape_cast %89 : vector<128x32xf32> to vector<8x16x32xf32>
    %91 = tpu.transpose %90, [1, 0, 2] : vector<8x16x32xf32> -> vector<16x8x32xf32>
    %c0_29 = arith.constant 0 : index
    %c0_30 = arith.constant 0 : index
    %c0_31 = arith.constant 0 : index
    %c0_32 = arith.constant 0 : index
    %92 = vector.load %arg9[%c0_29, %c0_30, %c0_31, %c0_32] : memref<1x16x8x32xf32, #tpu.memory_space<vmem>>, vector<1x16x8x32xf32>
    %93 = vector.shape_cast %92 : vector<1x16x8x32xf32> to vector<16x8x32xf32>
    %94 = vector.shape_cast %91 : vector<16x8x32xf32> to vector<1x16x8x32xf32>
    tpu.vector_store %arg9[%c0_29, %c0_30, %c0_31, %c0_32], %94 {strides = array<i32>} : memref<1x16x8x32xf32, #tpu.memory_space<vmem>>, vector<1x16x8x32xf32>,
    return
  }
  func.func @transform_0(%arg0: i32) -> (i32, i32, i32, i32) {
    %c0_i32 = arith.constant 0 : i32
    %c0_i32_0 = arith.constant 0 : i32
    %c0_i32_1 = arith.constant 0 : i32
    %c0_i32_2 = arith.constant 0 : i32
    return %arg0, %c0_i32, %c0_i32_0, %c0_i32_1 : i32, i32, i32, i32
  }
  func.func @transform_1(%arg0: i32) -> (i32, i32, i32, i32) {
    %c0_i32 = arith.constant 0 : i32
    %c0_i32_0 = arith.constant 0 : i32
    %c0_i32_1 = arith.constant 0 : i32
    %c0_i32_2 = arith.constant 0 : i32
    return %arg0, %c0_i32, %c0_i32_0, %c0_i32_1 : i32, i32, i32, i32
  }
  func.func @transform_2(%arg0: i32) -> (i32, i32, i32, i32) {
    %c0_i32 = arith.constant 0 : i32
    %c0_i32_0 = arith.constant 0 : i32
    %c0_i32_1 = arith.constant 0 : i32
    %c0_i32_2 = arith.constant 0 : i32
    return %arg0, %c0_i32, %c0_i32_0, %c0_i32_1 : i32, i32, i32, i32
  }
  func.func @transform_3(%arg0: i32) -> (i32, i32) {
    %c0_i32 = arith.constant 0 : i32
    %c0_i32_0 = arith.constant 0 : i32
    %c0_i32_1 = arith.constant 0 : i32
    return %c0_i32, %c0_i32_0 : i32, i32
  }
  func.func @transform_4(%arg0: i32) -> (i32, i32) {
    %c0_i32 = arith.constant 0 : i32
    %c0_i32_0 = arith.constant 0 : i32
    %c0_i32_1 = arith.constant 0 : i32
    return %c0_i32, %c0_i32_0 : i32, i32
  }
  func.func @transform_5(%arg0: i32) -> (i32, i32) {
    %c0_i32 = arith.constant 0 : i32
    %c0_i32_0 = arith.constant 0 : i32
    %c0_i32_1 = arith.constant 0 : i32
    return %c0_i32, %c0_i32_0 : i32, i32
  }
  func.func @transform_6(%arg0: i32) -> (i32, i32) {
    %c0_i32 = arith.constant 0 : i32
    %c0_i32_0 = arith.constant 0 : i32
    %c0_i32_1 = arith.constant 0 : i32
    return %c0_i32, %c0_i32_0 : i32, i32
  }
  func.func @transform_7(%arg0: i32) -> (i32, i32) {
    %c0_i32 = arith.constant 0 : i32
    %c0_i32_0 = arith.constant 0 : i32
    %c0_i32_1 = arith.constant 0 : i32
    return %c0_i32, %c0_i32_0 : i32, i32
  }
  func.func @transform_8(%arg0: i32) -> (i32, i32, i32, i32) {
    %c0_i32 = arith.constant 0 : i32
    %c0_i32_0 = arith.constant 0 : i32
    %c0_i32_1 = arith.constant 0 : i32
    %c0_i32_2 = arith.constant 0 : i32
    return %arg0, %c0_i32, %c0_i32_0, %c0_i32_1 : i32, i32, i32, i32
  }
}

</mosaic_0001>

<llo_original>
// kernel: spatial_mha_forward.1
$region0: #{spatial_mha_forward.1}
  #allocation0 [shape = 'u32[]', space=smem, size = 0x4, offset = 0x4, fixed_abs, tag = 'smem constant byte address 0x4 - core index']
  #allocation1 [shape = 'u32[72,128]{1,0:T(1,128)}', space=vmem, size = 0x9000, scoped, tag = 'internal scratch']
  %s0 = inlined_call_operand.hbm [shape: f32[2,16,8,32], index: 0, kind: input, shape index: {}]
  %s1 = inlined_call_operand.hbm [shape: f32[2,16,8,32], index: 1, kind: input, shape index: {}]
  %s2 = inlined_call_operand.hbm [shape: f32[2,16,8,32], index: 2, kind: input, shape index: {}]
  %s3 = inlined_call_operand.hbm [shape: f32[32,32], index: 3, kind: input, shape index: {}]
  %s4 = inlined_call_operand.hbm [shape: f32[32,32], index: 4, kind: input, shape index: {}]
  %s5 = inlined_call_operand.hbm [shape: f32[32,32], index: 5, kind: input, shape index: {}]
  %s6 = inlined_call_operand.hbm [shape: f32[32,32], index: 6, kind: input, shape index: {}]
  %s7 = inlined_call_operand.vmem [shape: f32[1,32], index: 7, kind: input, shape index: {}]
  %s8 = inlined_call_operand.hbm [shape: f32[2,16,8,32], index: 8, kind: output, shape index: {}]
  %s9 = sld [smem:[#allocation0]]
  $region93: #{spatial_mha_forward.1} parent=0
    _
  %s11 = ssub.s32 1, %s9
  %s12 = scalar_select 0, %s11, %s9
  $region1: #{spatial_mha_forward.1} parent=0
    #allocation2 [shape = 'u8[131072]{0}', space=vmem, size = 0x20000, scoped, tag = 'input window, operand 0']
    #allocation3 [shape = 's32[2]{0}', space=sflag, size = 0x8, scoped, tag = 'scoped memory for spatial_mha_forward.1']
    #allocation4 [shape = 's32[2]{0}', space=sflag, size = 0x8, scoped, tag = 'scoped memory for spatial_mha_forward.1']
    #allocation5 [shape = 'u8[131072]{0}', space=vmem, size = 0x20000, scoped, tag = 'input window, operand 1']
    #allocation6 [shape = 's32[2]{0}', space=sflag, size = 0x8, scoped, tag = 'scoped memory for spatial_mha_forward.1']
    #allocation7 [shape = 'u8[131072]{0}', space=vmem, size = 0x20000, scoped, tag = 'input window, operand 2']
    #allocation8 [shape = 'u8[16384]{0}', space=vmem, size = 0x4000, scoped, tag = 'input window, operand 3, single buffered']
    #allocation9 [shape = 's32[1]{0}', space=sflag, size = 0x4, scoped, tag = 'scoped memory for spatial_mha_forward.1']
    #allocation10 [shape = 'u8[16384]{0}', space=vmem, size = 0x4000, scoped, tag = 'input window, operand 4, single buffered']
    #allocation11 [shape = 'u8[16384]{0}', space=vmem, size = 0x4000, scoped, tag = 'input window, operand 5, single buffered']
    #allocation12 [shape = 's32[1]{0}', space=sflag, size = 0x4, scoped, tag = 'scoped memory for spatial_mha_forward.1']
    #allocation13 [shape = 'u8[16384]{0}', space=vmem, size = 0x4000, scoped, tag = 'input window, operand 6, single buffered']
    #allocation14 [shape = 'u8[131072]{0}', space=vmem, size = 0x20000, scoped, tag = 'output window, operand 0']
    %13 = vsyncpa [#allocation3], 0
    %s14 = scalar_lea.sflag [#allocation3], 1
    %15 = vsyncpa %s14, 0
    %16 = vsyncpa [#allocation6], 0
    %s17 = scalar_lea.sflag [#allocation6], 1
    %18 = vsyncpa %s17, 0
    %19 = vsyncpa [#allocation9], 0
    %20 = vsyncpa [#allocation12], 0
    %21 = vsyncpa [#allocation4], 0
    %s22 = scalar_lea.sflag [#allocation4], 1
    %23 = vsyncpa %s22, 0
    loop: start=0, step=1, limit=4
    $region2: #{spatial_mha_forward.1} parent=1 // loop_pre_header
      _
    $region3: #{spatial_mha_forward.1} parent=1 // loop_header
      %s25 = sphi 0, %s29
      %p26 = scmp.ge.s32.totalorder %s25, 4
      %s35 = sphi 0, %s37
      %s38 = sphi 0, %s35
      %s39 = sphi 0, %s38
      %s55 = sphi 0, %s39
      %s61 = sphi 0, %s63
      %s64 = sphi 0, %s61
      %s65 = sphi 0, %s64
      %s81 = sphi 0, %s65
      %s87 = sphi 0, %s89
      %s90 = sphi 0, %s87
      %s91 = sphi 0, %s90
      %s107 = sphi 0, %s91
      %s111 = sphi 0, %s111
      %s113 = sphi 0, %s111
      %s114 = sphi 0, %s113
      %s128 = sphi 0, %s114
      %s132 = sphi 0, %s132
      %s134 = sphi 0, %s132
      %s135 = sphi 0, %s134
      %s149 = sphi 0, %s135
      %s153 = sphi 0, %s153
      %s155 = sphi 0, %s153
      %s156 = sphi 0, %s155
      %s170 = sphi 0, %s156
      %s174 = sphi 0, %s174
      %s176 = sphi 0, %s174
      %s177 = sphi 0, %s176
      %s191 = sphi 0, %s177
      %s195 = sphi 0, %s195
      %s197 = sphi 0, %s195
      %s198 = sphi 0, %s197
      %s212 = sphi 0, %s198
      %s218 = sphi 0, %s220
      %s221 = sphi 0, %s218
      %s222 = sphi 0, %s221
      %s238 = sphi 0, %s222
    $region4: #{spatial_mha_forward.1} parent=1 // loop_header_branch
      %28 = sbr.rel (%p26) target = $region8
    $region5: #{spatial_mha_forward.1} parent=1 // loop_body
      %s30 = ssub.s32 %s25, 1
      %s31 = ssub.s32 %s25, 2
      %s32 = sadd.s32 %s25, 1
      %s33 = ssub.s32 %s25, %s32
      %p34 = scmp.eq.s32.totalorder %s33, 0
      %s36 = sadd.s32 %s35, 1
      %s37 = scalar_select %p34, %s35, %s36
      %p40 = pneg %p34
      %p41 = scmp.eq.s32.totalorder %s25, 1
      %p42 = por %p40, %p41
      %p43 = scmp.ne.s32.totalorder %s35, %s38
      %p44 = scmp.eq.s32.totalorder %s25, 0
      %p45 = por %p43, %p44
      %p46 = scmp.ne.s32.totalorder %s35, %s38
      %p47 = scmp.eq.s32.totalorder %s30, 1
      %p48 = por %p46, %p47
      %p49 = scmp.ne.s32.totalorder %s38, %s39
      %p50 = scmp.eq.s32.totalorder %s30, 0
      %p51 = por %p49, %p50
      %p52 = scmp.ne.s32.totalorder %s38, %s39
      %p53 = scmp.eq.s32.totalorder %s31, 1
      %p54 = por %p52, %p53
      %p56 = scmp.ne.s32.totalorder %s39, %s55
      %p57 = scmp.eq.s32.totalorder %s31, 0
      %p58 = por %p56, %p57
      %s59 = ssub.s32 %s25, %s32
      %p60 = scmp.eq.s32.totalorder %s59, 0
      %s62 = sadd.s32 %s61, 1
      %s63 = scalar_select %p60, %s61, %s62
      %p66 = pneg %p60
      %p67 = scmp.eq.s32.totalorder %s25, 1
      %p68 = por %p66, %p67
      %p69 = scmp.ne.s32.totalorder %s61, %s64
      %p70 = scmp.eq.s32.totalorder %s25, 0
      %p71 = por %p69, %p70
      %p72 = scmp.ne.s32.totalorder %s61, %s64
      %p73 = scmp.eq.s32.totalorder %s30, 1
      %p74 = por %p72, %p73
      %p75 = scmp.ne.s32.totalorder %s64, %s65
      %p76 = scmp.eq.s32.totalorder %s30, 0
      %p77 = por %p75, %p76
      %p78 = scmp.ne.s32.totalorder %s64, %s65
      %p79 = scmp.eq.s32.totalorder %s31, 1
      %p80 = por %p78, %p79
      %p82 = scmp.ne.s32.totalorder %s65, %s81
      %p83 = scmp.eq.s32.totalorder %s31, 0
      %p84 = por %p82, %p83
      %s85 = ssub.s32 %s25, %s32
      %p86 = scmp.eq.s32.totalorder %s85, 0
      %s88 = sadd.s32 %s87, 1
      %s89 = scalar_select %p86, %s87, %s88
      %p92 = pneg %p86
      %p93 = scmp.eq.s32.totalorder %s25, 1
      %p94 = por %p92, %p93
      %p95 = scmp.ne.s32.totalorder %s87, %s90
      %p96 = scmp.eq.s32.totalorder %s25, 0
      %p97 = por %p95, %p96
      %p98 = scmp.ne.s32.totalorder %s87, %s90
      %p99 = scmp.eq.s32.totalorder %s30, 1
      %p100 = por %p98, %p99
      %p101 = scmp.ne.s32.totalorder %s90, %s91
      %p102 = scmp.eq.s32.totalorder %s30, 0
      %p103 = por %p101, %p102
      %p104 = scmp.ne.s32.totalorder %s90, %s91
      %p105 = scmp.eq.s32.totalorder %s31, 1
      %p106 = por %p104, %p105
      %p108 = scmp.ne.s32.totalorder %s91, %s107
      %p109 = scmp.eq.s32.totalorder %s31, 0
      %p110 = por %p108, %p109
      %s112 = sadd.s32 %s111, 1
      %p115 = scmp.eq.s32.totalorder %s25, 1
      %p116 = scmp.ne.s32.totalorder %s111, %s113
      %p117 = scmp.eq.s32.totalorder %s25, 0
      %p118 = por %p116, %p117
      %p119 = scmp.ne.s32.totalorder %s111, %s113
      %p120 = scmp.eq.s32.totalorder %s30, 1
      %p121 = por %p119, %p120
      %p122 = scmp.ne.s32.totalorder %s113, %s114
      %p123 = scmp.eq.s32.totalorder %s30, 0
      %p124 = por %p122, %p123
      %p125 = scmp.ne.s32.totalorder %s113, %s114
      %p126 = scmp.eq.s32.totalorder %s31, 1
      %p127 = por %p125, %p126
      %p129 = scmp.ne.s32.totalorder %s114, %s128
      %p130 = scmp.eq.s32.totalorder %s31, 0
      %p131 = por %p129, %p130
      %s133 = sadd.s32 %s132, 1
      %p136 = scmp.eq.s32.totalorder %s25, 1
      %p137 = scmp.ne.s32.totalorder %s132, %s134
      %p138 = scmp.eq.s32.totalorder %s25, 0
      %p139 = por %p137, %p138
      %p140 = scmp.ne.s32.totalorder %s132, %s134
      %p141 = scmp.eq.s32.totalorder %s30, 1
      %p142 = por %p140, %p141
      %p143 = scmp.ne.s32.totalorder %s134, %s135
      %p144 = scmp.eq.s32.totalorder %s30, 0
      %p145 = por %p143, %p144
      %p146 = scmp.ne.s32.totalorder %s134, %s135
      %p147 = scmp.eq.s32.totalorder %s31, 1
      %p148 = por %p146, %p147
      %p150 = scmp.ne.s32.totalorder %s135, %s149
      %p151 = scmp.eq.s32.totalorder %s31, 0
      %p152 = por %p150, %p151
      %s154 = sadd.s32 %s153, 1
      %p157 = scmp.eq.s32.totalorder %s25, 1
      %p158 = scmp.ne.s32.totalorder %s153, %s155
      %p159 = scmp.eq.s32.totalorder %s25, 0
      %p160 = por %p158, %p159
      %p161 = scmp.ne.s32.totalorder %s153, %s155
      %p162 = scmp.eq.s32.totalorder %s30, 1
      %p163 = por %p161, %p162
      %p164 = scmp.ne.s32.totalorder %s155, %s156
      %p165 = scmp.eq.s32.totalorder %s30, 0
      %p166 = por %p164, %p165
      %p167 = scmp.ne.s32.totalorder %s155, %s156
      %p168 = scmp.eq.s32.totalorder %s31, 1
      %p169 = por %p167, %p168
      %p171 = scmp.ne.s32.totalorder %s156, %s170
      %p172 = scmp.eq.s32.totalorder %s31, 0
      %p173 = por %p171, %p172
      %s175 = sadd.s32 %s174, 1
      %p178 = scmp.eq.s32.totalorder %s25, 1
      %p179 = scmp.ne.s32.totalorder %s174, %s176
      %p180 = scmp.eq.s32.totalorder %s25, 0
      %p181 = por %p179, %p180
      %p182 = scmp.ne.s32.totalorder %s174, %s176
      %p183 = scmp.eq.s32.totalorder %s30, 1
      %p184 = por %p182, %p183
      %p185 = scmp.ne.s32.totalorder %s176, %s177
      %p186 = scmp.eq.s32.totalorder %s30, 0
      %p187 = por %p185, %p186
      %p188 = scmp.ne.s32.totalorder %s176, %s177
      %p189 = scmp.eq.s32.totalorder %s31, 1
      %p190 = por %p188, %p189
      %p192 = scmp.ne.s32.totalorder %s177, %s191
      %p193 = scmp.eq.s32.totalorder %s31, 0
      %p194 = por %p192, %p193
      %s196 = sadd.s32 %s195, 1
      %p199 = scmp.eq.s32.totalorder %s25, 1
      %p200 = scmp.ne.s32.totalorder %s195, %s197
      %p201 = scmp.eq.s32.totalorder %s25, 0
      %p202 = por %p200, %p201
      %p203 = scmp.ne.s32.totalorder %s195, %s197
      %p204 = scmp.eq.s32.totalorder %s30, 1
      %p205 = por %p203, %p204
      %p206 = scmp.ne.s32.totalorder %s197, %s198
      %p207 = scmp.eq.s32.totalorder %s30, 0
      %p208 = por %p206, %p207
      %p209 = scmp.ne.s32.totalorder %s197, %s198
      %p210 = scmp.eq.s32.totalorder %s31, 1
      %p211 = por %p209, %p210
      %p213 = scmp.ne.s32.totalorder %s198, %s212
      %p214 = scmp.eq.s32.totalorder %s31, 0
      %p215 = por %p213, %p214
      %s216 = ssub.s32 %s25, %s32
      %p217 = scmp.eq.s32.totalorder %s216, 0
      %s219 = sadd.s32 %s218, 1
      %s220 = scalar_select %p217, %s218, %s219
      %p223 = pneg %p217
      %p224 = scmp.eq.s32.totalorder %s25, 1
      %p225 = por %p223, %p224
      %p226 = scmp.ne.s32.totalorder %s218, %s221
      %p227 = scmp.eq.s32.totalorder %s25, 0
      %p228 = por %p226, %p227
      %p229 = scmp.ne.s32.totalorder %s218, %s221
      %p230 = scmp.eq.s32.totalorder %s30, 1
      %p231 = por %p229, %p230
      %p232 = scmp.ne.s32.totalorder %s221, %s222
      %p233 = scmp.eq.s32.totalorder %s30, 0
      %p234 = por %p232, %p233
      %p235 = scmp.ne.s32.totalorder %s221, %s222
      %p236 = scmp.eq.s32.totalorder %s31, 1
      %p237 = por %p235, %p236
      %p239 = scmp.ne.s32.totalorder %s222, %s238
      %p240 = scmp.eq.s32.totalorder %s31, 0
      %p241 = por %p239, %p240
      %p242 = scmp.le.s32.totalorder 1, %s25
      %p243 = scmp.lt.s32.totalorder %s25, 3
      %p244 = pnand %p242, %p243
      %p245 = pneg %p244
      // Predicated region
      $region9: #{spatial_mha_forward.1} parent=5 // pred_check
        _
      $region10: #{spatial_mha_forward.1} parent=5 // pred_check_branch
        %247 = sbr.rel (%p244) target = $region12
      $region11: #{spatial_mha_forward.1} parent=5 // pred_region
        %s248 = ssub.s32 %s25, 1
        // Predicated region
        $region13: #{spatial_mha_forward.1} parent=11 // pred_check
          %p249 = pneg %p124
        $region14: #{spatial_mha_forward.1} parent=11 // pred_check_branch
          %251 = sbr.rel (%p249) target = $region16
        $region15: #{spatial_mha_forward.1} parent=11 // pred_region
          %253 = vsyncadd [#allocation9], 0
          %s254 = sshll.u32 %s3, 4
          %s255 = int_to_ptr.hbm [resolvable:$true] %s254
          %s256 = sshll.u32 [#allocation8], 4
          %s257 = int_to_ptr.vmem [resolvable:$true] %s256
          %262 = dma.hbm_to_vmem [thread:$0]  %s255, 512, %s257, [#allocation9], 128, 128, 8
        $region16: #{spatial_mha_forward.1} parent=11 // pred_fallthru
          _
        // Predicated region
        $region17: #{spatial_mha_forward.1} parent=11 // pred_check
          %p263 = pneg %p145
        $region18: #{spatial_mha_forward.1} parent=11 // pred_check_branch
          %265 = sbr.rel (%p263) target = $region20
        $region19: #{spatial_mha_forward.1} parent=11 // pred_region
          %267 = vsyncadd [#allocation9], 0
          %s268 = sshll.u32 %s4, 4
          %s269 = int_to_ptr.hbm [resolvable:$true] %s268
          %s270 = sshll.u32 [#allocation10], 4
          %s271 = int_to_ptr.vmem [resolvable:$true] %s270
          %276 = dma.hbm_to_vmem [thread:$0]  %s269, 512, %s271, [#allocation9], 128, 128, 8
        $region20: #{spatial_mha_forward.1} parent=11 // pred_fallthru
          _
        // Predicated region
        $region21: #{spatial_mha_forward.1} parent=11 // pred_check
          %p277 = pneg %p166
        $region22: #{spatial_mha_forward.1} parent=11 // pred_check_branch
          %279 = sbr.rel (%p277) target = $region24
        $region23: #{spatial_mha_forward.1} parent=11 // pred_region
          %281 = vsyncadd [#allocation12], 0
          %s282 = sshll.u32 %s5, 4
          %s283 = int_to_ptr.hbm [resolvable:$true] %s282
          %s284 = sshll.u32 [#allocation11], 4
          %s285 = int_to_ptr.vmem [resolvable:$true] %s284
          %290 = dma.hbm_to_vmem [thread:$0]  %s283, 512, %s285, [#allocation12], 128, 128, 8
        $region24: #{spatial_mha_forward.1} parent=11 // pred_fallthru
          _
        // Predicated region
        $region25: #{spatial_mha_forward.1} parent=11 // pred_check
          %p291 = pneg %p187
        $region26: #{spatial_mha_forward.1} parent=11 // pred_check_branch
          %293 = sbr.rel (%p291) target = $region28
        $region27: #{spatial_mha_forward.1} parent=11 // pred_region
          %295 = vsyncadd [#allocation12], 0
          %s296 = sshll.u32 %s6, 4
          %s297 = int_to_ptr.hbm [resolvable:$true] %s296
          %s298 = sshll.u32 [#allocation13], 4
          %s299 = int_to_ptr.vmem [resolvable:$true] %s298
          %304 = dma.hbm_to_vmem [thread:$0]  %s297, 512, %s299, [#allocation12], 128, 128, 8
        $region28: #{spatial_mha_forward.1} parent=11 // pred_fallthru
          _
        // Predicated region
        $region29: #{spatial_mha_forward.1} parent=11 // pred_check
          %p305 = pneg %p208
        $region30: #{spatial_mha_forward.1} parent=11 // pred_check_branch
          %307 = sbr.rel (%p305) target = $region32
        $region31: #{spatial_mha_forward.1} parent=11 // pred_region
          _
        $region32: #{spatial_mha_forward.1} parent=11 // pred_fallthru
          _
      $region12: #{spatial_mha_forward.1} parent=5 // pred_fallthru
        _
      %p308 = scmp.lt.s32.totalorder %s25, 2
      // Predicated region
      $region33: #{spatial_mha_forward.1} parent=5 // pred_check
        %p309 = pneg %p308
      $region34: #{spatial_mha_forward.1} parent=5 // pred_check_branch
        %311 = sbr.rel (%p309) target = $region36
      $region35: #{spatial_mha_forward.1} parent=5 // pred_region
        // Predicated region
        $region37: #{spatial_mha_forward.1} parent=35 // pred_check
          %p312 = pneg %p45
        $region38: #{spatial_mha_forward.1} parent=35 // pred_check_branch
          %314 = sbr.rel (%p312) target = $region40
        $region39: #{spatial_mha_forward.1} parent=35 // pred_region
          %s315 = sand.u32 %s35, 1
          %s316 = scalar_lea.sflag [#allocation3], %s315
          %s317 = sand.u32 %s35, 1
          %s318 = smul.addr %s317, 128
          %s319 = scalar_lea.vmem [#allocation2], %s318
          %321 = vsyncadd %s316, 0
          %s322 = smul.addr %s25, 16
          %s323 = smul.addr %s322, 8
          %s324 = scalar_lea.hbm %s0, %s323
          %s325 = sshll.u32 %s324, 4
          %s326 = int_to_ptr.hbm [resolvable:$true] %s325
          %s327 = sshll.u32 %s319, 4
          %s328 = int_to_ptr.vmem [resolvable:$true] %s327
          %333 = dma.hbm_to_vmem [thread:$0]  %s326, 2048, %s328, %s316, 128, 128, 8
        $region40: #{spatial_mha_forward.1} parent=35 // pred_fallthru
          _
        // Predicated region
        $region41: #{spatial_mha_forward.1} parent=35 // pred_check
          %p334 = pneg %p71
        $region42: #{spatial_mha_forward.1} parent=35 // pred_check_branch
          %336 = sbr.rel (%p334) target = $region44
        $region43: #{spatial_mha_forward.1} parent=35 // pred_region
          %s337 = sand.u32 %s25, 1
          %s338 = scalar_lea.sflag [#allocation6], %s337
          %s339 = sand.u32 %s61, 1
          %s340 = smul.addr %s339, 128
          %s341 = scalar_lea.vmem [#allocation5], %s340
          %343 = vsyncadd %s338, 0
          %s344 = smul.addr %s25, 16
          %s345 = smul.addr %s344, 8
          %s346 = scalar_lea.hbm %s1, %s345
          %s347 = sshll.u32 %s346, 4
          %s348 = int_to_ptr.hbm [resolvable:$true] %s347
          %s349 = sshll.u32 %s341, 4
          %s350 = int_to_ptr.vmem [resolvable:$true] %s349
          %355 = dma.hbm_to_vmem [thread:$0]  %s348, 2048, %s350, %s338, 128, 128, 8
        $region44: #{spatial_mha_forward.1} parent=35 // pred_fallthru
          _
        // Predicated region
        $region45: #{spatial_mha_forward.1} parent=35 // pred_check
          %p356 = pneg %p97
        $region46: #{spatial_mha_forward.1} parent=35 // pred_check_branch
          %358 = sbr.rel (%p356) target = $region48
        $region47: #{spatial_mha_forward.1} parent=35 // pred_region
          %s359 = sand.u32 %s25, 1
          %s360 = scalar_lea.sflag [#allocation6], %s359
          %s361 = sand.u32 %s87, 1
          %s362 = smul.addr %s361, 128
          %s363 = scalar_lea.vmem [#allocation7], %s362
          %365 = vsyncadd %s360, 0
          %s366 = smul.addr %s25, 16
          %s367 = smul.addr %s366, 8
          %s368 = scalar_lea.hbm %s2, %s367
          %s369 = sshll.u32 %s368, 4
          %s370 = int_to_ptr.hbm [resolvable:$true] %s369
          %s371 = sshll.u32 %s363, 4
          %s372 = int_to_ptr.vmem [resolvable:$true] %s371
          %377 = dma.hbm_to_vmem [thread:$0]  %s370, 2048, %s372, %s360, 128, 128, 8
        $region48: #{spatial_mha_forward.1} parent=35 // pred_fallthru
          _
      $region36: #{spatial_mha_forward.1} parent=5 // pred_fallthru
        _
      %p378 = scmp.le.s32.totalorder 1, %s25
      %p379 = scmp.lt.s32.totalorder %s25, 3
      %p380 = pnand %p378, %p379
      %p381 = pneg %p380
      // Predicated region
      $region49: #{spatial_mha_forward.1} parent=5 // pred_check
        _
      $region50: #{spatial_mha_forward.1} parent=5 // pred_check_branch
        %383 = sbr.rel (%p380) target = $region52
      $region51: #{spatial_mha_forward.1} parent=5 // pred_region
        %s384 = ssub.s32 %s25, 1
        %s385 = sand.u32 %s38, 1
        %s386 = scalar_lea.sflag [#allocation3], %s385
        %s387 = sand.u32 %s38, 1
        %s388 = smul.addr %s387, 128
        %s389 = scalar_lea.vmem [#allocation2], %s388
        // Predicated region
        $region53: #{spatial_mha_forward.1} parent=51 // pred_check
          %p390 = pneg %p51
        $region54: #{spatial_mha_forward.1} parent=51 // pred_check_branch
          %392 = sbr.rel (%p390) target = $region56
        $region55: #{spatial_mha_forward.1} parent=51 // pred_region
          %394 = dma.done %s386, 2048
        $region56: #{spatial_mha_forward.1} parent=51 // pred_fallthru
          _
        %s395 = sand.u32 %s30, 1
        %s396 = scalar_lea.sflag [#allocation6], %s395
        %s397 = sand.u32 %s64, 1
        %s398 = smul.addr %s397, 128
        %s399 = scalar_lea.vmem [#allocation5], %s398
        // Predicated region
        $region57: #{spatial_mha_forward.1} parent=51 // pred_check
          %p400 = pneg %p77
        $region58: #{spatial_mha_forward.1} parent=51 // pred_check_branch
          %402 = sbr.rel (%p400) target = $region60
        $region59: #{spatial_mha_forward.1} parent=51 // pred_region
          %404 = dma.done %s396, 2048
        $region60: #{spatial_mha_forward.1} parent=51 // pred_fallthru
          _
        %s405 = sand.u32 %s30, 1
        %s406 = scalar_lea.sflag [#allocation6], %s405
        %s407 = sand.u32 %s90, 1
        %s408 = smul.addr %s407, 128
        %s409 = scalar_lea.vmem [#allocation7], %s408
        // Predicated region
        $region61: #{spatial_mha_forward.1} parent=51 // pred_check
          %p410 = pneg %p103
        $region62: #{spatial_mha_forward.1} parent=51 // pred_check_branch
          %412 = sbr.rel (%p410) target = $region64
        $region63: #{spatial_mha_forward.1} parent=51 // pred_region
          %414 = dma.done %s406, 2048
        $region64: #{spatial_mha_forward.1} parent=51 // pred_fallthru
          _
        // Predicated region
        $region65: #{spatial_mha_forward.1} parent=51 // pred_check
          %p415 = pneg %p124
        $region66: #{spatial_mha_forward.1} parent=51 // pred_check_branch
          %417 = sbr.rel (%p415) target = $region68
        $region67: #{spatial_mha_forward.1} parent=51 // pred_region
          %419 = dma.done [#allocation9], 512
        $region68: #{spatial_mha_forward.1} parent=51 // pred_fallthru
          _
        // Predicated region
        $region69: #{spatial_mha_forward.1} parent=51 // pred_check
          %p420 = pneg %p145
        $region70: #{spatial_mha_forward.1} parent=51 // pred_check_branch
          %422 = sbr.rel (%p420) target = $region72
        $region71: #{spatial_mha_forward.1} parent=51 // pred_region
          %424 = dma.done [#allocation9], 512
        $region72: #{spatial_mha_forward.1} parent=51 // pred_fallthru
          _
        // Predicated region
        $region73: #{spatial_mha_forward.1} parent=51 // pred_check
          %p425 = pneg %p166
        $region74: #{spatial_mha_forward.1} parent=51 // pred_check_branch
          %427 = sbr.rel (%p425) target = $region76
        $region75: #{spatial_mha_forward.1} parent=51 // pred_region
          %429 = dma.done [#allocation12], 512
        $region76: #{spatial_mha_forward.1} parent=51 // pred_fallthru
          _
        // Predicated region
        $region77: #{spatial_mha_forward.1} parent=51 // pred_check
          %p430 = pneg %p187
        $region78: #{spatial_mha_forward.1} parent=51 // pred_check_branch
          %432 = sbr.rel (%p430) target = $region80
        $region79: #{spatial_mha_forward.1} parent=51 // pred_region
          %434 = dma.done [#allocation12], 512
        $region80: #{spatial_mha_forward.1} parent=51 // pred_fallthru
          _
        %s435 = sand.u32 %s38, 1
        %s436 = scalar_lea.sflag [#allocation3], %s435
        %s437 = sand.u32 %s38, 1
        %s438 = smul.addr %s437, 128
        %s439 = scalar_lea.vmem [#allocation2], %s438
        %p440 = pneg %p51
        %p441 = pneg %p48
        %s442 = sand.u32 %s30, 1
        %s443 = scalar_lea.sflag [#allocation6], %s442
        %s444 = sand.u32 %s64, 1
        %s445 = smul.addr %s444, 128
        %s446 = scalar_lea.vmem [#allocation5], %s445
        %p447 = pneg %p77
        %p448 = pneg %p74
        %s449 = sand.u32 %s30, 1
        %s450 = scalar_lea.sflag [#allocation6], %s449
        %s451 = sand.u32 %s90, 1
        %s452 = smul.addr %s451, 128
        %s453 = scalar_lea.vmem [#allocation7], %s452
        %p454 = pneg %p103
        %p455 = pneg %p100
        %p456 = pneg %p124
        %p457 = pneg %p121
        %p458 = pneg %p145
        %p459 = pneg %p142
        %p460 = pneg %p166
        %p461 = pneg %p163
        %p462 = pneg %p187
        %p463 = pneg %p184
        %p464 = pneg %p208
        %p465 = pneg %p205
        %p466 = pneg %p234
        %p467 = pneg %p231
        %s468 = sand.u32 %s221, 1
        %s469 = scalar_lea.sflag [#allocation4], %s468
        %s470 = sand.u32 %s221, 1
        %s471 = smul.addr %s470, 128
        %s472 = scalar_lea.vmem [#allocation14], %s471
        %v474 = vld [vmem:[#allocation8] sm:$0xff]
        %v475 = vld [vmem:[#allocation8 + $0x8] sm:$0xff]
        %v476 = vld [vmem:[#allocation8 + $0x10] sm:$0xff]
        %v477 = vld [vmem:[#allocation8 + $0x18] sm:$0xff]
        %v478 = vpack.c.bf16 %v475, %v474
        %v479 = vpack.c.bf16 %v477, %v476
        %v480 = vld [vmem:[#allocation10] sm:$0xff]
        %v481 = vld [vmem:[#allocation10 + $0x8] sm:$0xff]
        %v482 = vld [vmem:[#allocation10 + $0x10] sm:$0xff]
        %v483 = vld [vmem:[#allocation10 + $0x18] sm:$0xff]
        %v484 = vpack.c.bf16 %v481, %v480
        %v485 = vpack.c.bf16 %v483, %v482
        %v486 = vld [vmem:[#allocation11] sm:$0xff]
        %v487 = vld [vmem:[#allocation11 + $0x8] sm:$0xff]
        %v488 = vld [vmem:[#allocation11 + $0x10] sm:$0xff]
        %v489 = vld [vmem:[#allocation11 + $0x18] sm:$0xff]
        %v490 = vpack.c.bf16 %v487, %v486
        %v491 = vpack.c.bf16 %v489, %v488
        %v492 = vld [vmem:[#allocation13] sm:$0xff]
        %v493 = vld [vmem:[#allocation13 + $0x8] sm:$0xff]
        %v494 = vld [vmem:[#allocation13 + $0x10] sm:$0xff]
        %v495 = vld [vmem:[#allocation13 + $0x18] sm:$0xff]
        %v496 = vpack.c.bf16 %v493, %v492
        %v497 = vpack.c.bf16 %v495, %v494
        %v498 = vld [vmem:[%s389] sm:$0xff]
        %v499 = vld [vmem:[%s389 + $0x8] sm:$0xff]
        %v500 = vld [vmem:[%s389 + $0x10] sm:$0xff]
        %v501 = vld [vmem:[%s389 + $0x18] sm:$0xff]
        %v502 = vld [vmem:[%s389 + $0x20] sm:$0xff]
        %v503 = vld [vmem:[%s389 + $0x28] sm:$0xff]
        %v504 = vld [vmem:[%s389 + $0x30] sm:$0xff]
        %v505 = vld [vmem:[%s389 + $0x38] sm:$0xff]
        %v506 = vld [vmem:[%s389 + $0x40] sm:$0xff]
        %v507 = vld [vmem:[%s389 + $0x48] sm:$0xff]
        %v508 = vld [vmem:[%s389 + $0x50] sm:$0xff]
        %v509 = vld [vmem:[%s389 + $0x58] sm:$0xff]
        %v510 = vld [vmem:[%s389 + $0x60] sm:$0xff]
        %v511 = vld [vmem:[%s389 + $0x68] sm:$0xff]
        %v512 = vld [vmem:[%s389 + $0x70] sm:$0xff]
        %v513 = vld [vmem:[%s389 + $0x78] sm:$0xff]
        %v514 = vrot.slane %v500, 4
        %vm515 = vcmask 1047556
        %v516 = vsel %vm515, %v514, %v498
        %v517 = vrot.slane %v498, 4
        %v518 = vsel %vm515, %v500, %v517
        %v520 = vunpack.c.l.s4 1983009808
        %v521 = vunpack.c.0.s8 %v520
        %v522 = vperm.slane %v516, %v521
        %v524 = vunpack.c.l.s4 1983009808
        %v525 = vunpack.c.0.s8 %v524
        %v526 = vperm.slane %v518, %v525
        %v527 = vrot.slane %v501, 4
        %v528 = vsel %vm515, %v527, %v499
        %v529 = vrot.slane %v499, 4
        %v530 = vsel %vm515, %v501, %v529
        %v532 = vunpack.c.l.s4 1983009808
        %v533 = vunpack.c.0.s8 %v532
        %v534 = vperm.slane %v528, %v533
        %v536 = vunpack.c.l.s4 1983009808
        %v537 = vunpack.c.0.s8 %v536
        %v538 = vperm.slane %v530, %v537
        %v539 = vrot.slane %v504, 4
        %v540 = vsel %vm515, %v539, %v502
        %v541 = vrot.slane %v502, 4
        %v542 = vsel %vm515, %v504, %v541
        %v544 = vunpack.c.l.s4 1983009808
        %v545 = vunpack.c.0.s8 %v544
        %v546 = vperm.slane %v540, %v545
        %v548 = vunpack.c.l.s4 1983009808
        %v549 = vunpack.c.0.s8 %v548
        %v550 = vperm.slane %v542, %v549
        %v551 = vrot.slane %v505, 4
        %v552 = vsel %vm515, %v551, %v503
        %v553 = vrot.slane %v503, 4
        %v554 = vsel %vm515, %v505, %v553
        %v556 = vunpack.c.l.s4 1983009808
        %v557 = vunpack.c.0.s8 %v556
        %v558 = vperm.slane %v552, %v557
        %v560 = vunpack.c.l.s4 1983009808
        %v561 = vunpack.c.0.s8 %v560
        %v562 = vperm.slane %v554, %v561
        %v563 = vrot.slane %v534, 4
        %v564 = vsel %vm515, %v563, %v522
        %v565 = vrot.slane %v522, 4
        %v566 = vsel %vm515, %v534, %v565
        %v568 = vunpack.c.l.s4 1934713408
        %v569 = vunpack.c.0.s8 %v568
        %v570 = vperm.slane %v564, %v569
        %v572 = vunpack.c.l.s4 1934713408
        %v573 = vunpack.c.0.s8 %v572
        %v574 = vperm.slane %v566, %v573
        %v575 = vrot.slane %v538, 4
        %v576 = vsel %vm515, %v575, %v526
        %v577 = vrot.slane %v526, 4
        %v578 = vsel %vm515, %v538, %v577
        %v580 = vunpack.c.l.s4 1934713408
        %v581 = vunpack.c.0.s8 %v580
        %v582 = vperm.slane %v576, %v581
        %v584 = vunpack.c.l.s4 1934713408
        %v585 = vunpack.c.0.s8 %v584
        %v586 = vperm.slane %v578, %v585
        %v587 = vrot.slane %v558, 4
        %v588 = vsel %vm515, %v587, %v546
        %v589 = vrot.slane %v546, 4
        %v590 = vsel %vm515, %v558, %v589
        %v592 = vunpack.c.l.s4 1934713408
        %v593 = vunpack.c.0.s8 %v592
        %v594 = vperm.slane %v588, %v593
        %v596 = vunpack.c.l.s4 1934713408
        %v597 = vunpack.c.0.s8 %v596
        %v598 = vperm.slane %v590, %v597
        %v599 = vrot.slane %v562, 4
        %v600 = vsel %vm515, %v599, %v550
        %v601 = vrot.slane %v550, 4
        %v602 = vsel %vm515, %v562, %v601
        %v604 = vunpack.c.l.s4 1934713408
        %v605 = vunpack.c.0.s8 %v604
        %v606 = vperm.slane %v600, %v605
        %v608 = vunpack.c.l.s4 1934713408
        %v609 = vunpack.c.0.s8 %v608
        %v610 = vperm.slane %v602, %v609
        %v611 = vrot.slane %v594, 4
        %v612 = vsel %vm515, %v611, %v570
        %v613 = vrot.slane %v570, 4
        %v614 = vsel %vm515, %v594, %v613
        %v615 = vrot.slane %v598, 4
        %v616 = vsel %vm515, %v615, %v574
        %v617 = vrot.slane %v574, 4
        %v618 = vsel %vm515, %v598, %v617
        %v619 = vrot.slane %v606, 4
        %v620 = vsel %vm515, %v619, %v582
        %v621 = vrot.slane %v582, 4
        %v622 = vsel %vm515, %v606, %v621
        %v623 = vrot.slane %v610, 4
        %v624 = vsel %vm515, %v623, %v586
        %v625 = vrot.slane %v586, 4
        %v626 = vsel %vm515, %v610, %v625
        %v627 = vrot.slane %v508, 4
        %v628 = vsel %vm515, %v627, %v506
        %v629 = vrot.slane %v506, 4
        %v630 = vsel %vm515, %v508, %v629
        %v632 = vunpack.c.l.s4 1983009808
        %v633 = vunpack.c.0.s8 %v632
        %v634 = vperm.slane %v628, %v633
        %v636 = vunpack.c.l.s4 1983009808
        %v637 = vunpack.c.0.s8 %v636
        %v638 = vperm.slane %v630, %v637
        %v639 = vrot.slane %v509, 4
        %v640 = vsel %vm515, %v639, %v507
        %v641 = vrot.slane %v507, 4
        %v642 = vsel %vm515, %v509, %v641
        %v644 = vunpack.c.l.s4 1983009808
        %v645 = vunpack.c.0.s8 %v644
        %v646 = vperm.slane %v640, %v645
        %v648 = vunpack.c.l.s4 1983009808
        %v649 = vunpack.c.0.s8 %v648
        %v650 = vperm.slane %v642, %v649
        %v651 = vrot.slane %v512, 4
        %v652 = vsel %vm515, %v651, %v510
        %v653 = vrot.slane %v510, 4
        %v654 = vsel %vm515, %v512, %v653
        %v656 = vunpack.c.l.s4 1983009808
        %v657 = vunpack.c.0.s8 %v656
        %v658 = vperm.slane %v652, %v657
        %v660 = vunpack.c.l.s4 1983009808
        %v661 = vunpack.c.0.s8 %v660
        %v662 = vperm.slane %v654, %v661
        %v663 = vrot.slane %v513, 4
        %v664 = vsel %vm515, %v663, %v511
        %v665 = vrot.slane %v511, 4
        %v666 = vsel %vm515, %v513, %v665
        %v668 = vunpack.c.l.s4 1983009808
        %v669 = vunpack.c.0.s8 %v668
        %v670 = vperm.slane %v664, %v669
        %v672 = vunpack.c.l.s4 1983009808
        %v673 = vunpack.c.0.s8 %v672
        %v674 = vperm.slane %v666, %v673
        %v675 = vrot.slane %v646, 4
        %v676 = vsel %vm515, %v675, %v634
        %v677 = vrot.slane %v634, 4
        %v678 = vsel %vm515, %v646, %v677
        %v680 = vunpack.c.l.s4 1934713408
        %v681 = vunpack.c.0.s8 %v680
        %v682 = vperm.slane %v676, %v681
        %v684 = vunpack.c.l.s4 1934713408
        %v685 = vunpack.c.0.s8 %v684
        %v686 = vperm.slane %v678, %v685
        %v687 = vrot.slane %v650, 4
        %v688 = vsel %vm515, %v687, %v638
        %v689 = vrot.slane %v638, 4
        %v690 = vsel %vm515, %v650, %v689
        %v692 = vunpack.c.l.s4 1934713408
        %v693 = vunpack.c.0.s8 %v692
        %v694 = vperm.slane %v688, %v693
        %v696 = vunpack.c.l.s4 1934713408
        %v697 = vunpack.c.0.s8 %v696
        %v698 = vperm.slane %v690, %v697
        %v699 = vrot.slane %v670, 4
        %v700 = vsel %vm515, %v699, %v658
        %v701 = vrot.slane %v658, 4
        %v702 = vsel %vm515, %v670, %v701
        %v704 = vunpack.c.l.s4 1934713408
        %v705 = vunpack.c.0.s8 %v704
        %v706 = vperm.slane %v700, %v705
        %v708 = vunpack.c.l.s4 1934713408
        %v709 = vunpack.c.0.s8 %v708
        %v710 = vperm.slane %v702, %v709
        %v711 = vrot.slane %v674, 4
        %v712 = vsel %vm515, %v711, %v662
        %v713 = vrot.slane %v662, 4
        %v714 = vsel %vm515, %v674, %v713
        %v716 = vunpack.c.l.s4 1934713408
        %v717 = vunpack.c.0.s8 %v716
        %v718 = vperm.slane %v712, %v717
        %v720 = vunpack.c.l.s4 1934713408
        %v721 = vunpack.c.0.s8 %v720
        %v722 = vperm.slane %v714, %v721
        %v723 = vrot.slane %v706, 4
        %v724 = vsel %vm515, %v723, %v682
        %v725 = vrot.slane %v682, 4
        %v726 = vsel %vm515, %v706, %v725
        %v727 = vrot.slane %v710, 4
        %v728 = vsel %vm515, %v727, %v686
        %v729 = vrot.slane %v686, 4
        %v730 = vsel %vm515, %v710, %v729
        %v731 = vrot.slane %v718, 4
        %v732 = vsel %vm515, %v731, %v694
        %v733 = vrot.slane %v694, 4
        %v734 = vsel %vm515, %v718, %v733
        %v735 = vrot.slane %v722, 4
        %v736 = vsel %vm515, %v735, %v698
        %v737 = vrot.slane %v698, 4
        %v738 = vsel %vm515, %v722, %v737
        %v739 = vpack.c.bf16 %v724, %v612
        %v740 = vpack.c.bf16 %v726, %v614
        %v741 = vpack.c.bf16 %v728, %v616
        %v742 = vpack.c.bf16 %v730, %v618
        %v743 = vpack.c.bf16 %v732, %v620
        %v744 = vpack.c.bf16 %v734, %v622
        %v745 = vpack.c.bf16 %v736, %v624
        %v746 = vpack.c.bf16 %v738, %v626
        %v747 = vld [vmem:[%s399] sm:$0xff]
        %v748 = vld [vmem:[%s399 + $0x8] sm:$0xff]
        %v749 = vld [vmem:[%s399 + $0x10] sm:$0xff]
        %v750 = vld [vmem:[%s399 + $0x18] sm:$0xff]
        %v751 = vld [vmem:[%s399 + $0x20] sm:$0xff]
        %v752 = vld [vmem:[%s399 + $0x28] sm:$0xff]
        %v753 = vld [vmem:[%s399 + $0x30] sm:$0xff]
        %v754 = vld [vmem:[%s399 + $0x38] sm:$0xff]
        %v755 = vld [vmem:[%s399 + $0x40] sm:$0xff]
        %v756 = vld [vmem:[%s399 + $0x48] sm:$0xff]
        %v757 = vld [vmem:[%s399 + $0x50] sm:$0xff]
        %v758 = vld [vmem:[%s399 + $0x58] sm:$0xff]
        %v759 = vld [vmem:[%s399 + $0x60] sm:$0xff]
        %v760 = vld [vmem:[%s399 + $0x68] sm:$0xff]
        %v761 = vld [vmem:[%s399 + $0x70] sm:$0xff]
        %v762 = vld [vmem:[%s399 + $0x78] sm:$0xff]
        %v763 = vrot.slane %v749, 4
        %v764 = vsel %vm515, %v763, %v747
        %v765 = vrot.slane %v747, 4
        %v766 = vsel %vm515, %v749, %v765
        %v768 = vunpack.c.l.s4 1983009808
        %v769 = vunpack.c.0.s8 %v768
        %v770 = vperm.slane %v764, %v769
        %v772 = vunpack.c.l.s4 1983009808
        %v773 = vunpack.c.0.s8 %v772
        %v774 = vperm.slane %v766, %v773
        %v775 = vrot.slane %v750, 4
        %v776 = vsel %vm515, %v775, %v748
        %v777 = vrot.slane %v748, 4
        %v778 = vsel %vm515, %v750, %v777
        %v780 = vunpack.c.l.s4 1983009808
        %v781 = vunpack.c.0.s8 %v780
        %v782 = vperm.slane %v776, %v781
        %v784 = vunpack.c.l.s4 1983009808
        %v785 = vunpack.c.0.s8 %v784
        %v786 = vperm.slane %v778, %v785
        %v787 = vrot.slane %v753, 4
        %v788 = vsel %vm515, %v787, %v751
        %v789 = vrot.slane %v751, 4
        %v790 = vsel %vm515, %v753, %v789
        %v792 = vunpack.c.l.s4 1983009808
        %v793 = vunpack.c.0.s8 %v792
        %v794 = vperm.slane %v788, %v793
        %v796 = vunpack.c.l.s4 1983009808
        %v797 = vunpack.c.0.s8 %v796
        %v798 = vperm.slane %v790, %v797
        %v799 = vrot.slane %v754, 4
        %v800 = vsel %vm515, %v799, %v752
        %v801 = vrot.slane %v752, 4
        %v802 = vsel %vm515, %v754, %v801
        %v804 = vunpack.c.l.s4 1983009808
        %v805 = vunpack.c.0.s8 %v804
        %v806 = vperm.slane %v800, %v805
        %v808 = vunpack.c.l.s4 1983009808
        %v809 = vunpack.c.0.s8 %v808
        %v810 = vperm.slane %v802, %v809
        %v811 = vrot.slane %v782, 4
        %v812 = vsel %vm515, %v811, %v770
        %v813 = vrot.slane %v770, 4
        %v814 = vsel %vm515, %v782, %v813
        %v816 = vunpack.c.l.s4 1934713408
        %v817 = vunpack.c.0.s8 %v816
        %v818 = vperm.slane %v812, %v817
        %v820 = vunpack.c.l.s4 1934713408
        %v821 = vunpack.c.0.s8 %v820
        %v822 = vperm.slane %v814, %v821
        %v823 = vrot.slane %v786, 4
        %v824 = vsel %vm515, %v823, %v774
        %v825 = vrot.slane %v774, 4
        %v826 = vsel %vm515, %v786, %v825
        %v828 = vunpack.c.l.s4 1934713408
        %v829 = vunpack.c.0.s8 %v828
        %v830 = vperm.slane %v824, %v829
        %v832 = vunpack.c.l.s4 1934713408
        %v833 = vunpack.c.0.s8 %v832
        %v834 = vperm.slane %v826, %v833
        %v835 = vrot.slane %v806, 4
        %v836 = vsel %vm515, %v835, %v794
        %v837 = vrot.slane %v794, 4
        %v838 = vsel %vm515, %v806, %v837
        %v840 = vunpack.c.l.s4 1934713408
        %v841 = vunpack.c.0.s8 %v840
        %v842 = vperm.slane %v836, %v841
        %v844 = vunpack.c.l.s4 1934713408
        %v845 = vunpack.c.0.s8 %v844
        %v846 = vperm.slane %v838, %v845
        %v847 = vrot.slane %v810, 4
        %v848 = vsel %vm515, %v847, %v798
        %v849 = vrot.slane %v798, 4
        %v850 = vsel %vm515, %v810, %v849
        %v852 = vunpack.c.l.s4 1934713408
        %v853 = vunpack.c.0.s8 %v852
        %v854 = vperm.slane %v848, %v853
        %v856 = vunpack.c.l.s4 1934713408
        %v857 = vunpack.c.0.s8 %v856
        %v858 = vperm.slane %v850, %v857
        %v859 = vrot.slane %v842, 4
        %v860 = vsel %vm515, %v859, %v818
        %v861 = vrot.slane %v818, 4
        %v862 = vsel %vm515, %v842, %v861
        %v863 = vrot.slane %v846, 4
        %v864 = vsel %vm515, %v863, %v822
        %v865 = vrot.slane %v822, 4
        %v866 = vsel %vm515, %v846, %v865
        %v867 = vrot.slane %v854, 4
        %v868 = vsel %vm515, %v867, %v830
        %v869 = vrot.slane %v830, 4
        %v870 = vsel %vm515, %v854, %v869
        %v871 = vrot.slane %v858, 4
        %v872 = vsel %vm515, %v871, %v834
        %v873 = vrot.slane %v834, 4
        %v874 = vsel %vm515, %v858, %v873
        %v875 = vrot.slane %v757, 4
        %v876 = vsel %vm515, %v875, %v755
        %v877 = vrot.slane %v755, 4
        %v878 = vsel %vm515, %v757, %v877
        %v880 = vunpack.c.l.s4 1983009808
        %v881 = vunpack.c.0.s8 %v880
        %v882 = vperm.slane %v876, %v881
        %v884 = vunpack.c.l.s4 1983009808
        %v885 = vunpack.c.0.s8 %v884
        %v886 = vperm.slane %v878, %v885
        %v887 = vrot.slane %v758, 4
        %v888 = vsel %vm515, %v887, %v756
        %v889 = vrot.slane %v756, 4
        %v890 = vsel %vm515, %v758, %v889
        %v892 = vunpack.c.l.s4 1983009808
        %v893 = vunpack.c.0.s8 %v892
        %v894 = vperm.slane %v888, %v893
        %v896 = vunpack.c.l.s4 1983009808
        %v897 = vunpack.c.0.s8 %v896
        %v898 = vperm.slane %v890, %v897
        %v899 = vrot.slane %v761, 4
        %v900 = vsel %vm515, %v899, %v759
        %v901 = vrot.slane %v759, 4
        %v902 = vsel %vm515, %v761, %v901
        %v904 = vunpack.c.l.s4 1983009808
        %v905 = vunpack.c.0.s8 %v904
        %v906 = vperm.slane %v900, %v905
        %v908 = vunpack.c.l.s4 1983009808
        %v909 = vunpack.c.0.s8 %v908
        %v910 = vperm.slane %v902, %v909
        %v911 = vrot.slane %v762, 4
        %v912 = vsel %vm515, %v911, %v760
        %v913 = vrot.slane %v760, 4
        %v914 = vsel %vm515, %v762, %v913
        %v916 = vunpack.c.l.s4 1983009808
        %v917 = vunpack.c.0.s8 %v916
        %v918 = vperm.slane %v912, %v917
        %v920 = vunpack.c.l.s4 1983009808
        %v921 = vunpack.c.0.s8 %v920
        %v922 = vperm.slane %v914, %v921
        %v923 = vrot.slane %v894, 4
        %v924 = vsel %vm515, %v923, %v882
        %v925 = vrot.slane %v882, 4
        %v926 = vsel %vm515, %v894, %v925
        %v928 = vunpack.c.l.s4 1934713408
        %v929 = vunpack.c.0.s8 %v928
        %v930 = vperm.slane %v924, %v929
        %v932 = vunpack.c.l.s4 1934713408
        %v933 = vunpack.c.0.s8 %v932
        %v934 = vperm.slane %v926, %v933
        %v935 = vrot.slane %v898, 4
        %v936 = vsel %vm515, %v935, %v886
        %v937 = vrot.slane %v886, 4
        %v938 = vsel %vm515, %v898, %v937
        %v940 = vunpack.c.l.s4 1934713408
        %v941 = vunpack.c.0.s8 %v940
        %v942 = vperm.slane %v936, %v941
        %v944 = vunpack.c.l.s4 1934713408
        %v945 = vunpack.c.0.s8 %v944
        %v946 = vperm.slane %v938, %v945
        %v947 = vrot.slane %v918, 4
        %v948 = vsel %vm515, %v947, %v906
        %v949 = vrot.slane %v906, 4
        %v950 = vsel %vm515, %v918, %v949
        %v952 = vunpack.c.l.s4 1934713408
        %v953 = vunpack.c.0.s8 %v952
        %v954 = vperm.slane %v948, %v953
        %v956 = vunpack.c.l.s4 1934713408
        %v957 = vunpack.c.0.s8 %v956
        %v958 = vperm.slane %v950, %v957
        %v959 = vrot.slane %v922, 4
        %v960 = vsel %vm515, %v959, %v910
        %v961 = vrot.slane %v910, 4
        %v962 = vsel %vm515, %v922, %v961
        %v964 = vunpack.c.l.s4 1934713408
        %v965 = vunpack.c.0.s8 %v964
        %v966 = vperm.slane %v960, %v965
        %v968 = vunpack.c.l.s4 1934713408
        %v969 = vunpack.c.0.s8 %v968
        %v970 = vperm.slane %v962, %v969
        %v971 = vrot.slane %v954, 4
        %v972 = vsel %vm515, %v971, %v930
        %v973 = vrot.slane %v930, 4
        %v974 = vsel %vm515, %v954, %v973
        %v975 = vrot.slane %v958, 4
        %v976 = vsel %vm515, %v975, %v934
        %v977 = vrot.slane %v934, 4
        %v978 = vsel %vm515, %v958, %v977
        %v979 = vrot.slane %v966, 4
        %v980 = vsel %vm515, %v979, %v942
        %v981 = vrot.slane %v942, 4
        %v982 = vsel %vm515, %v966, %v981
        %v983 = vrot.slane %v970, 4
        %v984 = vsel %vm515, %v983, %v946
        %v985 = vrot.slane %v946, 4
        %v986 = vsel %vm515, %v970, %v985
        %v987 = vpack.c.bf16 %v972, %v860
        %v988 = vpack.c.bf16 %v974, %v862
        %v989 = vpack.c.bf16 %v976, %v864
        %v990 = vpack.c.bf16 %v978, %v866
        %v991 = vpack.c.bf16 %v980, %v868
        %v992 = vpack.c.bf16 %v982, %v870
        %v993 = vpack.c.bf16 %v984, %v872
        %v994 = vpack.c.bf16 %v986, %v874
        %v995 = vld [vmem:[%s409] sm:$0xff]
        %v996 = vld [vmem:[%s409 + $0x8] sm:$0xff]
        %v997 = vld [vmem:[%s409 + $0x10] sm:$0xff]
        %v998 = vld [vmem:[%s409 + $0x18] sm:$0xff]
        %v999 = vld [vmem:[%s409 + $0x20] sm:$0xff]
        %v1000 = vld [vmem:[%s409 + $0x28] sm:$0xff]
        %v1001 = vld [vmem:[%s409 + $0x30] sm:$0xff]
        %v1002 = vld [vmem:[%s409 + $0x38] sm:$0xff]
        %v1003 = vld [vmem:[%s409 + $0x40] sm:$0xff]
        %v1004 = vld [vmem:[%s409 + $0x48] sm:$0xff]
        %v1005 = vld [vmem:[%s409 + $0x50] sm:$0xff]
        %v1006 = vld [vmem:[%s409 + $0x58] sm:$0xff]
        %v1007 = vld [vmem:[%s409 + $0x60] sm:$0xff]
        %v1008 = vld [vmem:[%s409 + $0x68] sm:$0xff]
        %v1009 = vld [vmem:[%s409 + $0x70] sm:$0xff]
        %v1010 = vld [vmem:[%s409 + $0x78] sm:$0xff]
        %v1011 = vrot.slane %v997, 4
        %v1012 = vsel %vm515, %v1011, %v995
        %v1013 = vrot.slane %v995, 4
        %v1014 = vsel %vm515, %v997, %v1013
        %v1016 = vunpack.c.l.s4 1983009808
        %v1017 = vunpack.c.0.s8 %v1016
        %v1018 = vperm.slane %v1012, %v1017
        %v1020 = vunpack.c.l.s4 1983009808
        %v1021 = vunpack.c.0.s8 %v1020
        %v1022 = vperm.slane %v1014, %v1021
        %v1023 = vrot.slane %v998, 4
        %v1024 = vsel %vm515, %v1023, %v996
        %v1025 = vrot.slane %v996, 4
        %v1026 = vsel %vm515, %v998, %v1025
        %v1028 = vunpack.c.l.s4 1983009808
        %v1029 = vunpack.c.0.s8 %v1028
        %v1030 = vperm.slane %v1024, %v1029
        %v1032 = vunpack.c.l.s4 1983009808
        %v1033 = vunpack.c.0.s8 %v1032
        %v1034 = vperm.slane %v1026, %v1033
        %v1035 = vrot.slane %v1001, 4
        %v1036 = vsel %vm515, %v1035, %v999
        %v1037 = vrot.slane %v999, 4
        %v1038 = vsel %vm515, %v1001, %v1037
        %v1040 = vunpack.c.l.s4 1983009808
        %v1041 = vunpack.c.0.s8 %v1040
        %v1042 = vperm.slane %v1036, %v1041
        %v1044 = vunpack.c.l.s4 1983009808
        %v1045 = vunpack.c.0.s8 %v1044
        %v1046 = vperm.slane %v1038, %v1045
        %v1047 = vrot.slane %v1002, 4
        %v1048 = vsel %vm515, %v1047, %v1000
        %v1049 = vrot.slane %v1000, 4
        %v1050 = vsel %vm515, %v1002, %v1049
        %v1052 = vunpack.c.l.s4 1983009808
        %v1053 = vunpack.c.0.s8 %v1052
        %v1054 = vperm.slane %v1048, %v1053
        %v1056 = vunpack.c.l.s4 1983009808
        %v1057 = vunpack.c.0.s8 %v1056
        %v1058 = vperm.slane %v1050, %v1057
        %v1059 = vrot.slane %v1030, 4
        %v1060 = vsel %vm515, %v1059, %v1018
        %v1061 = vrot.slane %v1018, 4
        %v1062 = vsel %vm515, %v1030, %v1061
        %v1064 = vunpack.c.l.s4 1934713408
        %v1065 = vunpack.c.0.s8 %v1064
        %v1066 = vperm.slane %v1060, %v1065
        %v1068 = vunpack.c.l.s4 1934713408
        %v1069 = vunpack.c.0.s8 %v1068
        %v1070 = vperm.slane %v1062, %v1069
        %v1071 = vrot.slane %v1034, 4
        %v1072 = vsel %vm515, %v1071, %v1022
        %v1073 = vrot.slane %v1022, 4
        %v1074 = vsel %vm515, %v1034, %v1073
        %v1076 = vunpack.c.l.s4 1934713408
        %v1077 = vunpack.c.0.s8 %v1076
        %v1078 = vperm.slane %v1072, %v1077
        %v1080 = vunpack.c.l.s4 1934713408
        %v1081 = vunpack.c.0.s8 %v1080
        %v1082 = vperm.slane %v1074, %v1081
        %v1083 = vrot.slane %v1054, 4
        %v1084 = vsel %vm515, %v1083, %v1042
        %v1085 = vrot.slane %v1042, 4
        %v1086 = vsel %vm515, %v1054, %v1085
        %v1088 = vunpack.c.l.s4 1934713408
        %v1089 = vunpack.c.0.s8 %v1088
        %v1090 = vperm.slane %v1084, %v1089
        %v1092 = vunpack.c.l.s4 1934713408
        %v1093 = vunpack.c.0.s8 %v1092
        %v1094 = vperm.slane %v1086, %v1093
        %v1095 = vrot.slane %v1058, 4
        %v1096 = vsel %vm515, %v1095, %v1046
        %v1097 = vrot.slane %v1046, 4
        %v1098 = vsel %vm515, %v1058, %v1097
        %v1100 = vunpack.c.l.s4 1934713408
        %v1101 = vunpack.c.0.s8 %v1100
        %v1102 = vperm.slane %v1096, %v1101
        %v1104 = vunpack.c.l.s4 1934713408
        %v1105 = vunpack.c.0.s8 %v1104
        %v1106 = vperm.slane %v1098, %v1105
        %v1107 = vrot.slane %v1090, 4
        %v1108 = vsel %vm515, %v1107, %v1066
        %v1109 = vrot.slane %v1066, 4
        %v1110 = vsel %vm515, %v1090, %v1109
        %v1111 = vrot.slane %v1094, 4
        %v1112 = vsel %vm515, %v1111, %v1070
        %v1113 = vrot.slane %v1070, 4
        %v1114 = vsel %vm515, %v1094, %v1113
        %v1115 = vrot.slane %v1102, 4
        %v1116 = vsel %vm515, %v1115, %v1078
        %v1117 = vrot.slane %v1078, 4
        %v1118 = vsel %vm515, %v1102, %v1117
        %v1119 = vrot.slane %v1106, 4
        %v1120 = vsel %vm515, %v1119, %v1082
        %v1121 = vrot.slane %v1082, 4
        %v1122 = vsel %vm515, %v1106, %v1121
        %v1123 = vrot.slane %v1005, 4
        %v1124 = vsel %vm515, %v1123, %v1003
        %v1125 = vrot.slane %v1003, 4
        %v1126 = vsel %vm515, %v1005, %v1125
        %v1128 = vunpack.c.l.s4 1983009808
        %v1129 = vunpack.c.0.s8 %v1128
        %v1130 = vperm.slane %v1124, %v1129
        %v1132 = vunpack.c.l.s4 1983009808
        %v1133 = vunpack.c.0.s8 %v1132
        %v1134 = vperm.slane %v1126, %v1133
        %v1135 = vrot.slane %v1006, 4
        %v1136 = vsel %vm515, %v1135, %v1004
        %v1137 = vrot.slane %v1004, 4
        %v1138 = vsel %vm515, %v1006, %v1137
        %v1140 = vunpack.c.l.s4 1983009808
        %v1141 = vunpack.c.0.s8 %v1140
        %v1142 = vperm.slane %v1136, %v1141
        %v1144 = vunpack.c.l.s4 1983009808
        %v1145 = vunpack.c.0.s8 %v1144
        %v1146 = vperm.slane %v1138, %v1145
        %v1147 = vrot.slane %v1009, 4
        %v1148 = vsel %vm515, %v1147, %v1007
        %v1149 = vrot.slane %v1007, 4
        %v1150 = vsel %vm515, %v1009, %v1149
        %v1152 = vunpack.c.l.s4 1983009808
        %v1153 = vunpack.c.0.s8 %v1152
        %v1154 = vperm.slane %v1148, %v1153
        %v1156 = vunpack.c.l.s4 1983009808
        %v1157 = vunpack.c.0.s8 %v1156
        %v1158 = vperm.slane %v1150, %v1157
        %v1159 = vrot.slane %v1010, 4
        %v1160 = vsel %vm515, %v1159, %v1008
        %v1161 = vrot.slane %v1008, 4
        %v1162 = vsel %vm515, %v1010, %v1161
        %v1164 = vunpack.c.l.s4 1983009808
        %v1165 = vunpack.c.0.s8 %v1164
        %v1166 = vperm.slane %v1160, %v1165
        %v1168 = vunpack.c.l.s4 1983009808
        %v1169 = vunpack.c.0.s8 %v1168
        %v1170 = vperm.slane %v1162, %v1169
        %v1171 = vrot.slane %v1142, 4
        %v1172 = vsel %vm515, %v1171, %v1130
        %v1173 = vrot.slane %v1130, 4
        %v1174 = vsel %vm515, %v1142, %v1173
        %v1176 = vunpack.c.l.s4 1934713408
        %v1177 = vunpack.c.0.s8 %v1176
        %v1178 = vperm.slane %v1172, %v1177
        %v1180 = vunpack.c.l.s4 1934713408
        %v1181 = vunpack.c.0.s8 %v1180
        %v1182 = vperm.slane %v1174, %v1181
        %v1183 = vrot.slane %v1146, 4
        %v1184 = vsel %vm515, %v1183, %v1134
        %v1185 = vrot.slane %v1134, 4
        %v1186 = vsel %vm515, %v1146, %v1185
        %v1188 = vunpack.c.l.s4 1934713408
        %v1189 = vunpack.c.0.s8 %v1188
        %v1190 = vperm.slane %v1184, %v1189
        %v1192 = vunpack.c.l.s4 1934713408
        %v1193 = vunpack.c.0.s8 %v1192
        %v1194 = vperm.slane %v1186, %v1193
        %v1195 = vrot.slane %v1166, 4
        %v1196 = vsel %vm515, %v1195, %v1154
        %v1197 = vrot.slane %v1154, 4
        %v1198 = vsel %vm515, %v1166, %v1197
        %v1200 = vunpack.c.l.s4 1934713408
        %v1201 = vunpack.c.0.s8 %v1200
        %v1202 = vperm.slane %v1196, %v1201
        %v1204 = vunpack.c.l.s4 1934713408
        %v1205 = vunpack.c.0.s8 %v1204
        %v1206 = vperm.slane %v1198, %v1205
        %v1207 = vrot.slane %v1170, 4
        %v1208 = vsel %vm515, %v1207, %v1158
        %v1209 = vrot.slane %v1158, 4
        %v1210 = vsel %vm515, %v1170, %v1209
        %v1212 = vunpack.c.l.s4 1934713408
        %v1213 = vunpack.c.0.s8 %v1212
        %v1214 = vperm.slane %v1208, %v1213
        %v1216 = vunpack.c.l.s4 1934713408
        %v1217 = vunpack.c.0.s8 %v1216
        %v1218 = vperm.slane %v1210, %v1217
        %v1219 = vrot.slane %v1202, 4
        %v1220 = vsel %vm515, %v1219, %v1178
        %v1221 = vrot.slane %v1178, 4
        %v1222 = vsel %vm515, %v1202, %v1221
        %v1223 = vrot.slane %v1206, 4
        %v1224 = vsel %vm515, %v1223, %v1182
        %v1225 = vrot.slane %v1182, 4
        %v1226 = vsel %vm515, %v1206, %v1225
        %v1227 = vrot.slane %v1214, 4
        %v1228 = vsel %vm515, %v1227, %v1190
        %v1229 = vrot.slane %v1190, 4
        %v1230 = vsel %vm515, %v1214, %v1229
        %v1231 = vrot.slane %v1218, 4
        %v1232 = vsel %vm515, %v1231, %v1194
        %v1233 = vrot.slane %v1194, 4
        %v1234 = vsel %vm515, %v1218, %v1233
        %v1235 = vpack.c.bf16 %v1220, %v1108
        %v1236 = vpack.c.bf16 %v1222, %v1110
        %v1237 = vpack.c.bf16 %v1224, %v1112
        %v1238 = vpack.c.bf16 %v1226, %v1114
        %v1239 = vpack.c.bf16 %v1228, %v1116
        %v1240 = vpack.c.bf16 %v1230, %v1118
        %v1241 = vpack.c.bf16 %v1232, %v1120
        %v1242 = vpack.c.bf16 %v1234, %v1122
        %vm1243 = vcmask 261120
        %v1245 = vsel %vm1243, %v739, 0
        %v1248 = vsel %vm1243, %v740, 0
        %v1251 = vsel %vm1243, %v741, 0
        %v1254 = vsel %vm1243, %v742, 0
        %v1257 = vsel %vm1243, %v743, 0
        %v1260 = vsel %vm1243, %v744, 0
        %v1263 = vsel %vm1243, %v745, 0
        %v1266 = vsel %vm1243, %v746, 0
        %1268 = vmatpush.bf16.msra.mxu0 0
        %1269 = vmatpush.bf16.msra.mxu0 0
        %1270 = vmatpush.bf16.msra.mxu0 0
        %1271 = vmatpush.bf16.msra.mxu0 0
        %1272 = vmatpush.bf16.msra.mxu0 0
        %1273 = vmatpush.bf16.msra.mxu0 0
        %1274 = vmatpush.bf16.msra.mxu0 %v479
        %1275 = vmatpush.bf16.msra.mxu0 %v478
        %1276 = vmatmul.bf16.gmra.mxu0 %v1245
        %v1277 = vpop.f32.mrf.mxu0
        %v1278 = vadd.f32 0.0, %v1277
        %v1279 = vpop.f32.mrf.mxu0
        %v1280 = vadd.f32 0.0, %v1279
        %1281 = vmatmul.bf16.gmra.mxu0 %v1248
        %v1282 = vpop.f32.mrf.mxu0
        %v1283 = vadd.f32 0.0, %v1282
        %v1284 = vpop.f32.mrf.mxu0
        %v1285 = vadd.f32 0.0, %v1284
        %1286 = vmatmul.bf16.gmra.mxu0 %v1251
        %v1287 = vpop.f32.mrf.mxu0
        %v1288 = vadd.f32 0.0, %v1287
        %v1289 = vpop.f32.mrf.mxu0
        %v1290 = vadd.f32 0.0, %v1289
        %1291 = vmatmul.bf16.gmra.mxu0 %v1254
        %v1292 = vpop.f32.mrf.mxu0
        %v1293 = vadd.f32 0.0, %v1292
        %v1294 = vpop.f32.mrf.mxu0
        %v1295 = vadd.f32 0.0, %v1294
        %1296 = vmatmul.bf16.gmra.mxu0 %v1257
        %v1297 = vpop.f32.mrf.mxu0
        %v1298 = vadd.f32 0.0, %v1297
        %v1299 = vpop.f32.mrf.mxu0
        %v1300 = vadd.f32 0.0, %v1299
        %1301 = vmatmul.bf16.gmra.mxu0 %v1260
        %v1302 = vpop.f32.mrf.mxu0
        %v1303 = vadd.f32 0.0, %v1302
        %v1304 = vpop.f32.mrf.mxu0
        %v1305 = vadd.f32 0.0, %v1304
        %1306 = vmatmul.bf16.gmra.mxu0 %v1263
        %v1307 = vpop.f32.mrf.mxu0
        %v1308 = vadd.f32 0.0, %v1307
        %v1309 = vpop.f32.mrf.mxu0
        %v1310 = vadd.f32 0.0, %v1309
        %1311 = vmatmul.bf16.gmra.mxu0 %v1266
        %v1312 = vpop.f32.mrf.mxu0
        %v1313 = vadd.f32 0.0, %v1312
        %v1314 = vpop.f32.mrf.mxu0
        %v1315 = vadd.f32 0.0, %v1314
        %1316 = vdwg.mxu0
        %v1317 = vmul.f32 %v1278, 0.35355338
        %v1318 = vmul.f32 %v1280, 0.35355338
        %v1319 = vmul.f32 %v1283, 0.35355338
        %v1320 = vmul.f32 %v1285, 0.35355338
        %v1321 = vmul.f32 %v1288, 0.35355338
        %v1322 = vmul.f32 %v1290, 0.35355338
        %v1323 = vmul.f32 %v1293, 0.35355338
        %v1324 = vmul.f32 %v1295, 0.35355338
        %v1325 = vmul.f32 %v1298, 0.35355338
        %v1326 = vmul.f32 %v1300, 0.35355338
        %v1327 = vmul.f32 %v1303, 0.35355338
        %v1328 = vmul.f32 %v1305, 0.35355338
        %v1329 = vmul.f32 %v1308, 0.35355338
        %v1330 = vmul.f32 %v1310, 0.35355338
        %v1331 = vmul.f32 %v1313, 0.35355338
        %v1332 = vmul.f32 %v1315, 0.35355338
        %v1334 = vsel %vm1243, %v987, 0
        %v1337 = vsel %vm1243, %v988, 0
        %v1340 = vsel %vm1243, %v989, 0
        %v1343 = vsel %vm1243, %v990, 0
        %v1346 = vsel %vm1243, %v991, 0
        %v1349 = vsel %vm1243, %v992, 0
        %v1352 = vsel %vm1243, %v993, 0
        %v1355 = vsel %vm1243, %v994, 0
        %1357 = vmatpush.bf16.msra.mxu0 0
        %1358 = vmatpush.bf16.msra.mxu0 0
        %1359 = vmatpush.bf16.msra.mxu0 0
        %1360 = vmatpush.bf16.msra.mxu0 0
        %1361 = vmatpush.bf16.msra.mxu0 0
        %1362 = vmatpush.bf16.msra.mxu0 0
        %1363 = vmatpush.bf16.msra.mxu0 %v485
        %1364 = vmatpush.bf16.msra.mxu0 %v484
        %1365 = vmatmul.bf16.gmra.mxu0 %v1334
        %v1366 = vpop.f32.mrf.mxu0
        %v1367 = vadd.f32 0.0, %v1366
        %v1368 = vpop.f32.mrf.mxu0
        %v1369 = vadd.f32 0.0, %v1368
        %1370 = vmatmul.bf16.gmra.mxu0 %v1337
        %v1371 = vpop.f32.mrf.mxu0
        %v1372 = vadd.f32 0.0, %v1371
        %v1373 = vpop.f32.mrf.mxu0
        %v1374 = vadd.f32 0.0, %v1373
        %1375 = vmatmul.bf16.gmra.mxu0 %v1340
        %v1376 = vpop.f32.mrf.mxu0
        %v1377 = vadd.f32 0.0, %v1376
        %v1378 = vpop.f32.mrf.mxu0
        %v1379 = vadd.f32 0.0, %v1378
        %1380 = vmatmul.bf16.gmra.mxu0 %v1343
        %v1381 = vpop.f32.mrf.mxu0
        %v1382 = vadd.f32 0.0, %v1381
        %v1383 = vpop.f32.mrf.mxu0
        %v1384 = vadd.f32 0.0, %v1383
        %1385 = vmatmul.bf16.gmra.mxu0 %v1346
        %v1386 = vpop.f32.mrf.mxu0
        %v1387 = vadd.f32 0.0, %v1386
        %v1388 = vpop.f32.mrf.mxu0
        %v1389 = vadd.f32 0.0, %v1388
        %1390 = vmatmul.bf16.gmra.mxu0 %v1349
        %v1391 = vpop.f32.mrf.mxu0
        %v1392 = vadd.f32 0.0, %v1391
        %v1393 = vpop.f32.mrf.mxu0
        %v1394 = vadd.f32 0.0, %v1393
        %1395 = vmatmul.bf16.gmra.mxu0 %v1352
        %v1396 = vpop.f32.mrf.mxu0
        %v1397 = vadd.f32 0.0, %v1396
        %v1398 = vpop.f32.mrf.mxu0
        %v1399 = vadd.f32 0.0, %v1398
        %1400 = vmatmul.bf16.gmra.mxu0 %v1355
        %v1401 = vpop.f32.mrf.mxu0
        %v1402 = vadd.f32 0.0, %v1401
        %v1403 = vpop.f32.mrf.mxu0
        %v1404 = vadd.f32 0.0, %v1403
        %1405 = vdwg.mxu0
        %v1407 = vsel %vm1243, %v1235, 0
        %v1410 = vsel %vm1243, %v1236, 0
        %v1413 = vsel %vm1243, %v1237, 0
        %v1416 = vsel %vm1243, %v1238, 0
        %v1419 = vsel %vm1243, %v1239, 0
        %v1422 = vsel %vm1243, %v1240, 0
        %v1425 = vsel %vm1243, %v1241, 0
        %v1428 = vsel %vm1243, %v1242, 0
        %1430 = vmatpush.bf16.msra.mxu0 0
        %1431 = vmatpush.bf16.msra.mxu0 0
        %1432 = vmatpush.bf16.msra.mxu0 0
        %1433 = vmatpush.bf16.msra.mxu0 0
        %1434 = vmatpush.bf16.msra.mxu0 0
        %1435 = vmatpush.bf16.msra.mxu0 0
        %1436 = vmatpush.bf16.msra.mxu0 %v491
        %1437 = vmatpush.bf16.msra.mxu0 %v490
        %1438 = vmatmul.bf16.gmra.mxu0 %v1407
        %v1439 = vpop.f32.mrf.mxu0
        %v1440 = vadd.f32 0.0, %v1439
        %v1441 = vpop.f32.mrf.mxu0
        %v1442 = vadd.f32 0.0, %v1441
        %1443 = vmatmul.bf16.gmra.mxu0 %v1410
        %v1444 = vpop.f32.mrf.mxu0
        %v1445 = vadd.f32 0.0, %v1444
        %v1446 = vpop.f32.mrf.mxu0
        %v1447 = vadd.f32 0.0, %v1446
        %1448 = vmatmul.bf16.gmra.mxu0 %v1413
        %v1449 = vpop.f32.mrf.mxu0
        %v1450 = vadd.f32 0.0, %v1449
        %v1451 = vpop.f32.mrf.mxu0
        %v1452 = vadd.f32 0.0, %v1451
        %1453 = vmatmul.bf16.gmra.mxu0 %v1416
        %v1454 = vpop.f32.mrf.mxu0
        %v1455 = vadd.f32 0.0, %v1454
        %v1456 = vpop.f32.mrf.mxu0
        %v1457 = vadd.f32 0.0, %v1456
        %1458 = vmatmul.bf16.gmra.mxu0 %v1419
        %v1459 = vpop.f32.mrf.mxu0
        %v1460 = vadd.f32 0.0, %v1459
        %v1461 = vpop.f32.mrf.mxu0
        %v1462 = vadd.f32 0.0, %v1461
        %1463 = vmatmul.bf16.gmra.mxu0 %v1422
        %v1464 = vpop.f32.mrf.mxu0
        %v1465 = vadd.f32 0.0, %v1464
        %v1466 = vpop.f32.mrf.mxu0
        %v1467 = vadd.f32 0.0, %v1466
        %1468 = vmatmul.bf16.gmra.mxu0 %v1425
        %v1469 = vpop.f32.mrf.mxu0
        %v1470 = vadd.f32 0.0, %v1469
        %v1471 = vpop.f32.mrf.mxu0
        %v1472 = vadd.f32 0.0, %v1471
        %1473 = vmatmul.bf16.gmra.mxu0 %v1428
        %v1474 = vpop.f32.mrf.mxu0
        %v1475 = vadd.f32 0.0, %v1474
        %v1476 = vpop.f32.mrf.mxu0
        %v1477 = vadd.f32 0.0, %v1476
        %1478 = vdwg.mxu0
        %1495 = vrot.lane.b32.xlu0 %v1317, 120
        %v1496 = vpop.permute.xlu0 %1495
        %1497 = vrot.lane.b32.xlu0 %v1318, 120
        %v1498 = vpop.permute.xlu0 %1497
        %1499 = vrot.lane.b32.xlu0 %v1319, 120
        %v1500 = vpop.permute.xlu0 %1499
        %1501 = vrot.lane.b32.xlu0 %v1320, 120
        %v1502 = vpop.permute.xlu0 %1501
        %1503 = vrot.lane.b32.xlu0 %v1321, 120
        %v1504 = vpop.permute.xlu0 %1503
        %1505 = vrot.lane.b32.xlu0 %v1322, 120
        %v1506 = vpop.permute.xlu0 %1505
        %1507 = vrot.lane.b32.xlu0 %v1323, 120
        %v1508 = vpop.permute.xlu0 %1507
        %1509 = vrot.lane.b32.xlu0 %v1324, 120
        %v1510 = vpop.permute.xlu0 %1509
        %1511 = vrot.lane.b32.xlu0 %v1325, 120
        %v1512 = vpop.permute.xlu0 %1511
        %1513 = vrot.lane.b32.xlu0 %v1326, 120
        %v1514 = vpop.permute.xlu0 %1513
        %1515 = vrot.lane.b32.xlu0 %v1327, 120
        %v1516 = vpop.permute.xlu0 %1515
        %1517 = vrot.lane.b32.xlu0 %v1328, 120
        %v1518 = vpop.permute.xlu0 %1517
        %1519 = vrot.lane.b32.xlu0 %v1329, 120
        %v1520 = vpop.permute.xlu0 %1519
        %1521 = vrot.lane.b32.xlu0 %v1330, 120
        %v1522 = vpop.permute.xlu0 %1521
        %1523 = vrot.lane.b32.xlu0 %v1331, 120
        %v1524 = vpop.permute.xlu0 %1523
        %1525 = vrot.lane.b32.xlu0 %v1332, 120
        %v1526 = vpop.permute.xlu0 %1525
        %1543 = vrot.lane.b32.xlu0 %v1317, 112
        %v1544 = vpop.permute.xlu0 %1543
        %1545 = vrot.lane.b32.xlu0 %v1318, 112
        %v1546 = vpop.permute.xlu0 %1545
        %1547 = vrot.lane.b32.xlu0 %v1319, 112
        %v1548 = vpop.permute.xlu0 %1547
        %1549 = vrot.lane.b32.xlu0 %v1320, 112
        %v1550 = vpop.permute.xlu0 %1549
        %1551 = vrot.lane.b32.xlu0 %v1321, 112
        %v1552 = vpop.permute.xlu0 %1551
        %1553 = vrot.lane.b32.xlu0 %v1322, 112
        %v1554 = vpop.permute.xlu0 %1553
        %1555 = vrot.lane.b32.xlu0 %v1323, 112
        %v1556 = vpop.permute.xlu0 %1555
        %1557 = vrot.lane.b32.xlu0 %v1324, 112
        %v1558 = vpop.permute.xlu0 %1557
        %1559 = vrot.lane.b32.xlu0 %v1325, 112
        %v1560 = vpop.permute.xlu0 %1559
        %1561 = vrot.lane.b32.xlu0 %v1326, 112
        %v1562 = vpop.permute.xlu0 %1561
        %1563 = vrot.lane.b32.xlu0 %v1327, 112
        %v1564 = vpop.permute.xlu0 %1563
        %1565 = vrot.lane.b32.xlu0 %v1328, 112
        %v1566 = vpop.permute.xlu0 %1565
        %1567 = vrot.lane.b32.xlu0 %v1329, 112
        %v1568 = vpop.permute.xlu0 %1567
        %1569 = vrot.lane.b32.xlu0 %v1330, 112
        %v1570 = vpop.permute.xlu0 %1569
        %1571 = vrot.lane.b32.xlu0 %v1331, 112
        %v1572 = vpop.permute.xlu0 %1571
        %1573 = vrot.lane.b32.xlu0 %v1332, 112
        %v1574 = vpop.permute.xlu0 %1573
        %1591 = vrot.lane.b32.xlu0 %v1317, 104
        %v1592 = vpop.permute.xlu0 %1591
        %1593 = vrot.lane.b32.xlu0 %v1318, 104
        %v1594 = vpop.permute.xlu0 %1593
        %1595 = vrot.lane.b32.xlu0 %v1319, 104
        %v1596 = vpop.permute.xlu0 %1595
        %1597 = vrot.lane.b32.xlu0 %v1320, 104
        %v1598 = vpop.permute.xlu0 %1597
        %1599 = vrot.lane.b32.xlu0 %v1321, 104
        %v1600 = vpop.permute.xlu0 %1599
        %1601 = vrot.lane.b32.xlu0 %v1322, 104
        %v1602 = vpop.permute.xlu0 %1601
        %1603 = vrot.lane.b32.xlu0 %v1323, 104
        %v1604 = vpop.permute.xlu0 %1603
        %1605 = vrot.lane.b32.xlu0 %v1324, 104
        %v1606 = vpop.permute.xlu0 %1605
        %1607 = vrot.lane.b32.xlu0 %v1325, 104
        %v1608 = vpop.permute.xlu0 %1607
        %1609 = vrot.lane.b32.xlu0 %v1326, 104
        %v1610 = vpop.permute.xlu0 %1609
        %1611 = vrot.lane.b32.xlu0 %v1327, 104
        %v1612 = vpop.permute.xlu0 %1611
        %1613 = vrot.lane.b32.xlu0 %v1328, 104
        %v1614 = vpop.permute.xlu0 %1613
        %1615 = vrot.lane.b32.xlu0 %v1329, 104
        %v1616 = vpop.permute.xlu0 %1615
        %1617 = vrot.lane.b32.xlu0 %v1330, 104
        %v1618 = vpop.permute.xlu0 %1617
        %1619 = vrot.lane.b32.xlu0 %v1331, 104
        %v1620 = vpop.permute.xlu0 %1619
        %1621 = vrot.lane.b32.xlu0 %v1332, 104
        %v1622 = vpop.permute.xlu0 %1621
        %v1639 = vpack.c.bf16 %v1317, %v1317
        %v1640 = vpack.c.bf16 %v1318, %v1318
        %v1641 = vpack.c.bf16 %v1319, %v1319
        %v1642 = vpack.c.bf16 %v1320, %v1320
        %v1643 = vpack.c.bf16 %v1321, %v1321
        %v1644 = vpack.c.bf16 %v1322, %v1322
        %v1645 = vpack.c.bf16 %v1323, %v1323
        %v1646 = vpack.c.bf16 %v1324, %v1324
        %v1647 = vpack.c.bf16 %v1325, %v1325
        %v1648 = vpack.c.bf16 %v1326, %v1326
        %v1649 = vpack.c.bf16 %v1327, %v1327
        %v1650 = vpack.c.bf16 %v1328, %v1328
        %v1651 = vpack.c.bf16 %v1329, %v1329
        %v1652 = vpack.c.bf16 %v1330, %v1330
        %v1653 = vpack.c.bf16 %v1331, %v1331
        %v1654 = vpack.c.bf16 %v1332, %v1332
        %v1655 = vpack.c.bf16 %v1496, %v1496
        %v1656 = vpack.c.bf16 %v1498, %v1498
        %v1657 = vpack.c.bf16 %v1500, %v1500
        %v1658 = vpack.c.bf16 %v1502, %v1502
        %v1659 = vpack.c.bf16 %v1504, %v1504
        %v1660 = vpack.c.bf16 %v1506, %v1506
        %v1661 = vpack.c.bf16 %v1508, %v1508
        %v1662 = vpack.c.bf16 %v1510, %v1510
        %v1663 = vpack.c.bf16 %v1512, %v1512
        %v1664 = vpack.c.bf16 %v1514, %v1514
        %v1665 = vpack.c.bf16 %v1516, %v1516
        %v1666 = vpack.c.bf16 %v1518, %v1518
        %v1667 = vpack.c.bf16 %v1520, %v1520
        %v1668 = vpack.c.bf16 %v1522, %v1522
        %v1669 = vpack.c.bf16 %v1524, %v1524
        %v1670 = vpack.c.bf16 %v1526, %v1526
        %v1671 = vpack.c.bf16 %v1544, %v1544
        %v1672 = vpack.c.bf16 %v1546, %v1546
        %v1673 = vpack.c.bf16 %v1548, %v1548
        %v1674 = vpack.c.bf16 %v1550, %v1550
        %v1675 = vpack.c.bf16 %v1552, %v1552
        %v1676 = vpack.c.bf16 %v1554, %v1554
        %v1677 = vpack.c.bf16 %v1556, %v1556
        %v1678 = vpack.c.bf16 %v1558, %v1558
        %v1679 = vpack.c.bf16 %v1560, %v1560
        %v1680 = vpack.c.bf16 %v1562, %v1562
        %v1681 = vpack.c.bf16 %v1564, %v1564
        %v1682 = vpack.c.bf16 %v1566, %v1566
        %v1683 = vpack.c.bf16 %v1568, %v1568
        %v1684 = vpack.c.bf16 %v1570, %v1570
        %v1685 = vpack.c.bf16 %v1572, %v1572
        %v1686 = vpack.c.bf16 %v1574, %v1574
        %v1687 = vpack.c.bf16 %v1592, %v1592
        %v1688 = vpack.c.bf16 %v1594, %v1594
        %v1689 = vpack.c.bf16 %v1596, %v1596
        %v1690 = vpack.c.bf16 %v1598, %v1598
        %v1691 = vpack.c.bf16 %v1600, %v1600
        %v1692 = vpack.c.bf16 %v1602, %v1602
        %v1693 = vpack.c.bf16 %v1604, %v1604
        %v1694 = vpack.c.bf16 %v1606, %v1606
        %v1695 = vpack.c.bf16 %v1608, %v1608
        %v1696 = vpack.c.bf16 %v1610, %v1610
        %v1697 = vpack.c.bf16 %v1612, %v1612
        %v1698 = vpack.c.bf16 %v1614, %v1614
        %v1699 = vpack.c.bf16 %v1616, %v1616
        %v1700 = vpack.c.bf16 %v1618, %v1618
        %v1701 = vpack.c.bf16 %v1620, %v1620
        %v1702 = vpack.c.bf16 %v1622, %v1622
        %1719 = vrot.lane.b32.xlu0 %v1367, 120
        %v1720 = vpop.permute.xlu0 %1719
        %1721 = vrot.lane.b32.xlu0 %v1369, 120
        %v1722 = vpop.permute.xlu0 %1721
        %1723 = vrot.lane.b32.xlu0 %v1372, 120
        %v1724 = vpop.permute.xlu0 %1723
        %1725 = vrot.lane.b32.xlu0 %v1374, 120
        %v1726 = vpop.permute.xlu0 %1725
        %1727 = vrot.lane.b32.xlu0 %v1377, 120
        %v1728 = vpop.permute.xlu0 %1727
        %1729 = vrot.lane.b32.xlu0 %v1379, 120
        %v1730 = vpop.permute.xlu0 %1729
        %1731 = vrot.lane.b32.xlu0 %v1382, 120
        %v1732 = vpop.permute.xlu0 %1731
        %1733 = vrot.lane.b32.xlu0 %v1384, 120
        %v1734 = vpop.permute.xlu0 %1733
        %1735 = vrot.lane.b32.xlu0 %v1387, 120
        %v1736 = vpop.permute.xlu0 %1735
        %1737 = vrot.lane.b32.xlu0 %v1389, 120
        %v1738 = vpop.permute.xlu0 %1737
        %1739 = vrot.lane.b32.xlu0 %v1392, 120
        %v1740 = vpop.permute.xlu0 %1739
        %1741 = vrot.lane.b32.xlu0 %v1394, 120
        %v1742 = vpop.permute.xlu0 %1741
        %1743 = vrot.lane.b32.xlu0 %v1397, 120
        %v1744 = vpop.permute.xlu0 %1743
        %1745 = vrot.lane.b32.xlu0 %v1399, 120
        %v1746 = vpop.permute.xlu0 %1745
        %1747 = vrot.lane.b32.xlu0 %v1402, 120
        %v1748 = vpop.permute.xlu0 %1747
        %1749 = vrot.lane.b32.xlu0 %v1404, 120
        %v1750 = vpop.permute.xlu0 %1749
        %1767 = vrot.lane.b32.xlu0 %v1367, 112
        %v1768 = vpop.permute.xlu0 %1767
        %1769 = vrot.lane.b32.xlu0 %v1369, 112
        %v1770 = vpop.permute.xlu0 %1769
        %1771 = vrot.lane.b32.xlu0 %v1372, 112
        %v1772 = vpop.permute.xlu0 %1771
        %1773 = vrot.lane.b32.xlu0 %v1374, 112
        %v1774 = vpop.permute.xlu0 %1773
        %1775 = vrot.lane.b32.xlu0 %v1377, 112
        %v1776 = vpop.permute.xlu0 %1775
        %1777 = vrot.lane.b32.xlu0 %v1379, 112
        %v1778 = vpop.permute.xlu0 %1777
        %1779 = vrot.lane.b32.xlu0 %v1382, 112
        %v1780 = vpop.permute.xlu0 %1779
        %1781 = vrot.lane.b32.xlu0 %v1384, 112
        %v1782 = vpop.permute.xlu0 %1781
        %1783 = vrot.lane.b32.xlu0 %v1387, 112
        %v1784 = vpop.permute.xlu0 %1783
        %1785 = vrot.lane.b32.xlu0 %v1389, 112
        %v1786 = vpop.permute.xlu0 %1785
        %1787 = vrot.lane.b32.xlu0 %v1392, 112
        %v1788 = vpop.permute.xlu0 %1787
        %1789 = vrot.lane.b32.xlu0 %v1394, 112
        %v1790 = vpop.permute.xlu0 %1789
        %1791 = vrot.lane.b32.xlu0 %v1397, 112
        %v1792 = vpop.permute.xlu0 %1791
        %1793 = vrot.lane.b32.xlu0 %v1399, 112
        %v1794 = vpop.permute.xlu0 %1793
        %1795 = vrot.lane.b32.xlu0 %v1402, 112
        %v1796 = vpop.permute.xlu0 %1795
        %1797 = vrot.lane.b32.xlu0 %v1404, 112
        %v1798 = vpop.permute.xlu0 %1797
        %1815 = vrot.lane.b32.xlu0 %v1367, 104
        %v1816 = vpop.permute.xlu0 %1815
        %1817 = vrot.lane.b32.xlu0 %v1369, 104
        %v1818 = vpop.permute.xlu0 %1817
        %1819 = vrot.lane.b32.xlu0 %v1372, 104
        %v1820 = vpop.permute.xlu0 %1819
        %1821 = vrot.lane.b32.xlu0 %v1374, 104
        %v1822 = vpop.permute.xlu0 %1821
        %1823 = vrot.lane.b32.xlu0 %v1377, 104
        %v1824 = vpop.permute.xlu0 %1823
        %1825 = vrot.lane.b32.xlu0 %v1379, 104
        %v1826 = vpop.permute.xlu0 %1825
        %1827 = vrot.lane.b32.xlu0 %v1382, 104
        %v1828 = vpop.permute.xlu0 %1827
        %1829 = vrot.lane.b32.xlu0 %v1384, 104
        %v1830 = vpop.permute.xlu0 %1829
        %1831 = vrot.lane.b32.xlu0 %v1387, 104
        %v1832 = vpop.permute.xlu0 %1831
        %1833 = vrot.lane.b32.xlu0 %v1389, 104
        %v1834 = vpop.permute.xlu0 %1833
        %1835 = vrot.lane.b32.xlu0 %v1392, 104
        %v1836 = vpop.permute.xlu0 %1835
        %1837 = vrot.lane.b32.xlu0 %v1394, 104
        %v1838 = vpop.permute.xlu0 %1837
        %1839 = vrot.lane.b32.xlu0 %v1397, 104
        %v1840 = vpop.permute.xlu0 %1839
        %1841 = vrot.lane.b32.xlu0 %v1399, 104
        %v1842 = vpop.permute.xlu0 %1841
        %1843 = vrot.lane.b32.xlu0 %v1402, 104
        %v1844 = vpop.permute.xlu0 %1843
        %1845 = vrot.lane.b32.xlu0 %v1404, 104
        %v1846 = vpop.permute.xlu0 %1845
        %v1863 = vpack.c.bf16 %v1367, %v1367
        %v1864 = vpack.c.bf16 %v1369, %v1369
        %v1865 = vpack.c.bf16 %v1372, %v1372
        %v1866 = vpack.c.bf16 %v1374, %v1374
        %v1867 = vpack.c.bf16 %v1377, %v1377
        %v1868 = vpack.c.bf16 %v1379, %v1379
        %v1869 = vpack.c.bf16 %v1382, %v1382
        %v1870 = vpack.c.bf16 %v1384, %v1384
        %v1871 = vpack.c.bf16 %v1387, %v1387
        %v1872 = vpack.c.bf16 %v1389, %v1389
        %v1873 = vpack.c.bf16 %v1392, %v1392
        %v1874 = vpack.c.bf16 %v1394, %v1394
        %v1875 = vpack.c.bf16 %v1397, %v1397
        %v1876 = vpack.c.bf16 %v1399, %v1399
        %v1877 = vpack.c.bf16 %v1402, %v1402
        %v1878 = vpack.c.bf16 %v1404, %v1404
        %v1879 = vpack.c.bf16 %v1720, %v1720
        %v1880 = vpack.c.bf16 %v1722, %v1722
        %v1881 = vpack.c.bf16 %v1724, %v1724
        %v1882 = vpack.c.bf16 %v1726, %v1726
        %v1883 = vpack.c.bf16 %v1728, %v1728
        %v1884 = vpack.c.bf16 %v1730, %v1730
        %v1885 = vpack.c.bf16 %v1732, %v1732
        %v1886 = vpack.c.bf16 %v1734, %v1734
        %v1887 = vpack.c.bf16 %v1736, %v1736
        %v1888 = vpack.c.bf16 %v1738, %v1738
        %v1889 = vpack.c.bf16 %v1740, %v1740
        %v1890 = vpack.c.bf16 %v1742, %v1742
        %v1891 = vpack.c.bf16 %v1744, %v1744
        %v1892 = vpack.c.bf16 %v1746, %v1746
        %v1893 = vpack.c.bf16 %v1748, %v1748
        %v1894 = vpack.c.bf16 %v1750, %v1750
        %v1895 = vpack.c.bf16 %v1768, %v1768
        %v1896 = vpack.c.bf16 %v1770, %v1770
        %v1897 = vpack.c.bf16 %v1772, %v1772
        %v1898 = vpack.c.bf16 %v1774, %v1774
        %v1899 = vpack.c.bf16 %v1776, %v1776
        %v1900 = vpack.c.bf16 %v1778, %v1778
        %v1901 = vpack.c.bf16 %v1780, %v1780
        %v1902 = vpack.c.bf16 %v1782, %v1782
        %v1903 = vpack.c.bf16 %v1784, %v1784
        %v1904 = vpack.c.bf16 %v1786, %v1786
        %v1905 = vpack.c.bf16 %v1788, %v1788
        %v1906 = vpack.c.bf16 %v1790, %v1790
        %v1907 = vpack.c.bf16 %v1792, %v1792
        %v1908 = vpack.c.bf16 %v1794, %v1794
        %v1909 = vpack.c.bf16 %v1796, %v1796
        %v1910 = vpack.c.bf16 %v1798, %v1798
        %v1911 = vpack.c.bf16 %v1816, %v1816
        %v1912 = vpack.c.bf16 %v1818, %v1818
        %v1913 = vpack.c.bf16 %v1820, %v1820
        %v1914 = vpack.c.bf16 %v1822, %v1822
        %v1915 = vpack.c.bf16 %v1824, %v1824
        %v1916 = vpack.c.bf16 %v1826, %v1826
        %v1917 = vpack.c.bf16 %v1828, %v1828
        %v1918 = vpack.c.bf16 %v1830, %v1830
        %v1919 = vpack.c.bf16 %v1832, %v1832
        %v1920 = vpack.c.bf16 %v1834, %v1834
        %v1921 = vpack.c.bf16 %v1836, %v1836
        %v1922 = vpack.c.bf16 %v1838, %v1838
        %v1923 = vpack.c.bf16 %v1840, %v1840
        %v1924 = vpack.c.bf16 %v1842, %v1842
        %v1925 = vpack.c.bf16 %v1844, %v1844
        %v1926 = vpack.c.bf16 %v1846, %v1846
        %1943 = vrot.lane.b32.xlu0 %v1440, 120
        %v1944 = vpop.permute.xlu0 %1943
        %1945 = vrot.lane.b32.xlu0 %v1442, 120
        %v1946 = vpop.permute.xlu0 %1945
        %1947 = vrot.lane.b32.xlu0 %v1445, 120
        %v1948 = vpop.permute.xlu0 %1947
        %1949 = vrot.lane.b32.xlu0 %v1447, 120
        %v1950 = vpop.permute.xlu0 %1949
        %1951 = vrot.lane.b32.xlu0 %v1450, 120
        %v1952 = vpop.permute.xlu0 %1951
        %1953 = vrot.lane.b32.xlu0 %v1452, 120
        %v1954 = vpop.permute.xlu0 %1953
        %1955 = vrot.lane.b32.xlu0 %v1455, 120
        %v1956 = vpop.permute.xlu0 %1955
        %1957 = vrot.lane.b32.xlu0 %v1457, 120
        %v1958 = vpop.permute.xlu0 %1957
        %1959 = vrot.lane.b32.xlu0 %v1460, 120
        %v1960 = vpop.permute.xlu0 %1959
        %1961 = vrot.lane.b32.xlu0 %v1462, 120
        %v1962 = vpop.permute.xlu0 %1961
        %1963 = vrot.lane.b32.xlu0 %v1465, 120
        %v1964 = vpop.permute.xlu0 %1963
        %1965 = vrot.lane.b32.xlu0 %v1467, 120
        %v1966 = vpop.permute.xlu0 %1965
        %1967 = vrot.lane.b32.xlu0 %v1470, 120
        %v1968 = vpop.permute.xlu0 %1967
        %1969 = vrot.lane.b32.xlu0 %v1472, 120
        %v1970 = vpop.permute.xlu0 %1969
        %1971 = vrot.lane.b32.xlu0 %v1475, 120
        %v1972 = vpop.permute.xlu0 %1971
        %1973 = vrot.lane.b32.xlu0 %v1477, 120
        %v1974 = vpop.permute.xlu0 %1973
        %1991 = vrot.lane.b32.xlu0 %v1440, 112
        %v1992 = vpop.permute.xlu0 %1991
        %1993 = vrot.lane.b32.xlu0 %v1442, 112
        %v1994 = vpop.permute.xlu0 %1993
        %1995 = vrot.lane.b32.xlu0 %v1445, 112
        %v1996 = vpop.permute.xlu0 %1995
        %1997 = vrot.lane.b32.xlu0 %v1447, 112
        %v1998 = vpop.permute.xlu0 %1997
        %1999 = vrot.lane.b32.xlu0 %v1450, 112
        %v2000 = vpop.permute.xlu0 %1999
        %2001 = vrot.lane.b32.xlu0 %v1452, 112
        %v2002 = vpop.permute.xlu0 %2001
        %2003 = vrot.lane.b32.xlu0 %v1455, 112
        %v2004 = vpop.permute.xlu0 %2003
        %2005 = vrot.lane.b32.xlu0 %v1457, 112
        %v2006 = vpop.permute.xlu0 %2005
        %2007 = vrot.lane.b32.xlu0 %v1460, 112
        %v2008 = vpop.permute.xlu0 %2007
        %2009 = vrot.lane.b32.xlu0 %v1462, 112
        %v2010 = vpop.permute.xlu0 %2009
        %2011 = vrot.lane.b32.xlu0 %v1465, 112
        %v2012 = vpop.permute.xlu0 %2011
        %2013 = vrot.lane.b32.xlu0 %v1467, 112
        %v2014 = vpop.permute.xlu0 %2013
        %2015 = vrot.lane.b32.xlu0 %v1470, 112
        %v2016 = vpop.permute.xlu0 %2015
        %2017 = vrot.lane.b32.xlu0 %v1472, 112
        %v2018 = vpop.permute.xlu0 %2017
        %2019 = vrot.lane.b32.xlu0 %v1475, 112
        %v2020 = vpop.permute.xlu0 %2019
        %2021 = vrot.lane.b32.xlu0 %v1477, 112
        %v2022 = vpop.permute.xlu0 %2021
        %2039 = vrot.lane.b32.xlu0 %v1440, 104
        %v2040 = vpop.permute.xlu0 %2039
        %2041 = vrot.lane.b32.xlu0 %v1442, 104
        %v2042 = vpop.permute.xlu0 %2041
        %2043 = vrot.lane.b32.xlu0 %v1445, 104
        %v2044 = vpop.permute.xlu0 %2043
        %2045 = vrot.lane.b32.xlu0 %v1447, 104
        %v2046 = vpop.permute.xlu0 %2045
        %2047 = vrot.lane.b32.xlu0 %v1450, 104
        %v2048 = vpop.permute.xlu0 %2047
        %2049 = vrot.lane.b32.xlu0 %v1452, 104
        %v2050 = vpop.permute.xlu0 %2049
        %2051 = vrot.lane.b32.xlu0 %v1455, 104
        %v2052 = vpop.permute.xlu0 %2051
        %2053 = vrot.lane.b32.xlu0 %v1457, 104
        %v2054 = vpop.permute.xlu0 %2053
        %2055 = vrot.lane.b32.xlu0 %v1460, 104
        %v2056 = vpop.permute.xlu0 %2055
        %2057 = vrot.lane.b32.xlu0 %v1462, 104
        %v2058 = vpop.permute.xlu0 %2057
        %2059 = vrot.lane.b32.xlu0 %v1465, 104
        %v2060 = vpop.permute.xlu0 %2059
        %2061 = vrot.lane.b32.xlu0 %v1467, 104
        %v2062 = vpop.permute.xlu0 %2061
        %2063 = vrot.lane.b32.xlu0 %v1470, 104
        %v2064 = vpop.permute.xlu0 %2063
        %2065 = vrot.lane.b32.xlu0 %v1472, 104
        %v2066 = vpop.permute.xlu0 %2065
        %2067 = vrot.lane.b32.xlu0 %v1475, 104
        %v2068 = vpop.permute.xlu0 %2067
        %2069 = vrot.lane.b32.xlu0 %v1477, 104
        %v2070 = vpop.permute.xlu0 %2069
        %v2087 = vpack.c.bf16 %v1440, %v1440
        %v2088 = vpack.c.bf16 %v1442, %v1442
        %v2089 = vpack.c.bf16 %v1445, %v1445
        %v2090 = vpack.c.bf16 %v1447, %v1447
        %v2091 = vpack.c.bf16 %v1450, %v1450
        %v2092 = vpack.c.bf16 %v1452, %v1452
        %v2093 = vpack.c.bf16 %v1455, %v1455
        %v2094 = vpack.c.bf16 %v1457, %v1457
        %v2095 = vpack.c.bf16 %v1460, %v1460
        %v2096 = vpack.c.bf16 %v1462, %v1462
        %v2097 = vpack.c.bf16 %v1465, %v1465
        %v2098 = vpack.c.bf16 %v1467, %v1467
        %v2099 = vpack.c.bf16 %v1470, %v1470
        %v2100 = vpack.c.bf16 %v1472, %v1472
        %v2101 = vpack.c.bf16 %v1475, %v1475
        %v2102 = vpack.c.bf16 %v1477, %v1477
        %v2103 = vpack.c.bf16 %v1944, %v1944
        %v2104 = vpack.c.bf16 %v1946, %v1946
        %v2105 = vpack.c.bf16 %v1948, %v1948
        %v2106 = vpack.c.bf16 %v1950, %v1950
        %v2107 = vpack.c.bf16 %v1952, %v1952
        %v2108 = vpack.c.bf16 %v1954, %v1954
        %v2109 = vpack.c.bf16 %v1956, %v1956
        %v2110 = vpack.c.bf16 %v1958, %v1958
        %v2111 = vpack.c.bf16 %v1960, %v1960
        %v2112 = vpack.c.bf16 %v1962, %v1962
        %v2113 = vpack.c.bf16 %v1964, %v1964
        %v2114 = vpack.c.bf16 %v1966, %v1966
        %v2115 = vpack.c.bf16 %v1968, %v1968
        %v2116 = vpack.c.bf16 %v1970, %v1970
        %v2117 = vpack.c.bf16 %v1972, %v1972
        %v2118 = vpack.c.bf16 %v1974, %v1974
        %v2119 = vpack.c.bf16 %v1992, %v1992
        %v2120 = vpack.c.bf16 %v1994, %v1994
        %v2121 = vpack.c.bf16 %v1996, %v1996
        %v2122 = vpack.c.bf16 %v1998, %v1998
        %v2123 = vpack.c.bf16 %v2000, %v2000
        %v2124 = vpack.c.bf16 %v2002, %v2002
        %v2125 = vpack.c.bf16 %v2004, %v2004
        %v2126 = vpack.c.bf16 %v2006, %v2006
        %v2127 = vpack.c.bf16 %v2008, %v2008
        %v2128 = vpack.c.bf16 %v2010, %v2010
        %v2129 = vpack.c.bf16 %v2012, %v2012
        %v2130 = vpack.c.bf16 %v2014, %v2014
        %v2131 = vpack.c.bf16 %v2016, %v2016
        %v2132 = vpack.c.bf16 %v2018, %v2018
        %v2133 = vpack.c.bf16 %v2020, %v2020
        %v2134 = vpack.c.bf16 %v2022, %v2022
        %v2135 = vpack.c.bf16 %v2040, %v2040
        %v2136 = vpack.c.bf16 %v2042, %v2042
        %v2137 = vpack.c.bf16 %v2044, %v2044
        %v2138 = vpack.c.bf16 %v2046, %v2046
        %v2139 = vpack.c.bf16 %v2048, %v2048
        %v2140 = vpack.c.bf16 %v2050, %v2050
        %v2141 = vpack.c.bf16 %v2052, %v2052
        %v2142 = vpack.c.bf16 %v2054, %v2054
        %v2143 = vpack.c.bf16 %v2056, %v2056
        %v2144 = vpack.c.bf16 %v2058, %v2058
        %v2145 = vpack.c.bf16 %v2060, %v2060
        %v2146 = vpack.c.bf16 %v2062, %v2062
        %v2147 = vpack.c.bf16 %v2064, %v2064
        %v2148 = vpack.c.bf16 %v2066, %v2066
        %v2149 = vpack.c.bf16 %v2068, %v2068
        %v2150 = vpack.c.bf16 %v2070, %v2070
        %v2153 = vunpack.c.l.b16 %v1639
        %v2154 = vunpack.c.l.b16 %v1640
        %v2155 = vpack.c.b16 %v2154, %v2153
        %v2158 = vunpack.c.l.b16 %v1863
        %v2159 = vunpack.c.l.b16 %v1864
        %v2160 = vpack.c.b16 %v2159, %v2158
        %vm2161 = vcmask 64512
        %v2163 = vsel %vm2161, %v2155, 0
        %v2166 = vsel %vm2161, %v2160, 0
        %2168 = vmatpush.bf16.xpose.msra.mxu0 0
        %2169 = vmatpush.bf16.xpose.msra.mxu0 0
        %2170 = vmatpush.bf16.xpose.msra.mxu0 0
        %2171 = vmatpush.bf16.xpose.msra.mxu0 0
        %2172 = vmatpush.bf16.xpose.msra.mxu0 0
        %2173 = vmatpush.bf16.xpose.msra.mxu0 0
        %2174 = vmatpush.bf16.xpose.msra.mxu0 0
        %2175 = vmatpush.bf16.xpose.msra.mxu0 %v2166
        %2176 = vmatmul.bf16.gmra.mxu0 %v2163
        %v2177 = vpop.f32.mrf.mxu0
        %v2178 = vadd.f32 0.0, %v2177
        %v2179 = vpop.f32.mrf.mxu0
        %v2180 = vadd.f32 0.0, %v2179
        %2181 = vdwg.mxu0
        %v2184 = vunpack.c.l.b16 %v1641
        %v2185 = vunpack.c.l.b16 %v1642
        %v2186 = vpack.c.b16 %v2185, %v2184
        %v2189 = vunpack.c.l.b16 %v1865
        %v2190 = vunpack.c.l.b16 %v1866
        %v2191 = vpack.c.b16 %v2190, %v2189
        %v2193 = vsel %vm2161, %v2186, 0
        %v2196 = vsel %vm2161, %v2191, 0
        %2198 = vmatpush.bf16.xpose.msra.mxu0 0
        %2199 = vmatpush.bf16.xpose.msra.mxu0 0
        %2200 = vmatpush.bf16.xpose.msra.mxu0 0
        %2201 = vmatpush.bf16.xpose.msra.mxu0 0
        %2202 = vmatpush.bf16.xpose.msra.mxu0 0
        %2203 = vmatpush.bf16.xpose.msra.mxu0 0
        %2204 = vmatpush.bf16.xpose.msra.mxu0 0
        %2205 = vmatpush.bf16.xpose.msra.mxu0 %v2196
        %2206 = vmatmul.bf16.gmra.mxu0 %v2193
        %v2207 = vpop.f32.mrf.mxu0
        %v2208 = vadd.f32 0.0, %v2207
        %v2209 = vpop.f32.mrf.mxu0
        %v2210 = vadd.f32 0.0, %v2209
        %2211 = vdwg.mxu0
        %v2214 = vunpack.c.l.b16 %v1643
        %v2215 = vunpack.c.l.b16 %v1644
        %v2216 = vpack.c.b16 %v2215, %v2214
        %v2219 = vunpack.c.l.b16 %v1867
        %v2220 = vunpack.c.l.b16 %v1868
        %v2221 = vpack.c.b16 %v2220, %v2219
        %v2223 = vsel %vm2161, %v2216, 0
        %v2226 = vsel %vm2161, %v2221, 0
        %2228 = vmatpush.bf16.xpose.msra.mxu0 0
        %2229 = vmatpush.bf16.xpose.msra.mxu0 0
        %2230 = vmatpush.bf16.xpose.msra.mxu0 0
        %2231 = vmatpush.bf16.xpose.msra.mxu0 0
        %2232 = vmatpush.bf16.xpose.msra.mxu0 0
        %2233 = vmatpush.bf16.xpose.msra.mxu0 0
        %2234 = vmatpush.bf16.xpose.msra.mxu0 0
        %2235 = vmatpush.bf16.xpose.msra.mxu0 %v2226
        %2236 = vmatmul.bf16.gmra.mxu0 %v2223
        %v2237 = vpop.f32.mrf.mxu0
        %v2238 = vadd.f32 0.0, %v2237
        %v2239 = vpop.f32.mrf.mxu0
        %v2240 = vadd.f32 0.0, %v2239
        %2241 = vdwg.mxu0
        %v2244 = vunpack.c.l.b16 %v1645
        %v2245 = vunpack.c.l.b16 %v1646
        %v2246 = vpack.c.b16 %v2245, %v2244
        %v2249 = vunpack.c.l.b16 %v1869
        %v2250 = vunpack.c.l.b16 %v1870
        %v2251 = vpack.c.b16 %v2250, %v2249
        %v2253 = vsel %vm2161, %v2246, 0
        %v2256 = vsel %vm2161, %v2251, 0
        %2258 = vmatpush.bf16.xpose.msra.mxu0 0
        %2259 = vmatpush.bf16.xpose.msra.mxu0 0
        %2260 = vmatpush.bf16.xpose.msra.mxu0 0
        %2261 = vmatpush.bf16.xpose.msra.mxu0 0
        %2262 = vmatpush.bf16.xpose.msra.mxu0 0
        %2263 = vmatpush.bf16.xpose.msra.mxu0 0
        %2264 = vmatpush.bf16.xpose.msra.mxu0 0
        %2265 = vmatpush.bf16.xpose.msra.mxu0 %v2256
        %2266 = vmatmul.bf16.gmra.mxu0 %v2253
        %v2267 = vpop.f32.mrf.mxu0
        %v2268 = vadd.f32 0.0, %v2267
        %v2269 = vpop.f32.mrf.mxu0
        %v2270 = vadd.f32 0.0, %v2269
        %2271 = vdwg.mxu0
        %v2274 = vunpack.c.l.b16 %v1647
        %v2275 = vunpack.c.l.b16 %v1648
        %v2276 = vpack.c.b16 %v2275, %v2274
        %v2279 = vunpack.c.l.b16 %v1871
        %v2280 = vunpack.c.l.b16 %v1872
        %v2281 = vpack.c.b16 %v2280, %v2279
        %v2283 = vsel %vm2161, %v2276, 0
        %v2286 = vsel %vm2161, %v2281, 0
        %2288 = vmatpush.bf16.xpose.msra.mxu0 0
        %2289 = vmatpush.bf16.xpose.msra.mxu0 0
        %2290 = vmatpush.bf16.xpose.msra.mxu0 0
        %2291 = vmatpush.bf16.xpose.msra.mxu0 0
        %2292 = vmatpush.bf16.xpose.msra.mxu0 0
        %2293 = vmatpush.bf16.xpose.msra.mxu0 0
        %2294 = vmatpush.bf16.xpose.msra.mxu0 0
        %2295 = vmatpush.bf16.xpose.msra.mxu0 %v2286
        %2296 = vmatmul.bf16.gmra.mxu0 %v2283
        %v2297 = vpop.f32.mrf.mxu0
        %v2298 = vadd.f32 0.0, %v2297
        %v2299 = vpop.f32.mrf.mxu0
        %v2300 = vadd.f32 0.0, %v2299
        %2301 = vdwg.mxu0
        %v2304 = vunpack.c.l.b16 %v1649
        %v2305 = vunpack.c.l.b16 %v1650
        %v2306 = vpack.c.b16 %v2305, %v2304
        %v2309 = vunpack.c.l.b16 %v1873
        %v2310 = vunpack.c.l.b16 %v1874
        %v2311 = vpack.c.b16 %v2310, %v2309
        %v2313 = vsel %vm2161, %v2306, 0
        %v2316 = vsel %vm2161, %v2311, 0
        %2318 = vmatpush.bf16.xpose.msra.mxu0 0
        %2319 = vmatpush.bf16.xpose.msra.mxu0 0
        %2320 = vmatpush.bf16.xpose.msra.mxu0 0
        %2321 = vmatpush.bf16.xpose.msra.mxu0 0
        %2322 = vmatpush.bf16.xpose.msra.mxu0 0
        %2323 = vmatpush.bf16.xpose.msra.mxu0 0
        %2324 = vmatpush.bf16.xpose.msra.mxu0 0
        %2325 = vmatpush.bf16.xpose.msra.mxu0 %v2316
        %2326 = vmatmul.bf16.gmra.mxu0 %v2313
        %v2327 = vpop.f32.mrf.mxu0
        %v2328 = vadd.f32 0.0, %v2327
        %v2329 = vpop.f32.mrf.mxu0
        %v2330 = vadd.f32 0.0, %v2329
        %2331 = vdwg.mxu0
        %v2334 = vunpack.c.l.b16 %v1651
        %v2335 = vunpack.c.l.b16 %v1652
        %v2336 = vpack.c.b16 %v2335, %v2334
        %v2339 = vunpack.c.l.b16 %v1875
        %v2340 = vunpack.c.l.b16 %v1876
        %v2341 = vpack.c.b16 %v2340, %v2339
        %v2343 = vsel %vm2161, %v2336, 0
        %v2346 = vsel %vm2161, %v2341, 0
        %2348 = vmatpush.bf16.xpose.msra.mxu0 0
        %2349 = vmatpush.bf16.xpose.msra.mxu0 0
        %2350 = vmatpush.bf16.xpose.msra.mxu0 0
        %2351 = vmatpush.bf16.xpose.msra.mxu0 0
        %2352 = vmatpush.bf16.xpose.msra.mxu0 0
        %2353 = vmatpush.bf16.xpose.msra.mxu0 0
        %2354 = vmatpush.bf16.xpose.msra.mxu0 0
        %2355 = vmatpush.bf16.xpose.msra.mxu0 %v2346
        %2356 = vmatmul.bf16.gmra.mxu0 %v2343
        %v2357 = vpop.f32.mrf.mxu0
        %v2358 = vadd.f32 0.0, %v2357
        %v2359 = vpop.f32.mrf.mxu0
        %v2360 = vadd.f32 0.0, %v2359
        %2361 = vdwg.mxu0
        %v2364 = vunpack.c.l.b16 %v1653
        %v2365 = vunpack.c.l.b16 %v1654
        %v2366 = vpack.c.b16 %v2365, %v2364
        %v2369 = vunpack.c.l.b16 %v1877
        %v2370 = vunpack.c.l.b16 %v1878
        %v2371 = vpack.c.b16 %v2370, %v2369
        %v2373 = vsel %vm2161, %v2366, 0
        %v2376 = vsel %vm2161, %v2371, 0
        %2378 = vmatpush.bf16.xpose.msra.mxu0 0
        %2379 = vmatpush.bf16.xpose.msra.mxu0 0
        %2380 = vmatpush.bf16.xpose.msra.mxu0 0
        %2381 = vmatpush.bf16.xpose.msra.mxu0 0
        %2382 = vmatpush.bf16.xpose.msra.mxu0 0
        %2383 = vmatpush.bf16.xpose.msra.mxu0 0
        %2384 = vmatpush.bf16.xpose.msra.mxu0 0
        %2385 = vmatpush.bf16.xpose.msra.mxu0 %v2376
        %2386 = vmatmul.bf16.gmra.mxu0 %v2373
        %v2387 = vpop.f32.mrf.mxu0
        %v2388 = vadd.f32 0.0, %v2387
        %v2389 = vpop.f32.mrf.mxu0
        %v2390 = vadd.f32 0.0, %v2389
        %2391 = vdwg.mxu0
        %v2394 = vunpack.c.l.b16 %v1655
        %v2395 = vunpack.c.l.b16 %v1656
        %v2396 = vpack.c.b16 %v2395, %v2394
        %v2399 = vunpack.c.l.b16 %v1879
        %v2400 = vunpack.c.l.b16 %v1880
        %v2401 = vpack.c.b16 %v2400, %v2399
        %v2403 = vsel %vm2161, %v2396, 0
        %v2406 = vsel %vm2161, %v2401, 0
        %2408 = vmatpush.bf16.xpose.msra.mxu0 0
        %2409 = vmatpush.bf16.xpose.msra.mxu0 0
        %2410 = vmatpush.bf16.xpose.msra.mxu0 0
        %2411 = vmatpush.bf16.xpose.msra.mxu0 0
        %2412 = vmatpush.bf16.xpose.msra.mxu0 0
        %2413 = vmatpush.bf16.xpose.msra.mxu0 0
        %2414 = vmatpush.bf16.xpose.msra.mxu0 0
        %2415 = vmatpush.bf16.xpose.msra.mxu0 %v2406
        %2416 = vmatmul.bf16.gmra.mxu0 %v2403
        %v2417 = vpop.f32.mrf.mxu0
        %v2418 = vadd.f32 0.0, %v2417
        %v2419 = vpop.f32.mrf.mxu0
        %v2420 = vadd.f32 0.0, %v2419
        %2421 = vdwg.mxu0
        %v2424 = vunpack.c.l.b16 %v1657
        %v2425 = vunpack.c.l.b16 %v1658
        %v2426 = vpack.c.b16 %v2425, %v2424
        %v2429 = vunpack.c.l.b16 %v1881
        %v2430 = vunpack.c.l.b16 %v1882
        %v2431 = vpack.c.b16 %v2430, %v2429
        %v2433 = vsel %vm2161, %v2426, 0
        %v2436 = vsel %vm2161, %v2431, 0
        %2438 = vmatpush.bf16.xpose.msra.mxu0 0
        %2439 = vmatpush.bf16.xpose.msra.mxu0 0
        %2440 = vmatpush.bf16.xpose.msra.mxu0 0
        %2441 = vmatpush.bf16.xpose.msra.mxu0 0
        %2442 = vmatpush.bf16.xpose.msra.mxu0 0
        %2443 = vmatpush.bf16.xpose.msra.mxu0 0
        %2444 = vmatpush.bf16.xpose.msra.mxu0 0
        %2445 = vmatpush.bf16.xpose.msra.mxu0 %v2436
        %2446 = vmatmul.bf16.gmra.mxu0 %v2433
        %v2447 = vpop.f32.mrf.mxu0
        %v2448 = vadd.f32 0.0, %v2447
        %v2449 = vpop.f32.mrf.mxu0
        %v2450 = vadd.f32 0.0, %v2449
        %2451 = vdwg.mxu0
        %v2454 = vunpack.c.l.b16 %v1659
        %v2455 = vunpack.c.l.b16 %v1660
        %v2456 = vpack.c.b16 %v2455, %v2454
        %v2459 = vunpack.c.l.b16 %v1883
        %v2460 = vunpack.c.l.b16 %v1884
        %v2461 = vpack.c.b16 %v2460, %v2459
        %v2463 = vsel %vm2161, %v2456, 0
        %v2466 = vsel %vm2161, %v2461, 0
        %2468 = vmatpush.bf16.xpose.msra.mxu0 0
        %2469 = vmatpush.bf16.xpose.msra.mxu0 0
        %2470 = vmatpush.bf16.xpose.msra.mxu0 0
        %2471 = vmatpush.bf16.xpose.msra.mxu0 0
        %2472 = vmatpush.bf16.xpose.msra.mxu0 0
        %2473 = vmatpush.bf16.xpose.msra.mxu0 0
        %2474 = vmatpush.bf16.xpose.msra.mxu0 0
        %2475 = vmatpush.bf16.xpose.msra.mxu0 %v2466
        %2476 = vmatmul.bf16.gmra.mxu0 %v2463
        %v2477 = vpop.f32.mrf.mxu0
        %v2478 = vadd.f32 0.0, %v2477
        %v2479 = vpop.f32.mrf.mxu0
        %v2480 = vadd.f32 0.0, %v2479
        %2481 = vdwg.mxu0
        %v2484 = vunpack.c.l.b16 %v1661
        %v2485 = vunpack.c.l.b16 %v1662
        %v2486 = vpack.c.b16 %v2485, %v2484
        %v2489 = vunpack.c.l.b16 %v1885
        %v2490 = vunpack.c.l.b16 %v1886
        %v2491 = vpack.c.b16 %v2490, %v2489
        %v2493 = vsel %vm2161, %v2486, 0
        %v2496 = vsel %vm2161, %v2491, 0
        %2498 = vmatpush.bf16.xpose.msra.mxu0 0
        %2499 = vmatpush.bf16.xpose.msra.mxu0 0
        %2500 = vmatpush.bf16.xpose.msra.mxu0 0
        %2501 = vmatpush.bf16.xpose.msra.mxu0 0
        %2502 = vmatpush.bf16.xpose.msra.mxu0 0
        %2503 = vmatpush.bf16.xpose.msra.mxu0 0
        %2504 = vmatpush.bf16.xpose.msra.mxu0 0
        %2505 = vmatpush.bf16.xpose.msra.mxu0 %v2496
        %2506 = vmatmul.bf16.gmra.mxu0 %v2493
        %v2507 = vpop.f32.mrf.mxu0
        %v2508 = vadd.f32 0.0, %v2507
        %v2509 = vpop.f32.mrf.mxu0
        %v2510 = vadd.f32 0.0, %v2509
        %2511 = vdwg.mxu0
        %v2514 = vunpack.c.l.b16 %v1663
        %v2515 = vunpack.c.l.b16 %v1664
        %v2516 = vpack.c.b16 %v2515, %v2514
        %v2519 = vunpack.c.l.b16 %v1887
        %v2520 = vunpack.c.l.b16 %v1888
        %v2521 = vpack.c.b16 %v2520, %v2519
        %v2523 = vsel %vm2161, %v2516, 0
        %v2526 = vsel %vm2161, %v2521, 0
        %2528 = vmatpush.bf16.xpose.msra.mxu0 0
        %2529 = vmatpush.bf16.xpose.msra.mxu0 0
        %2530 = vmatpush.bf16.xpose.msra.mxu0 0
        %2531 = vmatpush.bf16.xpose.msra.mxu0 0
        %2532 = vmatpush.bf16.xpose.msra.mxu0 0
        %2533 = vmatpush.bf16.xpose.msra.mxu0 0
        %2534 = vmatpush.bf16.xpose.msra.mxu0 0
        %2535 = vmatpush.bf16.xpose.msra.mxu0 %v2526
        %2536 = vmatmul.bf16.gmra.mxu0 %v2523
        %v2537 = vpop.f32.mrf.mxu0
        %v2538 = vadd.f32 0.0, %v2537
        %v2539 = vpop.f32.mrf.mxu0
        %v2540 = vadd.f32 0.0, %v2539
        %2541 = vdwg.mxu0
        %v2544 = vunpack.c.l.b16 %v1665
        %v2545 = vunpack.c.l.b16 %v1666
        %v2546 = vpack.c.b16 %v2545, %v2544
        %v2549 = vunpack.c.l.b16 %v1889
        %v2550 = vunpack.c.l.b16 %v1890
        %v2551 = vpack.c.b16 %v2550, %v2549
        %v2553 = vsel %vm2161, %v2546, 0
        %v2556 = vsel %vm2161, %v2551, 0
        %2558 = vmatpush.bf16.xpose.msra.mxu0 0
        %2559 = vmatpush.bf16.xpose.msra.mxu0 0
        %2560 = vmatpush.bf16.xpose.msra.mxu0 0
        %2561 = vmatpush.bf16.xpose.msra.mxu0 0
        %2562 = vmatpush.bf16.xpose.msra.mxu0 0
        %2563 = vmatpush.bf16.xpose.msra.mxu0 0
        %2564 = vmatpush.bf16.xpose.msra.mxu0 0
        %2565 = vmatpush.bf16.xpose.msra.mxu0 %v2556
        %2566 = vmatmul.bf16.gmra.mxu0 %v2553
        %v2567 = vpop.f32.mrf.mxu0
        %v2568 = vadd.f32 0.0, %v2567
        %v2569 = vpop.f32.mrf.mxu0
        %v2570 = vadd.f32 0.0, %v2569
        %2571 = vdwg.mxu0
        %v2574 = vunpack.c.l.b16 %v1667
        %v2575 = vunpack.c.l.b16 %v1668
        %v2576 = vpack.c.b16 %v2575, %v2574
        %v2579 = vunpack.c.l.b16 %v1891
        %v2580 = vunpack.c.l.b16 %v1892
        %v2581 = vpack.c.b16 %v2580, %v2579
        %v2583 = vsel %vm2161, %v2576, 0
        %v2586 = vsel %vm2161, %v2581, 0
        %2588 = vmatpush.bf16.xpose.msra.mxu0 0
        %2589 = vmatpush.bf16.xpose.msra.mxu0 0
        %2590 = vmatpush.bf16.xpose.msra.mxu0 0
        %2591 = vmatpush.bf16.xpose.msra.mxu0 0
        %2592 = vmatpush.bf16.xpose.msra.mxu0 0
        %2593 = vmatpush.bf16.xpose.msra.mxu0 0
        %2594 = vmatpush.bf16.xpose.msra.mxu0 0
        %2595 = vmatpush.bf16.xpose.msra.mxu0 %v2586
        %2596 = vmatmul.bf16.gmra.mxu0 %v2583
        %v2597 = vpop.f32.mrf.mxu0
        %v2598 = vadd.f32 0.0, %v2597
        %v2599 = vpop.f32.mrf.mxu0
        %v2600 = vadd.f32 0.0, %v2599
        %2601 = vdwg.mxu0
        %v2604 = vunpack.c.l.b16 %v1669
        %v2605 = vunpack.c.l.b16 %v1670
        %v2606 = vpack.c.b16 %v2605, %v2604
        %v2609 = vunpack.c.l.b16 %v1893
        %v2610 = vunpack.c.l.b16 %v1894
        %v2611 = vpack.c.b16 %v2610, %v2609
        %v2613 = vsel %vm2161, %v2606, 0
        %v2616 = vsel %vm2161, %v2611, 0
        %2618 = vmatpush.bf16.xpose.msra.mxu0 0
        %2619 = vmatpush.bf16.xpose.msra.mxu0 0
        %2620 = vmatpush.bf16.xpose.msra.mxu0 0
        %2621 = vmatpush.bf16.xpose.msra.mxu0 0
        %2622 = vmatpush.bf16.xpose.msra.mxu0 0
        %2623 = vmatpush.bf16.xpose.msra.mxu0 0
        %2624 = vmatpush.bf16.xpose.msra.mxu0 0
        %2625 = vmatpush.bf16.xpose.msra.mxu0 %v2616
        %2626 = vmatmul.bf16.gmra.mxu0 %v2613
        %v2627 = vpop.f32.mrf.mxu0
        %v2628 = vadd.f32 0.0, %v2627
        %v2629 = vpop.f32.mrf.mxu0
        %v2630 = vadd.f32 0.0, %v2629
        %2631 = vdwg.mxu0
        %v2634 = vunpack.c.l.b16 %v1671
        %v2635 = vunpack.c.l.b16 %v1672
        %v2636 = vpack.c.b16 %v2635, %v2634
        %v2639 = vunpack.c.l.b16 %v1895
        %v2640 = vunpack.c.l.b16 %v1896
        %v2641 = vpack.c.b16 %v2640, %v2639
        %v2643 = vsel %vm2161, %v2636, 0
        %v2646 = vsel %vm2161, %v2641, 0
        %2648 = vmatpush.bf16.xpose.msra.mxu0 0
        %2649 = vmatpush.bf16.xpose.msra.mxu0 0
        %2650 = vmatpush.bf16.xpose.msra.mxu0 0
        %2651 = vmatpush.bf16.xpose.msra.mxu0 0
        %2652 = vmatpush.bf16.xpose.msra.mxu0 0
        %2653 = vmatpush.bf16.xpose.msra.mxu0 0
        %2654 = vmatpush.bf16.xpose.msra.mxu0 0
        %2655 = vmatpush.bf16.xpose.msra.mxu0 %v2646
        %2656 = vmatmul.bf16.gmra.mxu0 %v2643
        %v2657 = vpop.f32.mrf.mxu0
        %v2658 = vadd.f32 0.0, %v2657
        %v2659 = vpop.f32.mrf.mxu0
        %v2660 = vadd.f32 0.0, %v2659
        %2661 = vdwg.mxu0
        %v2664 = vunpack.c.l.b16 %v1673
        %v2665 = vunpack.c.l.b16 %v1674
        %v2666 = vpack.c.b16 %v2665, %v2664
        %v2669 = vunpack.c.l.b16 %v1897
        %v2670 = vunpack.c.l.b16 %v1898
        %v2671 = vpack.c.b16 %v2670, %v2669
        %v2673 = vsel %vm2161, %v2666, 0
        %v2676 = vsel %vm2161, %v2671, 0
        %2678 = vmatpush.bf16.xpose.msra.mxu0 0
        %2679 = vmatpush.bf16.xpose.msra.mxu0 0
        %2680 = vmatpush.bf16.xpose.msra.mxu0 0
        %2681 = vmatpush.bf16.xpose.msra.mxu0 0
        %2682 = vmatpush.bf16.xpose.msra.mxu0 0
        %2683 = vmatpush.bf16.xpose.msra.mxu0 0
        %2684 = vmatpush.bf16.xpose.msra.mxu0 0
        %2685 = vmatpush.bf16.xpose.msra.mxu0 %v2676
        %2686 = vmatmul.bf16.gmra.mxu0 %v2673
        %v2687 = vpop.f32.mrf.mxu0
        %v2688 = vadd.f32 0.0, %v2687
        %v2689 = vpop.f32.mrf.mxu0
        %v2690 = vadd.f32 0.0, %v2689
        %2691 = vdwg.mxu0
        %v2694 = vunpack.c.l.b16 %v1675
        %v2695 = vunpack.c.l.b16 %v1676
        %v2696 = vpack.c.b16 %v2695, %v2694
        %v2699 = vunpack.c.l.b16 %v1899
        %v2700 = vunpack.c.l.b16 %v1900
        %v2701 = vpack.c.b16 %v2700, %v2699
        %v2703 = vsel %vm2161, %v2696, 0
        %v2706 = vsel %vm2161, %v2701, 0
        %2708 = vmatpush.bf16.xpose.msra.mxu0 0
        %2709 = vmatpush.bf16.xpose.msra.mxu0 0
        %2710 = vmatpush.bf16.xpose.msra.mxu0 0
        %2711 = vmatpush.bf16.xpose.msra.mxu0 0
        %2712 = vmatpush.bf16.xpose.msra.mxu0 0
        %2713 = vmatpush.bf16.xpose.msra.mxu0 0
        %2714 = vmatpush.bf16.xpose.msra.mxu0 0
        %2715 = vmatpush.bf16.xpose.msra.mxu0 %v2706
        %2716 = vmatmul.bf16.gmra.mxu0 %v2703
        %v2717 = vpop.f32.mrf.mxu0
        %v2718 = vadd.f32 0.0, %v2717
        %v2719 = vpop.f32.mrf.mxu0
        %v2720 = vadd.f32 0.0, %v2719
        %2721 = vdwg.mxu0
        %v2724 = vunpack.c.l.b16 %v1677
        %v2725 = vunpack.c.l.b16 %v1678
        %v2726 = vpack.c.b16 %v2725, %v2724
        %v2729 = vunpack.c.l.b16 %v1901
        %v2730 = vunpack.c.l.b16 %v1902
        %v2731 = vpack.c.b16 %v2730, %v2729
        %v2733 = vsel %vm2161, %v2726, 0
        %v2736 = vsel %vm2161, %v2731, 0
        %2738 = vmatpush.bf16.xpose.msra.mxu0 0
        %2739 = vmatpush.bf16.xpose.msra.mxu0 0
        %2740 = vmatpush.bf16.xpose.msra.mxu0 0
        %2741 = vmatpush.bf16.xpose.msra.mxu0 0
        %2742 = vmatpush.bf16.xpose.msra.mxu0 0
        %2743 = vmatpush.bf16.xpose.msra.mxu0 0
        %2744 = vmatpush.bf16.xpose.msra.mxu0 0
        %2745 = vmatpush.bf16.xpose.msra.mxu0 %v2736
        %2746 = vmatmul.bf16.gmra.mxu0 %v2733
        %v2747 = vpop.f32.mrf.mxu0
        %v2748 = vadd.f32 0.0, %v2747
        %v2749 = vpop.f32.mrf.mxu0
        %v2750 = vadd.f32 0.0, %v2749
        %2751 = vdwg.mxu0
        %v2754 = vunpack.c.l.b16 %v1679
        %v2755 = vunpack.c.l.b16 %v1680
        %v2756 = vpack.c.b16 %v2755, %v2754
        %v2759 = vunpack.c.l.b16 %v1903
        %v2760 = vunpack.c.l.b16 %v1904
        %v2761 = vpack.c.b16 %v2760, %v2759
        %v2763 = vsel %vm2161, %v2756, 0
        %v2766 = vsel %vm2161, %v2761, 0
        %2768 = vmatpush.bf16.xpose.msra.mxu0 0
        %2769 = vmatpush.bf16.xpose.msra.mxu0 0
        %2770 = vmatpush.bf16.xpose.msra.mxu0 0
        %2771 = vmatpush.bf16.xpose.msra.mxu0 0
        %2772 = vmatpush.bf16.xpose.msra.mxu0 0
        %2773 = vmatpush.bf16.xpose.msra.mxu0 0
        %2774 = vmatpush.bf16.xpose.msra.mxu0 0
        %2775 = vmatpush.bf16.xpose.msra.mxu0 %v2766
        %2776 = vmatmul.bf16.gmra.mxu0 %v2763
        %v2777 = vpop.f32.mrf.mxu0
        %v2778 = vadd.f32 0.0, %v2777
        %v2779 = vpop.f32.mrf.mxu0
        %v2780 = vadd.f32 0.0, %v2779
        %2781 = vdwg.mxu0
        %v2784 = vunpack.c.l.b16 %v1681
        %v2785 = vunpack.c.l.b16 %v1682
        %v2786 = vpack.c.b16 %v2785, %v2784
        %v2789 = vunpack.c.l.b16 %v1905
        %v2790 = vunpack.c.l.b16 %v1906
        %v2791 = vpack.c.b16 %v2790, %v2789
        %v2793 = vsel %vm2161, %v2786, 0
        %v2796 = vsel %vm2161, %v2791, 0
        %2798 = vmatpush.bf16.xpose.msra.mxu0 0
        %2799 = vmatpush.bf16.xpose.msra.mxu0 0
        %2800 = vmatpush.bf16.xpose.msra.mxu0 0
        %2801 = vmatpush.bf16.xpose.msra.mxu0 0
        %2802 = vmatpush.bf16.xpose.msra.mxu0 0
        %2803 = vmatpush.bf16.xpose.msra.mxu0 0
        %2804 = vmatpush.bf16.xpose.msra.mxu0 0
        %2805 = vmatpush.bf16.xpose.msra.mxu0 %v2796
        %2806 = vmatmul.bf16.gmra.mxu0 %v2793
        %v2807 = vpop.f32.mrf.mxu0
        %v2808 = vadd.f32 0.0, %v2807
        %v2809 = vpop.f32.mrf.mxu0
        %v2810 = vadd.f32 0.0, %v2809
        %2811 = vdwg.mxu0
        %v2814 = vunpack.c.l.b16 %v1683
        %v2815 = vunpack.c.l.b16 %v1684
        %v2816 = vpack.c.b16 %v2815, %v2814
        %v2819 = vunpack.c.l.b16 %v1907
        %v2820 = vunpack.c.l.b16 %v1908
        %v2821 = vpack.c.b16 %v2820, %v2819
        %v2823 = vsel %vm2161, %v2816, 0
        %v2826 = vsel %vm2161, %v2821, 0
        %2828 = vmatpush.bf16.xpose.msra.mxu0 0
        %2829 = vmatpush.bf16.xpose.msra.mxu0 0
        %2830 = vmatpush.bf16.xpose.msra.mxu0 0
        %2831 = vmatpush.bf16.xpose.msra.mxu0 0
        %2832 = vmatpush.bf16.xpose.msra.mxu0 0
        %2833 = vmatpush.bf16.xpose.msra.mxu0 0
        %2834 = vmatpush.bf16.xpose.msra.mxu0 0
        %2835 = vmatpush.bf16.xpose.msra.mxu0 %v2826
        %2836 = vmatmul.bf16.gmra.mxu0 %v2823
        %v2837 = vpop.f32.mrf.mxu0
        %v2838 = vadd.f32 0.0, %v2837
        %v2839 = vpop.f32.mrf.mxu0
        %v2840 = vadd.f32 0.0, %v2839
        %2841 = vdwg.mxu0
        %v2844 = vunpack.c.l.b16 %v1685
        %v2845 = vunpack.c.l.b16 %v1686
        %v2846 = vpack.c.b16 %v2845, %v2844
        %v2849 = vunpack.c.l.b16 %v1909
        %v2850 = vunpack.c.l.b16 %v1910
        %v2851 = vpack.c.b16 %v2850, %v2849
        %v2853 = vsel %vm2161, %v2846, 0
        %v2856 = vsel %vm2161, %v2851, 0
        %2858 = vmatpush.bf16.xpose.msra.mxu0 0
        %2859 = vmatpush.bf16.xpose.msra.mxu0 0
        %2860 = vmatpush.bf16.xpose.msra.mxu0 0
        %2861 = vmatpush.bf16.xpose.msra.mxu0 0
        %2862 = vmatpush.bf16.xpose.msra.mxu0 0
        %2863 = vmatpush.bf16.xpose.msra.mxu0 0
        %2864 = vmatpush.bf16.xpose.msra.mxu0 0
        %2865 = vmatpush.bf16.xpose.msra.mxu0 %v2856
        %2866 = vmatmul.bf16.gmra.mxu0 %v2853
        %v2867 = vpop.f32.mrf.mxu0
        %v2868 = vadd.f32 0.0, %v2867
        %v2869 = vpop.f32.mrf.mxu0
        %v2870 = vadd.f32 0.0, %v2869
        %2871 = vdwg.mxu0
        %v2874 = vunpack.c.l.b16 %v1687
        %v2875 = vunpack.c.l.b16 %v1688
        %v2876 = vpack.c.b16 %v2875, %v2874
        %v2879 = vunpack.c.l.b16 %v1911
        %v2880 = vunpack.c.l.b16 %v1912
        %v2881 = vpack.c.b16 %v2880, %v2879
        %v2883 = vsel %vm2161, %v2876, 0
        %v2886 = vsel %vm2161, %v2881, 0
        %2888 = vmatpush.bf16.xpose.msra.mxu0 0
        %2889 = vmatpush.bf16.xpose.msra.mxu0 0
        %2890 = vmatpush.bf16.xpose.msra.mxu0 0
        %2891 = vmatpush.bf16.xpose.msra.mxu0 0
        %2892 = vmatpush.bf16.xpose.msra.mxu0 0
        %2893 = vmatpush.bf16.xpose.msra.mxu0 0
        %2894 = vmatpush.bf16.xpose.msra.mxu0 0
        %2895 = vmatpush.bf16.xpose.msra.mxu0 %v2886
        %2896 = vmatmul.bf16.gmra.mxu0 %v2883
        %v2897 = vpop.f32.mrf.mxu0
        %v2898 = vadd.f32 0.0, %v2897
        %v2899 = vpop.f32.mrf.mxu0
        %v2900 = vadd.f32 0.0, %v2899
        %2901 = vdwg.mxu0
        %v2904 = vunpack.c.l.b16 %v1689
        %v2905 = vunpack.c.l.b16 %v1690
        %v2906 = vpack.c.b16 %v2905, %v2904
        %v2909 = vunpack.c.l.b16 %v1913
        %v2910 = vunpack.c.l.b16 %v1914
        %v2911 = vpack.c.b16 %v2910, %v2909
        %v2913 = vsel %vm2161, %v2906, 0
        %v2916 = vsel %vm2161, %v2911, 0
        %2918 = vmatpush.bf16.xpose.msra.mxu0 0
        %2919 = vmatpush.bf16.xpose.msra.mxu0 0
        %2920 = vmatpush.bf16.xpose.msra.mxu0 0
        %2921 = vmatpush.bf16.xpose.msra.mxu0 0
        %2922 = vmatpush.bf16.xpose.msra.mxu0 0
        %2923 = vmatpush.bf16.xpose.msra.mxu0 0
        %2924 = vmatpush.bf16.xpose.msra.mxu0 0
        %2925 = vmatpush.bf16.xpose.msra.mxu0 %v2916
        %2926 = vmatmul.bf16.gmra.mxu0 %v2913
        %v2927 = vpop.f32.mrf.mxu0
        %v2928 = vadd.f32 0.0, %v2927
        %v2929 = vpop.f32.mrf.mxu0
        %v2930 = vadd.f32 0.0, %v2929
        %2931 = vdwg.mxu0
        %v2934 = vunpack.c.l.b16 %v1691
        %v2935 = vunpack.c.l.b16 %v1692
        %v2936 = vpack.c.b16 %v2935, %v2934
        %v2939 = vunpack.c.l.b16 %v1915
        %v2940 = vunpack.c.l.b16 %v1916
        %v2941 = vpack.c.b16 %v2940, %v2939
        %v2943 = vsel %vm2161, %v2936, 0
        %v2946 = vsel %vm2161, %v2941, 0
        %2948 = vmatpush.bf16.xpose.msra.mxu0 0
        %2949 = vmatpush.bf16.xpose.msra.mxu0 0
        %2950 = vmatpush.bf16.xpose.msra.mxu0 0
        %2951 = vmatpush.bf16.xpose.msra.mxu0 0
        %2952 = vmatpush.bf16.xpose.msra.mxu0 0
        %2953 = vmatpush.bf16.xpose.msra.mxu0 0
        %2954 = vmatpush.bf16.xpose.msra.mxu0 0
        %2955 = vmatpush.bf16.xpose.msra.mxu0 %v2946
        %2956 = vmatmul.bf16.gmra.mxu0 %v2943
        %v2957 = vpop.f32.mrf.mxu0
        %v2958 = vadd.f32 0.0, %v2957
        %v2959 = vpop.f32.mrf.mxu0
        %v2960 = vadd.f32 0.0, %v2959
        %2961 = vdwg.mxu0
        %v2964 = vunpack.c.l.b16 %v1693
        %v2965 = vunpack.c.l.b16 %v1694
        %v2966 = vpack.c.b16 %v2965, %v2964
        %v2969 = vunpack.c.l.b16 %v1917
        %v2970 = vunpack.c.l.b16 %v1918
        %v2971 = vpack.c.b16 %v2970, %v2969
        %v2973 = vsel %vm2161, %v2966, 0
        %v2976 = vsel %vm2161, %v2971, 0
        %2978 = vmatpush.bf16.xpose.msra.mxu0 0
        %2979 = vmatpush.bf16.xpose.msra.mxu0 0
        %2980 = vmatpush.bf16.xpose.msra.mxu0 0
        %2981 = vmatpush.bf16.xpose.msra.mxu0 0
        %2982 = vmatpush.bf16.xpose.msra.mxu0 0
        %2983 = vmatpush.bf16.xpose.msra.mxu0 0
        %2984 = vmatpush.bf16.xpose.msra.mxu0 0
        %2985 = vmatpush.bf16.xpose.msra.mxu0 %v2976
        %2986 = vmatmul.bf16.gmra.mxu0 %v2973
        %v2987 = vpop.f32.mrf.mxu0
        %v2988 = vadd.f32 0.0, %v2987
        %v2989 = vpop.f32.mrf.mxu0
        %v2990 = vadd.f32 0.0, %v2989
        %2991 = vdwg.mxu0
        %v2994 = vunpack.c.l.b16 %v1695
        %v2995 = vunpack.c.l.b16 %v1696
        %v2996 = vpack.c.b16 %v2995, %v2994
        %v2999 = vunpack.c.l.b16 %v1919
        %v3000 = vunpack.c.l.b16 %v1920
        %v3001 = vpack.c.b16 %v3000, %v2999
        %v3003 = vsel %vm2161, %v2996, 0
        %v3006 = vsel %vm2161, %v3001, 0
        %3008 = vmatpush.bf16.xpose.msra.mxu0 0
        %3009 = vmatpush.bf16.xpose.msra.mxu0 0
        %3010 = vmatpush.bf16.xpose.msra.mxu0 0
        %3011 = vmatpush.bf16.xpose.msra.mxu0 0
        %3012 = vmatpush.bf16.xpose.msra.mxu0 0
        %3013 = vmatpush.bf16.xpose.msra.mxu0 0
        %3014 = vmatpush.bf16.xpose.msra.mxu0 0
        %3015 = vmatpush.bf16.xpose.msra.mxu0 %v3006
        %3016 = vmatmul.bf16.gmra.mxu0 %v3003
        %v3017 = vpop.f32.mrf.mxu0
        %v3018 = vadd.f32 0.0, %v3017
        %v3019 = vpop.f32.mrf.mxu0
        %v3020 = vadd.f32 0.0, %v3019
        %3021 = vdwg.mxu0
        %v3024 = vunpack.c.l.b16 %v1697
        %v3025 = vunpack.c.l.b16 %v1698
        %v3026 = vpack.c.b16 %v3025, %v3024
        %v3029 = vunpack.c.l.b16 %v1921
        %v3030 = vunpack.c.l.b16 %v1922
        %v3031 = vpack.c.b16 %v3030, %v3029
        %v3033 = vsel %vm2161, %v3026, 0
        %v3036 = vsel %vm2161, %v3031, 0
        %3038 = vmatpush.bf16.xpose.msra.mxu0 0
        %3039 = vmatpush.bf16.xpose.msra.mxu0 0
        %3040 = vmatpush.bf16.xpose.msra.mxu0 0
        %3041 = vmatpush.bf16.xpose.msra.mxu0 0
        %3042 = vmatpush.bf16.xpose.msra.mxu0 0
        %3043 = vmatpush.bf16.xpose.msra.mxu0 0
        %3044 = vmatpush.bf16.xpose.msra.mxu0 0
        %3045 = vmatpush.bf16.xpose.msra.mxu0 %v3036
        %3046 = vmatmul.bf16.gmra.mxu0 %v3033
        %v3047 = vpop.f32.mrf.mxu0
        %v3048 = vadd.f32 0.0, %v3047
        %v3049 = vpop.f32.mrf.mxu0
        %v3050 = vadd.f32 0.0, %v3049
        %3051 = vdwg.mxu0
        %v3054 = vunpack.c.l.b16 %v1699
        %v3055 = vunpack.c.l.b16 %v1700
        %v3056 = vpack.c.b16 %v3055, %v3054
        %v3059 = vunpack.c.l.b16 %v1923
        %v3060 = vunpack.c.l.b16 %v1924
        %v3061 = vpack.c.b16 %v3060, %v3059
        %v3063 = vsel %vm2161, %v3056, 0
        %v3066 = vsel %vm2161, %v3061, 0
        %3068 = vmatpush.bf16.xpose.msra.mxu0 0
        %3069 = vmatpush.bf16.xpose.msra.mxu0 0
        %3070 = vmatpush.bf16.xpose.msra.mxu0 0
        %3071 = vmatpush.bf16.xpose.msra.mxu0 0
        %3072 = vmatpush.bf16.xpose.msra.mxu0 0
        %3073 = vmatpush.bf16.xpose.msra.mxu0 0
        %3074 = vmatpush.bf16.xpose.msra.mxu0 0
        %3075 = vmatpush.bf16.xpose.msra.mxu0 %v3066
        %3076 = vmatmul.bf16.gmra.mxu0 %v3063
        %v3077 = vpop.f32.mrf.mxu0
        %v3078 = vadd.f32 0.0, %v3077
        %v3079 = vpop.f32.mrf.mxu0
        %v3080 = vadd.f32 0.0, %v3079
        %3081 = vdwg.mxu0
        %v3084 = vunpack.c.l.b16 %v1701
        %v3085 = vunpack.c.l.b16 %v1702
        %v3086 = vpack.c.b16 %v3085, %v3084
        %v3089 = vunpack.c.l.b16 %v1925
        %v3090 = vunpack.c.l.b16 %v1926
        %v3091 = vpack.c.b16 %v3090, %v3089
        %v3093 = vsel %vm2161, %v3086, 0
        %v3096 = vsel %vm2161, %v3091, 0
        %3098 = vmatpush.bf16.xpose.msra.mxu0 0
        %3099 = vmatpush.bf16.xpose.msra.mxu0 0
        %3100 = vmatpush.bf16.xpose.msra.mxu0 0
        %3101 = vmatpush.bf16.xpose.msra.mxu0 0
        %3102 = vmatpush.bf16.xpose.msra.mxu0 0
        %3103 = vmatpush.bf16.xpose.msra.mxu0 0
        %3104 = vmatpush.bf16.xpose.msra.mxu0 0
        %3105 = vmatpush.bf16.xpose.msra.mxu0 %v3096
        %3106 = vmatmul.bf16.gmra.mxu0 %v3093
        %v3107 = vpop.f32.mrf.mxu0
        %v3108 = vadd.f32 0.0, %v3107
        %v3109 = vpop.f32.mrf.mxu0
        %v3110 = vadd.f32 0.0, %v3109
        %3111 = vdwg.mxu0
        %vm3112 = vcmask 130048
        %v3113 = vsel %vm3112, %v2178, -inf
        %3114 = vmax.xlane.f32.xlu0 %v3113
        %v3115 = vpop.xlane.xlu0 %3114
        %v3116 = vsel %vm3112, %v2180, -inf
        %3117 = vmax.xlane.f32.xlu0 %v3116
        %v3118 = vpop.xlane.xlu0 %3117
        %v3119 = vsel %vm3112, %v2208, -inf
        %3120 = vmax.xlane.f32.xlu0 %v3119
        %v3121 = vpop.xlane.xlu0 %3120
        %v3122 = vsel %vm3112, %v2210, -inf
        %3123 = vmax.xlane.f32.xlu0 %v3122
        %v3124 = vpop.xlane.xlu0 %3123
        %v3125 = vsel %vm3112, %v2238, -inf
        %3126 = vmax.xlane.f32.xlu0 %v3125
        %v3127 = vpop.xlane.xlu0 %3126
        %v3128 = vsel %vm3112, %v2240, -inf
        %3129 = vmax.xlane.f32.xlu0 %v3128
        %v3130 = vpop.xlane.xlu0 %3129
        %v3131 = vsel %vm3112, %v2268, -inf
        %3132 = vmax.xlane.f32.xlu0 %v3131
        %v3133 = vpop.xlane.xlu0 %3132
        %v3134 = vsel %vm3112, %v2270, -inf
        %3135 = vmax.xlane.f32.xlu0 %v3134
        %v3136 = vpop.xlane.xlu0 %3135
        %v3137 = vsel %vm3112, %v2298, -inf
        %3138 = vmax.xlane.f32.xlu0 %v3137
        %v3139 = vpop.xlane.xlu0 %3138
        %v3140 = vsel %vm3112, %v2300, -inf
        %3141 = vmax.xlane.f32.xlu0 %v3140
        %v3142 = vpop.xlane.xlu0 %3141
        %v3143 = vsel %vm3112, %v2328, -inf
        %3144 = vmax.xlane.f32.xlu0 %v3143
        %v3145 = vpop.xlane.xlu0 %3144
        %v3146 = vsel %vm3112, %v2330, -inf
        %3147 = vmax.xlane.f32.xlu0 %v3146
        %v3148 = vpop.xlane.xlu0 %3147
        %v3149 = vsel %vm3112, %v2358, -inf
        %3150 = vmax.xlane.f32.xlu0 %v3149
        %v3151 = vpop.xlane.xlu0 %3150
        %v3152 = vsel %vm3112, %v2360, -inf
        %3153 = vmax.xlane.f32.xlu0 %v3152
        %v3154 = vpop.xlane.xlu0 %3153
        %v3155 = vsel %vm3112, %v2388, -inf
        %3156 = vmax.xlane.f32.xlu0 %v3155
        %v3157 = vpop.xlane.xlu0 %3156
        %v3158 = vsel %vm3112, %v2390, -inf
        %3159 = vmax.xlane.f32.xlu0 %v3158
        %v3160 = vpop.xlane.xlu0 %3159
        %v3161 = vsel %vm3112, %v2418, -inf
        %3162 = vmax.xlane.f32.xlu0 %v3161
        %v3163 = vpop.xlane.xlu0 %3162
        %v3164 = vsel %vm3112, %v2420, -inf
        %3165 = vmax.xlane.f32.xlu0 %v3164
        %v3166 = vpop.xlane.xlu0 %3165
        %v3167 = vsel %vm3112, %v2448, -inf
        %3168 = vmax.xlane.f32.xlu0 %v3167
        %v3169 = vpop.xlane.xlu0 %3168
        %v3170 = vsel %vm3112, %v2450, -inf
        %3171 = vmax.xlane.f32.xlu0 %v3170
        %v3172 = vpop.xlane.xlu0 %3171
        %v3173 = vsel %vm3112, %v2478, -inf
        %3174 = vmax.xlane.f32.xlu0 %v3173
        %v3175 = vpop.xlane.xlu0 %3174
        %v3176 = vsel %vm3112, %v2480, -inf
        %3177 = vmax.xlane.f32.xlu0 %v3176
        %v3178 = vpop.xlane.xlu0 %3177
        %v3179 = vsel %vm3112, %v2508, -inf
        %3180 = vmax.xlane.f32.xlu0 %v3179
        %v3181 = vpop.xlane.xlu0 %3180
        %v3182 = vsel %vm3112, %v2510, -inf
        %3183 = vmax.xlane.f32.xlu0 %v3182
        %v3184 = vpop.xlane.xlu0 %3183
        %v3185 = vsel %vm3112, %v2538, -inf
        %3186 = vmax.xlane.f32.xlu0 %v3185
        %v3187 = vpop.xlane.xlu0 %3186
        %v3188 = vsel %vm3112, %v2540, -inf
        %3189 = vmax.xlane.f32.xlu0 %v3188
        %v3190 = vpop.xlane.xlu0 %3189
        %v3191 = vsel %vm3112, %v2568, -inf
        %3192 = vmax.xlane.f32.xlu0 %v3191
        %v3193 = vpop.xlane.xlu0 %3192
        %v3194 = vsel %vm3112, %v2570, -inf
        %3195 = vmax.xlane.f32.xlu0 %v3194
        %v3196 = vpop.xlane.xlu0 %3195
        %v3197 = vsel %vm3112, %v2598, -inf
        %3198 = vmax.xlane.f32.xlu0 %v3197
        %v3199 = vpop.xlane.xlu0 %3198
        %v3200 = vsel %vm3112, %v2600, -inf
        %3201 = vmax.xlane.f32.xlu0 %v3200
        %v3202 = vpop.xlane.xlu0 %3201
        %v3203 = vsel %vm3112, %v2628, -inf
        %3204 = vmax.xlane.f32.xlu0 %v3203
        %v3205 = vpop.xlane.xlu0 %3204
        %v3206 = vsel %vm3112, %v2630, -inf
        %3207 = vmax.xlane.f32.xlu0 %v3206
        %v3208 = vpop.xlane.xlu0 %3207
        %v3209 = vsel %vm3112, %v2658, -inf
        %3210 = vmax.xlane.f32.xlu0 %v3209
        %v3211 = vpop.xlane.xlu0 %3210
        %v3212 = vsel %vm3112, %v2660, -inf
        %3213 = vmax.xlane.f32.xlu0 %v3212
        %v3214 = vpop.xlane.xlu0 %3213
        %v3215 = vsel %vm3112, %v2688, -inf
        %3216 = vmax.xlane.f32.xlu0 %v3215
        %v3217 = vpop.xlane.xlu0 %3216
        %v3218 = vsel %vm3112, %v2690, -inf
        %3219 = vmax.xlane.f32.xlu0 %v3218
        %v3220 = vpop.xlane.xlu0 %3219
        %v3221 = vsel %vm3112, %v2718, -inf
        %3222 = vmax.xlane.f32.xlu0 %v3221
        %v3223 = vpop.xlane.xlu0 %3222
        %v3224 = vsel %vm3112, %v2720, -inf
        %3225 = vmax.xlane.f32.xlu0 %v3224
        %v3226 = vpop.xlane.xlu0 %3225
        %v3227 = vsel %vm3112, %v2748, -inf
        %3228 = vmax.xlane.f32.xlu0 %v3227
        %v3229 = vpop.xlane.xlu0 %3228
        %v3230 = vsel %vm3112, %v2750, -inf
        %3231 = vmax.xlane.f32.xlu0 %v3230
        %v3232 = vpop.xlane.xlu0 %3231
        %v3233 = vsel %vm3112, %v2778, -inf
        %3234 = vmax.xlane.f32.xlu0 %v3233
        %v3235 = vpop.xlane.xlu0 %3234
        %v3236 = vsel %vm3112, %v2780, -inf
        %3237 = vmax.xlane.f32.xlu0 %v3236
        %v3238 = vpop.xlane.xlu0 %3237
        %v3239 = vsel %vm3112, %v2808, -inf
        %3240 = vmax.xlane.f32.xlu0 %v3239
        %v3241 = vpop.xlane.xlu0 %3240
        %v3242 = vsel %vm3112, %v2810, -inf
        %3243 = vmax.xlane.f32.xlu0 %v3242
        %v3244 = vpop.xlane.xlu0 %3243
        %v3245 = vsel %vm3112, %v2838, -inf
        %3246 = vmax.xlane.f32.xlu0 %v3245
        %v3247 = vpop.xlane.xlu0 %3246
        %v3248 = vsel %vm3112, %v2840, -inf
        %3249 = vmax.xlane.f32.xlu0 %v3248
        %v3250 = vpop.xlane.xlu0 %3249
        %v3251 = vsel %vm3112, %v2868, -inf
        %3252 = vmax.xlane.f32.xlu0 %v3251
        %v3253 = vpop.xlane.xlu0 %3252
        %v3254 = vsel %vm3112, %v2870, -inf
        %3255 = vmax.xlane.f32.xlu0 %v3254
        %v3256 = vpop.xlane.xlu0 %3255
        %v3257 = vsel %vm3112, %v2898, -inf
        %3258 = vmax.xlane.f32.xlu0 %v3257
        %v3259 = vpop.xlane.xlu0 %3258
        %v3260 = vsel %vm3112, %v2900, -inf
        %3261 = vmax.xlane.f32.xlu0 %v3260
        %v3262 = vpop.xlane.xlu0 %3261
        %v3263 = vsel %vm3112, %v2928, -inf
        %3264 = vmax.xlane.f32.xlu0 %v3263
        %v3265 = vpop.xlane.xlu0 %3264
        %v3266 = vsel %vm3112, %v2930, -inf
        %3267 = vmax.xlane.f32.xlu0 %v3266
        %v3268 = vpop.xlane.xlu0 %3267
        %v3269 = vsel %vm3112, %v2958, -inf
        %3270 = vmax.xlane.f32.xlu0 %v3269
        %v3271 = vpop.xlane.xlu0 %3270
        %v3272 = vsel %vm3112, %v2960, -inf
        %3273 = vmax.xlane.f32.xlu0 %v3272
        %v3274 = vpop.xlane.xlu0 %3273
        %v3275 = vsel %vm3112, %v2988, -inf
        %3276 = vmax.xlane.f32.xlu0 %v3275
        %v3277 = vpop.xlane.xlu0 %3276
        %v3278 = vsel %vm3112, %v2990, -inf
        %3279 = vmax.xlane.f32.xlu0 %v3278
        %v3280 = vpop.xlane.xlu0 %3279
        %v3281 = vsel %vm3112, %v3018, -inf
        %3282 = vmax.xlane.f32.xlu0 %v3281
        %v3283 = vpop.xlane.xlu0 %3282
        %v3284 = vsel %vm3112, %v3020, -inf
        %3285 = vmax.xlane.f32.xlu0 %v3284
        %v3286 = vpop.xlane.xlu0 %3285
        %v3287 = vsel %vm3112, %v3048, -inf
        %3288 = vmax.xlane.f32.xlu0 %v3287
        %v3289 = vpop.xlane.xlu0 %3288
        %v3290 = vsel %vm3112, %v3050, -inf
        %3291 = vmax.xlane.f32.xlu0 %v3290
        %v3292 = vpop.xlane.xlu0 %3291
        %v3293 = vsel %vm3112, %v3078, -inf
        %3294 = vmax.xlane.f32.xlu0 %v3293
        %v3295 = vpop.xlane.xlu0 %3294
        %v3296 = vsel %vm3112, %v3080, -inf
        %3297 = vmax.xlane.f32.xlu0 %v3296
        %v3298 = vpop.xlane.xlu0 %3297
        %v3299 = vsel %vm3112, %v3108, -inf
        %3300 = vmax.xlane.f32.xlu0 %v3299
        %v3301 = vpop.xlane.xlu0 %3300
        %v3302 = vsel %vm3112, %v3110, -inf
        %3303 = vmax.xlane.f32.xlu0 %v3302
        %v3304 = vpop.xlane.xlu0 %3303
        %v3305 = vsub.f32 %v2178, %v3115
        %v3306 = vsub.f32 %v2180, %v3118
        %v3307 = vsub.f32 %v2208, %v3121
        %v3308 = vsub.f32 %v2210, %v3124
        %v3309 = vsub.f32 %v2238, %v3127
        %v3310 = vsub.f32 %v2240, %v3130
        %v3311 = vsub.f32 %v2268, %v3133
        %v3312 = vsub.f32 %v2270, %v3136
        %v3313 = vsub.f32 %v2298, %v3139
        %v3314 = vsub.f32 %v2300, %v3142
        %v3315 = vsub.f32 %v2328, %v3145
        %v3316 = vsub.f32 %v2330, %v3148
        %v3317 = vsub.f32 %v2358, %v3151
        %v3318 = vsub.f32 %v2360, %v3154
        %v3319 = vsub.f32 %v2388, %v3157
        %v3320 = vsub.f32 %v2390, %v3160
        %v3321 = vsub.f32 %v2418, %v3163
        %v3322 = vsub.f32 %v2420, %v3166
        %v3323 = vsub.f32 %v2448, %v3169
        %v3324 = vsub.f32 %v2450, %v3172
        %v3325 = vsub.f32 %v2478, %v3175
        %v3326 = vsub.f32 %v2480, %v3178
        %v3327 = vsub.f32 %v2508, %v3181
        %v3328 = vsub.f32 %v2510, %v3184
        %v3329 = vsub.f32 %v2538, %v3187
        %v3330 = vsub.f32 %v2540, %v3190
        %v3331 = vsub.f32 %v2568, %v3193
        %v3332 = vsub.f32 %v2570, %v3196
        %v3333 = vsub.f32 %v2598, %v3199
        %v3334 = vsub.f32 %v2600, %v3202
        %v3335 = vsub.f32 %v2628, %v3205
        %v3336 = vsub.f32 %v2630, %v3208
        %v3337 = vsub.f32 %v2658, %v3211
        %v3338 = vsub.f32 %v2660, %v3214
        %v3339 = vsub.f32 %v2688, %v3217
        %v3340 = vsub.f32 %v2690, %v3220
        %v3341 = vsub.f32 %v2718, %v3223
        %v3342 = vsub.f32 %v2720, %v3226
        %v3343 = vsub.f32 %v2748, %v3229
        %v3344 = vsub.f32 %v2750, %v3232
        %v3345 = vsub.f32 %v2778, %v3235
        %v3346 = vsub.f32 %v2780, %v3238
        %v3347 = vsub.f32 %v2808, %v3241
        %v3348 = vsub.f32 %v2810, %v3244
        %v3349 = vsub.f32 %v2838, %v3247
        %v3350 = vsub.f32 %v2840, %v3250
        %v3351 = vsub.f32 %v2868, %v3253
        %v3352 = vsub.f32 %v2870, %v3256
        %v3353 = vsub.f32 %v2898, %v3259
        %v3354 = vsub.f32 %v2900, %v3262
        %v3355 = vsub.f32 %v2928, %v3265
        %v3356 = vsub.f32 %v2930, %v3268
        %v3357 = vsub.f32 %v2958, %v3271
        %v3358 = vsub.f32 %v2960, %v3274
        %v3359 = vsub.f32 %v2988, %v3277
        %v3360 = vsub.f32 %v2990, %v3280
        %v3361 = vsub.f32 %v3018, %v3283
        %v3362 = vsub.f32 %v3020, %v3286
        %v3363 = vsub.f32 %v3048, %v3289
        %v3364 = vsub.f32 %v3050, %v3292
        %v3365 = vsub.f32 %v3078, %v3295
        %v3366 = vsub.f32 %v3080, %v3298
        %v3367 = vsub.f32 %v3108, %v3301
        %v3368 = vsub.f32 %v3110, %v3304
        %v3369 = vmul.f32 %v3305, 1.442695
        %v3370 = vpow.pop %v3369
        %v3371 = vmul.f32 %v3306, 1.442695
        %v3372 = vpow.pop %v3371
        %v3373 = vmul.f32 %v3307, 1.442695
        %v3374 = vpow.pop %v3373
        %v3375 = vmul.f32 %v3308, 1.442695
        %v3376 = vpow.pop %v3375
        %v3377 = vmul.f32 %v3309, 1.442695
        %v3378 = vpow.pop %v3377
        %v3379 = vmul.f32 %v3310, 1.442695
        %v3380 = vpow.pop %v3379
        %v3381 = vmul.f32 %v3311, 1.442695
        %v3382 = vpow.pop %v3381
        %v3383 = vmul.f32 %v3312, 1.442695
        %v3384 = vpow.pop %v3383
        %v3385 = vmul.f32 %v3313, 1.442695
        %v3386 = vpow.pop %v3385
        %v3387 = vmul.f32 %v3314, 1.442695
        %v3388 = vpow.pop %v3387
        %v3389 = vmul.f32 %v3315, 1.442695
        %v3390 = vpow.pop %v3389
        %v3391 = vmul.f32 %v3316, 1.442695
        %v3392 = vpow.pop %v3391
        %v3393 = vmul.f32 %v3317, 1.442695
        %v3394 = vpow.pop %v3393
        %v3395 = vmul.f32 %v3318, 1.442695
        %v3396 = vpow.pop %v3395
        %v3397 = vmul.f32 %v3319, 1.442695
        %v3398 = vpow.pop %v3397
        %v3399 = vmul.f32 %v3320, 1.442695
        %v3400 = vpow.pop %v3399
        %v3401 = vmul.f32 %v3321, 1.442695
        %v3402 = vpow.pop %v3401
        %v3403 = vmul.f32 %v3322, 1.442695
        %v3404 = vpow.pop %v3403
        %v3405 = vmul.f32 %v3323, 1.442695
        %v3406 = vpow.pop %v3405
        %v3407 = vmul.f32 %v3324, 1.442695
        %v3408 = vpow.pop %v3407
        %v3409 = vmul.f32 %v3325, 1.442695
        %v3410 = vpow.pop %v3409
        %v3411 = vmul.f32 %v3326, 1.442695
        %v3412 = vpow.pop %v3411
        %v3413 = vmul.f32 %v3327, 1.442695
        %v3414 = vpow.pop %v3413
        %v3415 = vmul.f32 %v3328, 1.442695
        %v3416 = vpow.pop %v3415
        %v3417 = vmul.f32 %v3329, 1.442695
        %v3418 = vpow.pop %v3417
        %v3419 = vmul.f32 %v3330, 1.442695
        %v3420 = vpow.pop %v3419
        %v3421 = vmul.f32 %v3331, 1.442695
        %v3422 = vpow.pop %v3421
        %v3423 = vmul.f32 %v3332, 1.442695
        %v3424 = vpow.pop %v3423
        %v3425 = vmul.f32 %v3333, 1.442695
        %v3426 = vpow.pop %v3425
        %v3427 = vmul.f32 %v3334, 1.442695
        %v3428 = vpow.pop %v3427
        %v3429 = vmul.f32 %v3335, 1.442695
        %v3430 = vpow.pop %v3429
        %v3431 = vmul.f32 %v3336, 1.442695
        %v3432 = vpow.pop %v3431
        %v3433 = vmul.f32 %v3337, 1.442695
        %v3434 = vpow.pop %v3433
        %v3435 = vmul.f32 %v3338, 1.442695
        %v3436 = vpow.pop %v3435
        %v3437 = vmul.f32 %v3339, 1.442695
        %v3438 = vpow.pop %v3437
        %v3439 = vmul.f32 %v3340, 1.442695
        %v3440 = vpow.pop %v3439
        %v3441 = vmul.f32 %v3341, 1.442695
        %v3442 = vpow.pop %v3441
        %v3443 = vmul.f32 %v3342, 1.442695
        %v3444 = vpow.pop %v3443
        %v3445 = vmul.f32 %v3343, 1.442695
        %v3446 = vpow.pop %v3445
        %v3447 = vmul.f32 %v3344, 1.442695
        %v3448 = vpow.pop %v3447
        %v3449 = vmul.f32 %v3345, 1.442695
        %v3450 = vpow.pop %v3449
        %v3451 = vmul.f32 %v3346, 1.442695
        %v3452 = vpow.pop %v3451
        %v3453 = vmul.f32 %v3347, 1.442695
        %v3454 = vpow.pop %v3453
        %v3455 = vmul.f32 %v3348, 1.442695
        %v3456 = vpow.pop %v3455
        %v3457 = vmul.f32 %v3349, 1.442695
        %v3458 = vpow.pop %v3457
        %v3459 = vmul.f32 %v3350, 1.442695
        %v3460 = vpow.pop %v3459
        %v3461 = vmul.f32 %v3351, 1.442695
        %v3462 = vpow.pop %v3461
        %v3463 = vmul.f32 %v3352, 1.442695
        %v3464 = vpow.pop %v3463
        %v3465 = vmul.f32 %v3353, 1.442695
        %v3466 = vpow.pop %v3465
        %v3467 = vmul.f32 %v3354, 1.442695
        %v3468 = vpow.pop %v3467
        %v3469 = vmul.f32 %v3355, 1.442695
        %v3470 = vpow.pop %v3469
        %v3471 = vmul.f32 %v3356, 1.442695
        %v3472 = vpow.pop %v3471
        %v3473 = vmul.f32 %v3357, 1.442695
        %v3474 = vpow.pop %v3473
        %v3475 = vmul.f32 %v3358, 1.442695
        %v3476 = vpow.pop %v3475
        %v3477 = vmul.f32 %v3359, 1.442695
        %v3478 = vpow.pop %v3477
        %v3479 = vmul.f32 %v3360, 1.442695
        %v3480 = vpow.pop %v3479
        %v3481 = vmul.f32 %v3361, 1.442695
        %v3482 = vpow.pop %v3481
        %v3483 = vmul.f32 %v3362, 1.442695
        %v3484 = vpow.pop %v3483
        %v3485 = vmul.f32 %v3363, 1.442695
        %v3486 = vpow.pop %v3485
        %v3487 = vmul.f32 %v3364, 1.442695
        %v3488 = vpow.pop %v3487
        %v3489 = vmul.f32 %v3365, 1.442695
        %v3490 = vpow.pop %v3489
        %v3491 = vmul.f32 %v3366, 1.442695
        %v3492 = vpow.pop %v3491
        %v3493 = vmul.f32 %v3367, 1.442695
        %v3494 = vpow.pop %v3493
        %v3495 = vmul.f32 %v3368, 1.442695
        %v3496 = vpow.pop %v3495
        %v3497 = vsel %vm3112, %v3370, 0.0
        %3498 = vadd.xlane.f32.xlu0 %v3497
        %v3499 = vpop.xlane.xlu0 %3498
        %v3500 = vsel %vm3112, %v3372, 0.0
        %3501 = vadd.xlane.f32.xlu0 %v3500
        %v3502 = vpop.xlane.xlu0 %3501
        %v3503 = vsel %vm3112, %v3374, 0.0
        %3504 = vadd.xlane.f32.xlu0 %v3503
        %v3505 = vpop.xlane.xlu0 %3504
        %v3506 = vsel %vm3112, %v3376, 0.0
        %3507 = vadd.xlane.f32.xlu0 %v3506
        %v3508 = vpop.xlane.xlu0 %3507
        %v3509 = vsel %vm3112, %v3378, 0.0
        %3510 = vadd.xlane.f32.xlu0 %v3509
        %v3511 = vpop.xlane.xlu0 %3510
        %v3512 = vsel %vm3112, %v3380, 0.0
        %3513 = vadd.xlane.f32.xlu0 %v3512
        %v3514 = vpop.xlane.xlu0 %3513
        %v3515 = vsel %vm3112, %v3382, 0.0
        %3516 = vadd.xlane.f32.xlu0 %v3515
        %v3517 = vpop.xlane.xlu0 %3516
        %v3518 = vsel %vm3112, %v3384, 0.0
        %3519 = vadd.xlane.f32.xlu0 %v3518
        %v3520 = vpop.xlane.xlu0 %3519
        %v3521 = vsel %vm3112, %v3386, 0.0
        %3522 = vadd.xlane.f32.xlu0 %v3521
        %v3523 = vpop.xlane.xlu0 %3522
        %v3524 = vsel %vm3112, %v3388, 0.0
        %3525 = vadd.xlane.f32.xlu0 %v3524
        %v3526 = vpop.xlane.xlu0 %3525
        %v3527 = vsel %vm3112, %v3390, 0.0
        %3528 = vadd.xlane.f32.xlu0 %v3527
        %v3529 = vpop.xlane.xlu0 %3528
        %v3530 = vsel %vm3112, %v3392, 0.0
        %3531 = vadd.xlane.f32.xlu0 %v3530
        %v3532 = vpop.xlane.xlu0 %3531
        %v3533 = vsel %vm3112, %v3394, 0.0
        %3534 = vadd.xlane.f32.xlu0 %v3533
        %v3535 = vpop.xlane.xlu0 %3534
        %v3536 = vsel %vm3112, %v3396, 0.0
        %3537 = vadd.xlane.f32.xlu0 %v3536
        %v3538 = vpop.xlane.xlu0 %3537
        %v3539 = vsel %vm3112, %v3398, 0.0
        %3540 = vadd.xlane.f32.xlu0 %v3539
        %v3541 = vpop.xlane.xlu0 %3540
        %v3542 = vsel %vm3112, %v3400, 0.0
        %3543 = vadd.xlane.f32.xlu0 %v3542
        %v3544 = vpop.xlane.xlu0 %3543
        %v3545 = vsel %vm3112, %v3402, 0.0
        %3546 = vadd.xlane.f32.xlu0 %v3545
        %v3547 = vpop.xlane.xlu0 %3546
        %v3548 = vsel %vm3112, %v3404, 0.0
        %3549 = vadd.xlane.f32.xlu0 %v3548
        %v3550 = vpop.xlane.xlu0 %3549
        %v3551 = vsel %vm3112, %v3406, 0.0
        %3552 = vadd.xlane.f32.xlu0 %v3551
        %v3553 = vpop.xlane.xlu0 %3552
        %v3554 = vsel %vm3112, %v3408, 0.0
        %3555 = vadd.xlane.f32.xlu0 %v3554
        %v3556 = vpop.xlane.xlu0 %3555
        %v3557 = vsel %vm3112, %v3410, 0.0
        %3558 = vadd.xlane.f32.xlu0 %v3557
        %v3559 = vpop.xlane.xlu0 %3558
        %v3560 = vsel %vm3112, %v3412, 0.0
        %3561 = vadd.xlane.f32.xlu0 %v3560
        %v3562 = vpop.xlane.xlu0 %3561
        %v3563 = vsel %vm3112, %v3414, 0.0
        %3564 = vadd.xlane.f32.xlu0 %v3563
        %v3565 = vpop.xlane.xlu0 %3564
        %v3566 = vsel %vm3112, %v3416, 0.0
        %3567 = vadd.xlane.f32.xlu0 %v3566
        %v3568 = vpop.xlane.xlu0 %3567
        %v3569 = vsel %vm3112, %v3418, 0.0
        %3570 = vadd.xlane.f32.xlu0 %v3569
        %v3571 = vpop.xlane.xlu0 %3570
        %v3572 = vsel %vm3112, %v3420, 0.0
        %3573 = vadd.xlane.f32.xlu0 %v3572
        %v3574 = vpop.xlane.xlu0 %3573
        %v3575 = vsel %vm3112, %v3422, 0.0
        %3576 = vadd.xlane.f32.xlu0 %v3575
        %v3577 = vpop.xlane.xlu0 %3576
        %v3578 = vsel %vm3112, %v3424, 0.0
        %3579 = vadd.xlane.f32.xlu0 %v3578
        %v3580 = vpop.xlane.xlu0 %3579
        %v3581 = vsel %vm3112, %v3426, 0.0
        %3582 = vadd.xlane.f32.xlu0 %v3581
        %v3583 = vpop.xlane.xlu0 %3582
        %v3584 = vsel %vm3112, %v3428, 0.0
        %3585 = vadd.xlane.f32.xlu0 %v3584
        %v3586 = vpop.xlane.xlu0 %3585
        %v3587 = vsel %vm3112, %v3430, 0.0
        %3588 = vadd.xlane.f32.xlu0 %v3587
        %v3589 = vpop.xlane.xlu0 %3588
        %v3590 = vsel %vm3112, %v3432, 0.0
        %3591 = vadd.xlane.f32.xlu0 %v3590
        %v3592 = vpop.xlane.xlu0 %3591
        %v3593 = vsel %vm3112, %v3434, 0.0
        %3594 = vadd.xlane.f32.xlu0 %v3593
        %v3595 = vpop.xlane.xlu0 %3594
        %v3596 = vsel %vm3112, %v3436, 0.0
        %3597 = vadd.xlane.f32.xlu0 %v3596
        %v3598 = vpop.xlane.xlu0 %3597
        %v3599 = vsel %vm3112, %v3438, 0.0
        %3600 = vadd.xlane.f32.xlu0 %v3599
        %v3601 = vpop.xlane.xlu0 %3600
        %v3602 = vsel %vm3112, %v3440, 0.0
        %3603 = vadd.xlane.f32.xlu0 %v3602
        %v3604 = vpop.xlane.xlu0 %3603
        %v3605 = vsel %vm3112, %v3442, 0.0
        %3606 = vadd.xlane.f32.xlu0 %v3605
        %v3607 = vpop.xlane.xlu0 %3606
        %v3608 = vsel %vm3112, %v3444, 0.0
        %3609 = vadd.xlane.f32.xlu0 %v3608
        %v3610 = vpop.xlane.xlu0 %3609
        %v3611 = vsel %vm3112, %v3446, 0.0
        %3612 = vadd.xlane.f32.xlu0 %v3611
        %v3613 = vpop.xlane.xlu0 %3612
        %v3614 = vsel %vm3112, %v3448, 0.0
        %3615 = vadd.xlane.f32.xlu0 %v3614
        %v3616 = vpop.xlane.xlu0 %3615
        %v3617 = vsel %vm3112, %v3450, 0.0
        %3618 = vadd.xlane.f32.xlu0 %v3617
        %v3619 = vpop.xlane.xlu0 %3618
        %v3620 = vsel %vm3112, %v3452, 0.0
        %3621 = vadd.xlane.f32.xlu0 %v3620
        %v3622 = vpop.xlane.xlu0 %3621
        %v3623 = vsel %vm3112, %v3454, 0.0
        %3624 = vadd.xlane.f32.xlu0 %v3623
        %v3625 = vpop.xlane.xlu0 %3624
        %v3626 = vsel %vm3112, %v3456, 0.0
        %3627 = vadd.xlane.f32.xlu0 %v3626
        %v3628 = vpop.xlane.xlu0 %3627
        %v3629 = vsel %vm3112, %v3458, 0.0
        %3630 = vadd.xlane.f32.xlu0 %v3629
        %v3631 = vpop.xlane.xlu0 %3630
        %v3632 = vsel %vm3112, %v3460, 0.0
        %3633 = vadd.xlane.f32.xlu0 %v3632
        %v3634 = vpop.xlane.xlu0 %3633
        %v3635 = vsel %vm3112, %v3462, 0.0
        %3636 = vadd.xlane.f32.xlu0 %v3635
        %v3637 = vpop.xlane.xlu0 %3636
        %v3638 = vsel %vm3112, %v3464, 0.0
        %3639 = vadd.xlane.f32.xlu0 %v3638
        %v3640 = vpop.xlane.xlu0 %3639
        %v3641 = vsel %vm3112, %v3466, 0.0
        %3642 = vadd.xlane.f32.xlu0 %v3641
        %v3643 = vpop.xlane.xlu0 %3642
        %v3644 = vsel %vm3112, %v3468, 0.0
        %3645 = vadd.xlane.f32.xlu0 %v3644
        %v3646 = vpop.xlane.xlu0 %3645
        %v3647 = vsel %vm3112, %v3470, 0.0
        %3648 = vadd.xlane.f32.xlu0 %v3647
        %v3649 = vpop.xlane.xlu0 %3648
        %v3650 = vsel %vm3112, %v3472, 0.0
        %3651 = vadd.xlane.f32.xlu0 %v3650
        %v3652 = vpop.xlane.xlu0 %3651
        %v3653 = vsel %vm3112, %v3474, 0.0
        %3654 = vadd.xlane.f32.xlu0 %v3653
        %v3655 = vpop.xlane.xlu0 %3654
        %v3656 = vsel %vm3112, %v3476, 0.0
        %3657 = vadd.xlane.f32.xlu0 %v3656
        %v3658 = vpop.xlane.xlu0 %3657
        %v3659 = vsel %vm3112, %v3478, 0.0
        %3660 = vadd.xlane.f32.xlu0 %v3659
        %v3661 = vpop.xlane.xlu0 %3660
        %v3662 = vsel %vm3112, %v3480, 0.0
        %3663 = vadd.xlane.f32.xlu0 %v3662
        %v3664 = vpop.xlane.xlu0 %3663
        %v3665 = vsel %vm3112, %v3482, 0.0
        %3666 = vadd.xlane.f32.xlu0 %v3665
        %v3667 = vpop.xlane.xlu0 %3666
        %v3668 = vsel %vm3112, %v3484, 0.0
        %3669 = vadd.xlane.f32.xlu0 %v3668
        %v3670 = vpop.xlane.xlu0 %3669
        %v3671 = vsel %vm3112, %v3486, 0.0
        %3672 = vadd.xlane.f32.xlu0 %v3671
        %v3673 = vpop.xlane.xlu0 %3672
        %v3674 = vsel %vm3112, %v3488, 0.0
        %3675 = vadd.xlane.f32.xlu0 %v3674
        %v3676 = vpop.xlane.xlu0 %3675
        %v3677 = vsel %vm3112, %v3490, 0.0
        %3678 = vadd.xlane.f32.xlu0 %v3677
        %v3679 = vpop.xlane.xlu0 %3678
        %v3680 = vsel %vm3112, %v3492, 0.0
        %3681 = vadd.xlane.f32.xlu0 %v3680
        %v3682 = vpop.xlane.xlu0 %3681
        %v3683 = vsel %vm3112, %v3494, 0.0
        %3684 = vadd.xlane.f32.xlu0 %v3683
        %v3685 = vpop.xlane.xlu0 %3684
        %v3686 = vsel %vm3112, %v3496, 0.0
        %3687 = vadd.xlane.f32.xlu0 %v3686
        %v3688 = vpop.xlane.xlu0 %3687
        %v3689 = vrcp.pop %v3499
        %v3690 = vrcp.pop %v3502
        %v3691 = vrcp.pop %v3505
        %v3692 = vrcp.pop %v3508
        %v3693 = vrcp.pop %v3511
        %v3694 = vrcp.pop %v3514
        %v3695 = vrcp.pop %v3517
        %v3696 = vrcp.pop %v3520
        %v3697 = vrcp.pop %v3523
        %v3698 = vrcp.pop %v3526
        %v3699 = vrcp.pop %v3529
        %v3700 = vrcp.pop %v3532
        %v3701 = vrcp.pop %v3535
        %v3702 = vrcp.pop %v3538
        %v3703 = vrcp.pop %v3541
        %v3704 = vrcp.pop %v3544
        %v3705 = vrcp.pop %v3547
        %v3706 = vrcp.pop %v3550
        %v3707 = vrcp.pop %v3553
        %v3708 = vrcp.pop %v3556
        %v3709 = vrcp.pop %v3559
        %v3710 = vrcp.pop %v3562
        %v3711 = vrcp.pop %v3565
        %v3712 = vrcp.pop %v3568
        %v3713 = vrcp.pop %v3571
        %v3714 = vrcp.pop %v3574
        %v3715 = vrcp.pop %v3577
        %v3716 = vrcp.pop %v3580
        %v3717 = vrcp.pop %v3583
        %v3718 = vrcp.pop %v3586
        %v3719 = vrcp.pop %v3589
        %v3720 = vrcp.pop %v3592
        %v3721 = vrcp.pop %v3595
        %v3722 = vrcp.pop %v3598
        %v3723 = vrcp.pop %v3601
        %v3724 = vrcp.pop %v3604
        %v3725 = vrcp.pop %v3607
        %v3726 = vrcp.pop %v3610
        %v3727 = vrcp.pop %v3613
        %v3728 = vrcp.pop %v3616
        %v3729 = vrcp.pop %v3619
        %v3730 = vrcp.pop %v3622
        %v3731 = vrcp.pop %v3625
        %v3732 = vrcp.pop %v3628
        %v3733 = vrcp.pop %v3631
        %v3734 = vrcp.pop %v3634
        %v3735 = vrcp.pop %v3637
        %v3736 = vrcp.pop %v3640
        %v3737 = vrcp.pop %v3643
        %v3738 = vrcp.pop %v3646
        %v3739 = vrcp.pop %v3649
        %v3740 = vrcp.pop %v3652
        %v3741 = vrcp.pop %v3655
        %v3742 = vrcp.pop %v3658
        %v3743 = vrcp.pop %v3661
        %v3744 = vrcp.pop %v3664
        %v3745 = vrcp.pop %v3667
        %v3746 = vrcp.pop %v3670
        %v3747 = vrcp.pop %v3673
        %v3748 = vrcp.pop %v3676
        %v3749 = vrcp.pop %v3679
        %v3750 = vrcp.pop %v3682
        %v3751 = vrcp.pop %v3685
        %v3752 = vrcp.pop %v3688
        %v3753 = vmul.f32 %v3370, %v3689
        %v3754 = vmul.f32 %v3372, %v3690
        %v3755 = vmul.f32 %v3374, %v3691
        %v3756 = vmul.f32 %v3376, %v3692
        %v3757 = vmul.f32 %v3378, %v3693
        %v3758 = vmul.f32 %v3380, %v3694
        %v3759 = vmul.f32 %v3382, %v3695
        %v3760 = vmul.f32 %v3384, %v3696
        %v3761 = vmul.f32 %v3386, %v3697
        %v3762 = vmul.f32 %v3388, %v3698
        %v3763 = vmul.f32 %v3390, %v3699
        %v3764 = vmul.f32 %v3392, %v3700
        %v3765 = vmul.f32 %v3394, %v3701
        %v3766 = vmul.f32 %v3396, %v3702
        %v3767 = vmul.f32 %v3398, %v3703
        %v3768 = vmul.f32 %v3400, %v3704
        %v3769 = vmul.f32 %v3402, %v3705
        %v3770 = vmul.f32 %v3404, %v3706
        %v3771 = vmul.f32 %v3406, %v3707
        %v3772 = vmul.f32 %v3408, %v3708
        %v3773 = vmul.f32 %v3410, %v3709
        %v3774 = vmul.f32 %v3412, %v3710
        %v3775 = vmul.f32 %v3414, %v3711
        %v3776 = vmul.f32 %v3416, %v3712
        %v3777 = vmul.f32 %v3418, %v3713
        %v3778 = vmul.f32 %v3420, %v3714
        %v3779 = vmul.f32 %v3422, %v3715
        %v3780 = vmul.f32 %v3424, %v3716
        %v3781 = vmul.f32 %v3426, %v3717
        %v3782 = vmul.f32 %v3428, %v3718
        %v3783 = vmul.f32 %v3430, %v3719
        %v3784 = vmul.f32 %v3432, %v3720
        %v3785 = vmul.f32 %v3434, %v3721
        %v3786 = vmul.f32 %v3436, %v3722
        %v3787 = vmul.f32 %v3438, %v3723
        %v3788 = vmul.f32 %v3440, %v3724
        %v3789 = vmul.f32 %v3442, %v3725
        %v3790 = vmul.f32 %v3444, %v3726
        %v3791 = vmul.f32 %v3446, %v3727
        %v3792 = vmul.f32 %v3448, %v3728
        %v3793 = vmul.f32 %v3450, %v3729
        %v3794 = vmul.f32 %v3452, %v3730
        %v3795 = vmul.f32 %v3454, %v3731
        %v3796 = vmul.f32 %v3456, %v3732
        %v3797 = vmul.f32 %v3458, %v3733
        %v3798 = vmul.f32 %v3460, %v3734
        %v3799 = vmul.f32 %v3462, %v3735
        %v3800 = vmul.f32 %v3464, %v3736
        %v3801 = vmul.f32 %v3466, %v3737
        %v3802 = vmul.f32 %v3468, %v3738
        %v3803 = vmul.f32 %v3470, %v3739
        %v3804 = vmul.f32 %v3472, %v3740
        %v3805 = vmul.f32 %v3474, %v3741
        %v3806 = vmul.f32 %v3476, %v3742
        %v3807 = vmul.f32 %v3478, %v3743
        %v3808 = vmul.f32 %v3480, %v3744
        %v3809 = vmul.f32 %v3482, %v3745
        %v3810 = vmul.f32 %v3484, %v3746
        %v3811 = vmul.f32 %v3486, %v3747
        %v3812 = vmul.f32 %v3488, %v3748
        %v3813 = vmul.f32 %v3490, %v3749
        %v3814 = vmul.f32 %v3492, %v3750
        %v3815 = vmul.f32 %v3494, %v3751
        %v3816 = vmul.f32 %v3496, %v3752
        %v3817 = vpack.c.bf16 %v3753, %v3753
        %v3818 = vpack.c.bf16 %v3754, %v3754
        %v3819 = vpack.c.bf16 %v3755, %v3755
        %v3820 = vpack.c.bf16 %v3756, %v3756
        %v3821 = vpack.c.bf16 %v3757, %v3757
        %v3822 = vpack.c.bf16 %v3758, %v3758
        %v3823 = vpack.c.bf16 %v3759, %v3759
        %v3824 = vpack.c.bf16 %v3760, %v3760
        %v3825 = vpack.c.bf16 %v3761, %v3761
        %v3826 = vpack.c.bf16 %v3762, %v3762
        %v3827 = vpack.c.bf16 %v3763, %v3763
        %v3828 = vpack.c.bf16 %v3764, %v3764
        %v3829 = vpack.c.bf16 %v3765, %v3765
        %v3830 = vpack.c.bf16 %v3766, %v3766
        %v3831 = vpack.c.bf16 %v3767, %v3767
        %v3832 = vpack.c.bf16 %v3768, %v3768
        %v3833 = vpack.c.bf16 %v3769, %v3769
        %v3834 = vpack.c.bf16 %v3770, %v3770
        %v3835 = vpack.c.bf16 %v3771, %v3771
        %v3836 = vpack.c.bf16 %v3772, %v3772
        %v3837 = vpack.c.bf16 %v3773, %v3773
        %v3838 = vpack.c.bf16 %v3774, %v3774
        %v3839 = vpack.c.bf16 %v3775, %v3775
        %v3840 = vpack.c.bf16 %v3776, %v3776
        %v3841 = vpack.c.bf16 %v3777, %v3777
        %v3842 = vpack.c.bf16 %v3778, %v3778
        %v3843 = vpack.c.bf16 %v3779, %v3779
        %v3844 = vpack.c.bf16 %v3780, %v3780
        %v3845 = vpack.c.bf16 %v3781, %v3781
        %v3846 = vpack.c.bf16 %v3782, %v3782
        %v3847 = vpack.c.bf16 %v3783, %v3783
        %v3848 = vpack.c.bf16 %v3784, %v3784
        %v3849 = vpack.c.bf16 %v3785, %v3785
        %v3850 = vpack.c.bf16 %v3786, %v3786
        %v3851 = vpack.c.bf16 %v3787, %v3787
        %v3852 = vpack.c.bf16 %v3788, %v3788
        %v3853 = vpack.c.bf16 %v3789, %v3789
        %v3854 = vpack.c.bf16 %v3790, %v3790
        %v3855 = vpack.c.bf16 %v3791, %v3791
        %v3856 = vpack.c.bf16 %v3792, %v3792
        %v3857 = vpack.c.bf16 %v3793, %v3793
        %v3858 = vpack.c.bf16 %v3794, %v3794
        %v3859 = vpack.c.bf16 %v3795, %v3795
        %v3860 = vpack.c.bf16 %v3796, %v3796
        %v3861 = vpack.c.bf16 %v3797, %v3797
        %v3862 = vpack.c.bf16 %v3798, %v3798
        %v3863 = vpack.c.bf16 %v3799, %v3799
        %v3864 = vpack.c.bf16 %v3800, %v3800
        %v3865 = vpack.c.bf16 %v3801, %v3801
        %v3866 = vpack.c.bf16 %v3802, %v3802
        %v3867 = vpack.c.bf16 %v3803, %v3803
        %v3868 = vpack.c.bf16 %v3804, %v3804
        %v3869 = vpack.c.bf16 %v3805, %v3805
        %v3870 = vpack.c.bf16 %v3806, %v3806
        %v3871 = vpack.c.bf16 %v3807, %v3807
        %v3872 = vpack.c.bf16 %v3808, %v3808
        %v3873 = vpack.c.bf16 %v3809, %v3809
        %v3874 = vpack.c.bf16 %v3810, %v3810
        %v3875 = vpack.c.bf16 %v3811, %v3811
        %v3876 = vpack.c.bf16 %v3812, %v3812
        %v3877 = vpack.c.bf16 %v3813, %v3813
        %v3878 = vpack.c.bf16 %v3814, %v3814
        %v3879 = vpack.c.bf16 %v3815, %v3815
        %v3880 = vpack.c.bf16 %v3816, %v3816
        %v3883 = vunpack.c.l.b16 %v3817
        %v3884 = vunpack.c.l.b16 %v3818
        %v3885 = vpack.c.b16 %v3884, %v3883
        %v3888 = vunpack.c.l.b16 %v2087
        %v3889 = vunpack.c.l.b16 %v2088
        %v3890 = vpack.c.b16 %v3889, %v3888
        %v3893 = vsel %vm3112, %v3885, 0
        %3895 = vmatpush.bf16.msra.mxu0 0
        %3896 = vmatpush.bf16.msra.mxu0 0
        %3897 = vmatpush.bf16.msra.mxu0 0
        %3898 = vmatpush.bf16.msra.mxu0 0
        %3899 = vmatpush.bf16.msra.mxu0 0
        %3900 = vmatpush.bf16.msra.mxu0 0
        %3901 = vmatpush.bf16.msra.mxu0 0
        %3902 = vmatpush.bf16.msra.mxu0 %v3890
        %3903 = vmatmul.bf16.gmra.mxu0 %v3893
        %v3904 = vpop.f32.mrf.mxu0
        %v3905 = vadd.f32 0.0, %v3904
        %v3906 = vpop.f32.mrf.mxu0
        %v3907 = vadd.f32 0.0, %v3906
        %3908 = vdwg.mxu0
        %v3911 = vunpack.c.l.b16 %v3819
        %v3912 = vunpack.c.l.b16 %v3820
        %v3913 = vpack.c.b16 %v3912, %v3911
        %v3916 = vunpack.c.l.b16 %v2089
        %v3917 = vunpack.c.l.b16 %v2090
        %v3918 = vpack.c.b16 %v3917, %v3916
        %v3921 = vsel %vm3112, %v3913, 0
        %3923 = vmatpush.bf16.msra.mxu0 0
        %3924 = vmatpush.bf16.msra.mxu0 0
        %3925 = vmatpush.bf16.msra.mxu0 0
        %3926 = vmatpush.bf16.msra.mxu0 0
        %3927 = vmatpush.bf16.msra.mxu0 0
        %3928 = vmatpush.bf16.msra.mxu0 0
        %3929 = vmatpush.bf16.msra.mxu0 0
        %3930 = vmatpush.bf16.msra.mxu0 %v3918
        %3931 = vmatmul.bf16.gmra.mxu0 %v3921
        %v3932 = vpop.f32.mrf.mxu0
        %v3933 = vadd.f32 0.0, %v3932
        %v3934 = vpop.f32.mrf.mxu0
        %v3935 = vadd.f32 0.0, %v3934
        %3936 = vdwg.mxu0
        %v3939 = vunpack.c.l.b16 %v3821
        %v3940 = vunpack.c.l.b16 %v3822
        %v3941 = vpack.c.b16 %v3940, %v3939
        %v3944 = vunpack.c.l.b16 %v2091
        %v3945 = vunpack.c.l.b16 %v2092
        %v3946 = vpack.c.b16 %v3945, %v3944
        %v3949 = vsel %vm3112, %v3941, 0
        %3951 = vmatpush.bf16.msra.mxu0 0
        %3952 = vmatpush.bf16.msra.mxu0 0
        %3953 = vmatpush.bf16.msra.mxu0 0
        %3954 = vmatpush.bf16.msra.mxu0 0
        %3955 = vmatpush.bf16.msra.mxu0 0
        %3956 = vmatpush.bf16.msra.mxu0 0
        %3957 = vmatpush.bf16.msra.mxu0 0
        %3958 = vmatpush.bf16.msra.mxu0 %v3946
        %3959 = vmatmul.bf16.gmra.mxu0 %v3949
        %v3960 = vpop.f32.mrf.mxu0
        %v3961 = vadd.f32 0.0, %v3960
        %v3962 = vpop.f32.mrf.mxu0
        %v3963 = vadd.f32 0.0, %v3962
        %3964 = vdwg.mxu0
        %v3967 = vunpack.c.l.b16 %v3823
        %v3968 = vunpack.c.l.b16 %v3824
        %v3969 = vpack.c.b16 %v3968, %v3967
        %v3972 = vunpack.c.l.b16 %v2093
        %v3973 = vunpack.c.l.b16 %v2094
        %v3974 = vpack.c.b16 %v3973, %v3972
        %v3977 = vsel %vm3112, %v3969, 0
        %3979 = vmatpush.bf16.msra.mxu0 0
        %3980 = vmatpush.bf16.msra.mxu0 0
        %3981 = vmatpush.bf16.msra.mxu0 0
        %3982 = vmatpush.bf16.msra.mxu0 0
        %3983 = vmatpush.bf16.msra.mxu0 0
        %3984 = vmatpush.bf16.msra.mxu0 0
        %3985 = vmatpush.bf16.msra.mxu0 0
        %3986 = vmatpush.bf16.msra.mxu0 %v3974
        %3987 = vmatmul.bf16.gmra.mxu0 %v3977
        %v3988 = vpop.f32.mrf.mxu0
        %v3989 = vadd.f32 0.0, %v3988
        %v3990 = vpop.f32.mrf.mxu0
        %v3991 = vadd.f32 0.0, %v3990
        %3992 = vdwg.mxu0
        %v3995 = vunpack.c.l.b16 %v3825
        %v3996 = vunpack.c.l.b16 %v3826
        %v3997 = vpack.c.b16 %v3996, %v3995
        %v4000 = vunpack.c.l.b16 %v2095
        %v4001 = vunpack.c.l.b16 %v2096
        %v4002 = vpack.c.b16 %v4001, %v4000
        %v4005 = vsel %vm3112, %v3997, 0
        %4007 = vmatpush.bf16.msra.mxu0 0
        %4008 = vmatpush.bf16.msra.mxu0 0
        %4009 = vmatpush.bf16.msra.mxu0 0
        %4010 = vmatpush.bf16.msra.mxu0 0
        %4011 = vmatpush.bf16.msra.mxu0 0
        %4012 = vmatpush.bf16.msra.mxu0 0
        %4013 = vmatpush.bf16.msra.mxu0 0
        %4014 = vmatpush.bf16.msra.mxu0 %v4002
        %4015 = vmatmul.bf16.gmra.mxu0 %v4005
        %v4016 = vpop.f32.mrf.mxu0
        %v4017 = vadd.f32 0.0, %v4016
        %v4018 = vpop.f32.mrf.mxu0
        %v4019 = vadd.f32 0.0, %v4018
        %4020 = vdwg.mxu0
        %v4023 = vunpack.c.l.b16 %v3827
        %v4024 = vunpack.c.l.b16 %v3828
        %v4025 = vpack.c.b16 %v4024, %v4023
        %v4028 = vunpack.c.l.b16 %v2097
        %v4029 = vunpack.c.l.b16 %v2098
        %v4030 = vpack.c.b16 %v4029, %v4028
        %v4033 = vsel %vm3112, %v4025, 0
        %4035 = vmatpush.bf16.msra.mxu0 0
        %4036 = vmatpush.bf16.msra.mxu0 0
        %4037 = vmatpush.bf16.msra.mxu0 0
        %4038 = vmatpush.bf16.msra.mxu0 0
        %4039 = vmatpush.bf16.msra.mxu0 0
        %4040 = vmatpush.bf16.msra.mxu0 0
        %4041 = vmatpush.bf16.msra.mxu0 0
        %4042 = vmatpush.bf16.msra.mxu0 %v4030
        %4043 = vmatmul.bf16.gmra.mxu0 %v4033
        %v4044 = vpop.f32.mrf.mxu0
        %v4045 = vadd.f32 0.0, %v4044
        %v4046 = vpop.f32.mrf.mxu0
        %v4047 = vadd.f32 0.0, %v4046
        %4048 = vdwg.mxu0
        %v4051 = vunpack.c.l.b16 %v3829
        %v4052 = vunpack.c.l.b16 %v3830
        %v4053 = vpack.c.b16 %v4052, %v4051
        %v4056 = vunpack.c.l.b16 %v2099
        %v4057 = vunpack.c.l.b16 %v2100
        %v4058 = vpack.c.b16 %v4057, %v4056
        %v4061 = vsel %vm3112, %v4053, 0
        %4063 = vmatpush.bf16.msra.mxu0 0
        %4064 = vmatpush.bf16.msra.mxu0 0
        %4065 = vmatpush.bf16.msra.mxu0 0
        %4066 = vmatpush.bf16.msra.mxu0 0
        %4067 = vmatpush.bf16.msra.mxu0 0
        %4068 = vmatpush.bf16.msra.mxu0 0
        %4069 = vmatpush.bf16.msra.mxu0 0
        %4070 = vmatpush.bf16.msra.mxu0 %v4058
        %4071 = vmatmul.bf16.gmra.mxu0 %v4061
        %v4072 = vpop.f32.mrf.mxu0
        %v4073 = vadd.f32 0.0, %v4072
        %v4074 = vpop.f32.mrf.mxu0
        %v4075 = vadd.f32 0.0, %v4074
        %4076 = vdwg.mxu0
        %v4079 = vunpack.c.l.b16 %v3831
        %v4080 = vunpack.c.l.b16 %v3832
        %v4081 = vpack.c.b16 %v4080, %v4079
        %v4084 = vunpack.c.l.b16 %v2101
        %v4085 = vunpack.c.l.b16 %v2102
        %v4086 = vpack.c.b16 %v4085, %v4084
        %v4089 = vsel %vm3112, %v4081, 0
        %4091 = vmatpush.bf16.msra.mxu0 0
        %4092 = vmatpush.bf16.msra.mxu0 0
        %4093 = vmatpush.bf16.msra.mxu0 0
        %4094 = vmatpush.bf16.msra.mxu0 0
        %4095 = vmatpush.bf16.msra.mxu0 0
        %4096 = vmatpush.bf16.msra.mxu0 0
        %4097 = vmatpush.bf16.msra.mxu0 0
        %4098 = vmatpush.bf16.msra.mxu0 %v4086
        %4099 = vmatmul.bf16.gmra.mxu0 %v4089
        %v4100 = vpop.f32.mrf.mxu0
        %v4101 = vadd.f32 0.0, %v4100
        %v4102 = vpop.f32.mrf.mxu0
        %v4103 = vadd.f32 0.0, %v4102
        %4104 = vdwg.mxu0
        %v4107 = vunpack.c.l.b16 %v3833
        %v4108 = vunpack.c.l.b16 %v3834
        %v4109 = vpack.c.b16 %v4108, %v4107
        %v4112 = vunpack.c.l.b16 %v2103
        %v4113 = vunpack.c.l.b16 %v2104
        %v4114 = vpack.c.b16 %v4113, %v4112
        %v4117 = vsel %vm3112, %v4109, 0
        %4119 = vmatpush.bf16.msra.mxu0 0
        %4120 = vmatpush.bf16.msra.mxu0 0
        %4121 = vmatpush.bf16.msra.mxu0 0
        %4122 = vmatpush.bf16.msra.mxu0 0
        %4123 = vmatpush.bf16.msra.mxu0 0
        %4124 = vmatpush.bf16.msra.mxu0 0
        %4125 = vmatpush.bf16.msra.mxu0 0
        %4126 = vmatpush.bf16.msra.mxu0 %v4114
        %4127 = vmatmul.bf16.gmra.mxu0 %v4117
        %v4128 = vpop.f32.mrf.mxu0
        %v4129 = vadd.f32 0.0, %v4128
        %v4130 = vpop.f32.mrf.mxu0
        %v4131 = vadd.f32 0.0, %v4130
        %4132 = vdwg.mxu0
        %v4135 = vunpack.c.l.b16 %v3835
        %v4136 = vunpack.c.l.b16 %v3836
        %v4137 = vpack.c.b16 %v4136, %v4135
        %v4140 = vunpack.c.l.b16 %v2105
        %v4141 = vunpack.c.l.b16 %v2106
        %v4142 = vpack.c.b16 %v4141, %v4140
        %v4145 = vsel %vm3112, %v4137, 0
        %4147 = vmatpush.bf16.msra.mxu0 0
        %4148 = vmatpush.bf16.msra.mxu0 0
        %4149 = vmatpush.bf16.msra.mxu0 0
        %4150 = vmatpush.bf16.msra.mxu0 0
        %4151 = vmatpush.bf16.msra.mxu0 0
        %4152 = vmatpush.bf16.msra.mxu0 0
        %4153 = vmatpush.bf16.msra.mxu0 0
        %4154 = vmatpush.bf16.msra.mxu0 %v4142
        %4155 = vmatmul.bf16.gmra.mxu0 %v4145
        %v4156 = vpop.f32.mrf.mxu0
        %v4157 = vadd.f32 0.0, %v4156
        %v4158 = vpop.f32.mrf.mxu0
        %v4159 = vadd.f32 0.0, %v4158
        %4160 = vdwg.mxu0
        %v4163 = vunpack.c.l.b16 %v3837
        %v4164 = vunpack.c.l.b16 %v3838
        %v4165 = vpack.c.b16 %v4164, %v4163
        %v4168 = vunpack.c.l.b16 %v2107
        %v4169 = vunpack.c.l.b16 %v2108
        %v4170 = vpack.c.b16 %v4169, %v4168
        %v4173 = vsel %vm3112, %v4165, 0
        %4175 = vmatpush.bf16.msra.mxu0 0
        %4176 = vmatpush.bf16.msra.mxu0 0
        %4177 = vmatpush.bf16.msra.mxu0 0
        %4178 = vmatpush.bf16.msra.mxu0 0
        %4179 = vmatpush.bf16.msra.mxu0 0
        %4180 = vmatpush.bf16.msra.mxu0 0
        %4181 = vmatpush.bf16.msra.mxu0 0
        %4182 = vmatpush.bf16.msra.mxu0 %v4170
        %4183 = vmatmul.bf16.gmra.mxu0 %v4173
        %v4184 = vpop.f32.mrf.mxu0
        %v4185 = vadd.f32 0.0, %v4184
        %v4186 = vpop.f32.mrf.mxu0
        %v4187 = vadd.f32 0.0, %v4186
        %4188 = vdwg.mxu0
        %v4191 = vunpack.c.l.b16 %v3839
        %v4192 = vunpack.c.l.b16 %v3840
        %v4193 = vpack.c.b16 %v4192, %v4191
        %v4196 = vunpack.c.l.b16 %v2109
        %v4197 = vunpack.c.l.b16 %v2110
        %v4198 = vpack.c.b16 %v4197, %v4196
        %v4201 = vsel %vm3112, %v4193, 0
        %4203 = vmatpush.bf16.msra.mxu0 0
        %4204 = vmatpush.bf16.msra.mxu0 0
        %4205 = vmatpush.bf16.msra.mxu0 0
        %4206 = vmatpush.bf16.msra.mxu0 0
        %4207 = vmatpush.bf16.msra.mxu0 0
        %4208 = vmatpush.bf16.msra.mxu0 0
        %4209 = vmatpush.bf16.msra.mxu0 0
        %4210 = vmatpush.bf16.msra.mxu0 %v4198
        %4211 = vmatmul.bf16.gmra.mxu0 %v4201
        %v4212 = vpop.f32.mrf.mxu0
        %v4213 = vadd.f32 0.0, %v4212
        %v4214 = vpop.f32.mrf.mxu0
        %v4215 = vadd.f32 0.0, %v4214
        %4216 = vdwg.mxu0
        %v4219 = vunpack.c.l.b16 %v3841
        %v4220 = vunpack.c.l.b16 %v3842
        %v4221 = vpack.c.b16 %v4220, %v4219
        %v4224 = vunpack.c.l.b16 %v2111
        %v4225 = vunpack.c.l.b16 %v2112
        %v4226 = vpack.c.b16 %v4225, %v4224
        %v4229 = vsel %vm3112, %v4221, 0
        %4231 = vmatpush.bf16.msra.mxu0 0
        %4232 = vmatpush.bf16.msra.mxu0 0
        %4233 = vmatpush.bf16.msra.mxu0 0
        %4234 = vmatpush.bf16.msra.mxu0 0
        %4235 = vmatpush.bf16.msra.mxu0 0
        %4236 = vmatpush.bf16.msra.mxu0 0
        %4237 = vmatpush.bf16.msra.mxu0 0
        %4238 = vmatpush.bf16.msra.mxu0 %v4226
        %4239 = vmatmul.bf16.gmra.mxu0 %v4229
        %v4240 = vpop.f32.mrf.mxu0
        %v4241 = vadd.f32 0.0, %v4240
        %v4242 = vpop.f32.mrf.mxu0
        %v4243 = vadd.f32 0.0, %v4242
        %4244 = vdwg.mxu0
        %v4247 = vunpack.c.l.b16 %v3843
        %v4248 = vunpack.c.l.b16 %v3844
        %v4249 = vpack.c.b16 %v4248, %v4247
        %v4252 = vunpack.c.l.b16 %v2113
        %v4253 = vunpack.c.l.b16 %v2114
        %v4254 = vpack.c.b16 %v4253, %v4252
        %v4257 = vsel %vm3112, %v4249, 0
        %4259 = vmatpush.bf16.msra.mxu0 0
        %4260 = vmatpush.bf16.msra.mxu0 0
        %4261 = vmatpush.bf16.msra.mxu0 0
        %4262 = vmatpush.bf16.msra.mxu0 0
        %4263 = vmatpush.bf16.msra.mxu0 0
        %4264 = vmatpush.bf16.msra.mxu0 0
        %4265 = vmatpush.bf16.msra.mxu0 0
        %4266 = vmatpush.bf16.msra.mxu0 %v4254
        %4267 = vmatmul.bf16.gmra.mxu0 %v4257
        %v4268 = vpop.f32.mrf.mxu0
        %v4269 = vadd.f32 0.0, %v4268
        %v4270 = vpop.f32.mrf.mxu0
        %v4271 = vadd.f32 0.0, %v4270
        %4272 = vdwg.mxu0
        %v4275 = vunpack.c.l.b16 %v3845
        %v4276 = vunpack.c.l.b16 %v3846
        %v4277 = vpack.c.b16 %v4276, %v4275
        %v4280 = vunpack.c.l.b16 %v2115
        %v4281 = vunpack.c.l.b16 %v2116
        %v4282 = vpack.c.b16 %v4281, %v4280
        %v4285 = vsel %vm3112, %v4277, 0
        %4287 = vmatpush.bf16.msra.mxu0 0
        %4288 = vmatpush.bf16.msra.mxu0 0
        %4289 = vmatpush.bf16.msra.mxu0 0
        %4290 = vmatpush.bf16.msra.mxu0 0
        %4291 = vmatpush.bf16.msra.mxu0 0
        %4292 = vmatpush.bf16.msra.mxu0 0
        %4293 = vmatpush.bf16.msra.mxu0 0
        %4294 = vmatpush.bf16.msra.mxu0 %v4282
        %4295 = vmatmul.bf16.gmra.mxu0 %v4285
        %v4296 = vpop.f32.mrf.mxu0
        %v4297 = vadd.f32 0.0, %v4296
        %v4298 = vpop.f32.mrf.mxu0
        %v4299 = vadd.f32 0.0, %v4298
        %4300 = vdwg.mxu0
        %v4303 = vunpack.c.l.b16 %v3847
        %v4304 = vunpack.c.l.b16 %v3848
        %v4305 = vpack.c.b16 %v4304, %v4303
        %v4308 = vunpack.c.l.b16 %v2117
        %v4309 = vunpack.c.l.b16 %v2118
        %v4310 = vpack.c.b16 %v4309, %v4308
        %v4313 = vsel %vm3112, %v4305, 0
        %4315 = vmatpush.bf16.msra.mxu0 0
        %4316 = vmatpush.bf16.msra.mxu0 0
        %4317 = vmatpush.bf16.msra.mxu0 0
        %4318 = vmatpush.bf16.msra.mxu0 0
        %4319 = vmatpush.bf16.msra.mxu0 0
        %4320 = vmatpush.bf16.msra.mxu0 0
        %4321 = vmatpush.bf16.msra.mxu0 0
        %4322 = vmatpush.bf16.msra.mxu0 %v4310
        %4323 = vmatmul.bf16.gmra.mxu0 %v4313
        %v4324 = vpop.f32.mrf.mxu0
        %v4325 = vadd.f32 0.0, %v4324
        %v4326 = vpop.f32.mrf.mxu0
        %v4327 = vadd.f32 0.0, %v4326
        %4328 = vdwg.mxu0
        %v4331 = vunpack.c.l.b16 %v3849
        %v4332 = vunpack.c.l.b16 %v3850
        %v4333 = vpack.c.b16 %v4332, %v4331
        %v4336 = vunpack.c.l.b16 %v2119
        %v4337 = vunpack.c.l.b16 %v2120
        %v4338 = vpack.c.b16 %v4337, %v4336
        %v4341 = vsel %vm3112, %v4333, 0
        %4343 = vmatpush.bf16.msra.mxu0 0
        %4344 = vmatpush.bf16.msra.mxu0 0
        %4345 = vmatpush.bf16.msra.mxu0 0
        %4346 = vmatpush.bf16.msra.mxu0 0
        %4347 = vmatpush.bf16.msra.mxu0 0
        %4348 = vmatpush.bf16.msra.mxu0 0
        %4349 = vmatpush.bf16.msra.mxu0 0
        %4350 = vmatpush.bf16.msra.mxu0 %v4338
        %4351 = vmatmul.bf16.gmra.mxu0 %v4341
        %v4352 = vpop.f32.mrf.mxu0
        %v4353 = vadd.f32 0.0, %v4352
        %v4354 = vpop.f32.mrf.mxu0
        %v4355 = vadd.f32 0.0, %v4354
        %4356 = vdwg.mxu0
        %v4359 = vunpack.c.l.b16 %v3851
        %v4360 = vunpack.c.l.b16 %v3852
        %v4361 = vpack.c.b16 %v4360, %v4359
        %v4364 = vunpack.c.l.b16 %v2121
        %v4365 = vunpack.c.l.b16 %v2122
        %v4366 = vpack.c.b16 %v4365, %v4364
        %v4369 = vsel %vm3112, %v4361, 0
        %4371 = vmatpush.bf16.msra.mxu0 0
        %4372 = vmatpush.bf16.msra.mxu0 0
        %4373 = vmatpush.bf16.msra.mxu0 0
        %4374 = vmatpush.bf16.msra.mxu0 0
        %4375 = vmatpush.bf16.msra.mxu0 0
        %4376 = vmatpush.bf16.msra.mxu0 0
        %4377 = vmatpush.bf16.msra.mxu0 0
        %4378 = vmatpush.bf16.msra.mxu0 %v4366
        %4379 = vmatmul.bf16.gmra.mxu0 %v4369
        %v4380 = vpop.f32.mrf.mxu0
        %v4381 = vadd.f32 0.0, %v4380
        %v4382 = vpop.f32.mrf.mxu0
        %v4383 = vadd.f32 0.0, %v4382
        %4384 = vdwg.mxu0
        %v4387 = vunpack.c.l.b16 %v3853
        %v4388 = vunpack.c.l.b16 %v3854
        %v4389 = vpack.c.b16 %v4388, %v4387
        %v4392 = vunpack.c.l.b16 %v2123
        %v4393 = vunpack.c.l.b16 %v2124
        %v4394 = vpack.c.b16 %v4393, %v4392
        %v4397 = vsel %vm3112, %v4389, 0
        %4399 = vmatpush.bf16.msra.mxu0 0
        %4400 = vmatpush.bf16.msra.mxu0 0
        %4401 = vmatpush.bf16.msra.mxu0 0
        %4402 = vmatpush.bf16.msra.mxu0 0
        %4403 = vmatpush.bf16.msra.mxu0 0
        %4404 = vmatpush.bf16.msra.mxu0 0
        %4405 = vmatpush.bf16.msra.mxu0 0
        %4406 = vmatpush.bf16.msra.mxu0 %v4394
        %4407 = vmatmul.bf16.gmra.mxu0 %v4397
        %v4408 = vpop.f32.mrf.mxu0
        %v4409 = vadd.f32 0.0, %v4408
        %v4410 = vpop.f32.mrf.mxu0
        %v4411 = vadd.f32 0.0, %v4410
        %4412 = vdwg.mxu0
        %v4415 = vunpack.c.l.b16 %v3855
        %v4416 = vunpack.c.l.b16 %v3856
        %v4417 = vpack.c.b16 %v4416, %v4415
        %v4420 = vunpack.c.l.b16 %v2125
        %v4421 = vunpack.c.l.b16 %v2126
        %v4422 = vpack.c.b16 %v4421, %v4420
        %v4425 = vsel %vm3112, %v4417, 0
        %4427 = vmatpush.bf16.msra.mxu0 0
        %4428 = vmatpush.bf16.msra.mxu0 0
        %4429 = vmatpush.bf16.msra.mxu0 0
        %4430 = vmatpush.bf16.msra.mxu0 0
        %4431 = vmatpush.bf16.msra.mxu0 0
        %4432 = vmatpush.bf16.msra.mxu0 0
        %4433 = vmatpush.bf16.msra.mxu0 0
        %4434 = vmatpush.bf16.msra.mxu0 %v4422
        %4435 = vmatmul.bf16.gmra.mxu0 %v4425
        %v4436 = vpop.f32.mrf.mxu0
        %v4437 = vadd.f32 0.0, %v4436
        %v4438 = vpop.f32.mrf.mxu0
        %v4439 = vadd.f32 0.0, %v4438
        %4440 = vdwg.mxu0
        %v4443 = vunpack.c.l.b16 %v3857
        %v4444 = vunpack.c.l.b16 %v3858
        %v4445 = vpack.c.b16 %v4444, %v4443
        %v4448 = vunpack.c.l.b16 %v2127
        %v4449 = vunpack.c.l.b16 %v2128
        %v4450 = vpack.c.b16 %v4449, %v4448
        %v4453 = vsel %vm3112, %v4445, 0
        %4455 = vmatpush.bf16.msra.mxu0 0
        %4456 = vmatpush.bf16.msra.mxu0 0
        %4457 = vmatpush.bf16.msra.mxu0 0
        %4458 = vmatpush.bf16.msra.mxu0 0
        %4459 = vmatpush.bf16.msra.mxu0 0
        %4460 = vmatpush.bf16.msra.mxu0 0
        %4461 = vmatpush.bf16.msra.mxu0 0
        %4462 = vmatpush.bf16.msra.mxu0 %v4450
        %4463 = vmatmul.bf16.gmra.mxu0 %v4453
        %v4464 = vpop.f32.mrf.mxu0
        %v4465 = vadd.f32 0.0, %v4464
        %v4466 = vpop.f32.mrf.mxu0
        %v4467 = vadd.f32 0.0, %v4466
        %4468 = vdwg.mxu0
        %v4471 = vunpack.c.l.b16 %v3859
        %v4472 = vunpack.c.l.b16 %v3860
        %v4473 = vpack.c.b16 %v4472, %v4471
        %v4476 = vunpack.c.l.b16 %v2129
        %v4477 = vunpack.c.l.b16 %v2130
        %v4478 = vpack.c.b16 %v4477, %v4476
        %v4481 = vsel %vm3112, %v4473, 0
        %4483 = vmatpush.bf16.msra.mxu0 0
        %4484 = vmatpush.bf16.msra.mxu0 0
        %4485 = vmatpush.bf16.msra.mxu0 0
        %4486 = vmatpush.bf16.msra.mxu0 0
        %4487 = vmatpush.bf16.msra.mxu0 0
        %4488 = vmatpush.bf16.msra.mxu0 0
        %4489 = vmatpush.bf16.msra.mxu0 0
        %4490 = vmatpush.bf16.msra.mxu0 %v4478
        %4491 = vmatmul.bf16.gmra.mxu0 %v4481
        %v4492 = vpop.f32.mrf.mxu0
        %v4493 = vadd.f32 0.0, %v4492
        %v4494 = vpop.f32.mrf.mxu0
        %v4495 = vadd.f32 0.0, %v4494
        %4496 = vdwg.mxu0
        %v4499 = vunpack.c.l.b16 %v3861
        %v4500 = vunpack.c.l.b16 %v3862
        %v4501 = vpack.c.b16 %v4500, %v4499
        %v4504 = vunpack.c.l.b16 %v2131
        %v4505 = vunpack.c.l.b16 %v2132
        %v4506 = vpack.c.b16 %v4505, %v4504
        %v4509 = vsel %vm3112, %v4501, 0
        %4511 = vmatpush.bf16.msra.mxu0 0
        %4512 = vmatpush.bf16.msra.mxu0 0
        %4513 = vmatpush.bf16.msra.mxu0 0
        %4514 = vmatpush.bf16.msra.mxu0 0
        %4515 = vmatpush.bf16.msra.mxu0 0
        %4516 = vmatpush.bf16.msra.mxu0 0
        %4517 = vmatpush.bf16.msra.mxu0 0
        %4518 = vmatpush.bf16.msra.mxu0 %v4506
        %4519 = vmatmul.bf16.gmra.mxu0 %v4509
        %v4520 = vpop.f32.mrf.mxu0
        %v4521 = vadd.f32 0.0, %v4520
        %v4522 = vpop.f32.mrf.mxu0
        %v4523 = vadd.f32 0.0, %v4522
        %4524 = vdwg.mxu0
        %v4527 = vunpack.c.l.b16 %v3863
        %v4528 = vunpack.c.l.b16 %v3864
        %v4529 = vpack.c.b16 %v4528, %v4527
        %v4532 = vunpack.c.l.b16 %v2133
        %v4533 = vunpack.c.l.b16 %v2134
        %v4534 = vpack.c.b16 %v4533, %v4532
        %v4537 = vsel %vm3112, %v4529, 0
        %4539 = vmatpush.bf16.msra.mxu0 0
        %4540 = vmatpush.bf16.msra.mxu0 0
        %4541 = vmatpush.bf16.msra.mxu0 0
        %4542 = vmatpush.bf16.msra.mxu0 0
        %4543 = vmatpush.bf16.msra.mxu0 0
        %4544 = vmatpush.bf16.msra.mxu0 0
        %4545 = vmatpush.bf16.msra.mxu0 0
        %4546 = vmatpush.bf16.msra.mxu0 %v4534
        %4547 = vmatmul.bf16.gmra.mxu0 %v4537
        %v4548 = vpop.f32.mrf.mxu0
        %v4549 = vadd.f32 0.0, %v4548
        %v4550 = vpop.f32.mrf.mxu0
        %v4551 = vadd.f32 0.0, %v4550
        %4552 = vdwg.mxu0
        %v4555 = vunpack.c.l.b16 %v3865
        %v4556 = vunpack.c.l.b16 %v3866
        %v4557 = vpack.c.b16 %v4556, %v4555
        %v4560 = vunpack.c.l.b16 %v2135
        %v4561 = vunpack.c.l.b16 %v2136
        %v4562 = vpack.c.b16 %v4561, %v4560
        %v4565 = vsel %vm3112, %v4557, 0
        %4567 = vmatpush.bf16.msra.mxu0 0
        %4568 = vmatpush.bf16.msra.mxu0 0
        %4569 = vmatpush.bf16.msra.mxu0 0
        %4570 = vmatpush.bf16.msra.mxu0 0
        %4571 = vmatpush.bf16.msra.mxu0 0
        %4572 = vmatpush.bf16.msra.mxu0 0
        %4573 = vmatpush.bf16.msra.mxu0 0
        %4574 = vmatpush.bf16.msra.mxu0 %v4562
        %4575 = vmatmul.bf16.gmra.mxu0 %v4565
        %v4576 = vpop.f32.mrf.mxu0
        %v4577 = vadd.f32 0.0, %v4576
        %v4578 = vpop.f32.mrf.mxu0
        %v4579 = vadd.f32 0.0, %v4578
        %4580 = vdwg.mxu0
        %v4583 = vunpack.c.l.b16 %v3867
        %v4584 = vunpack.c.l.b16 %v3868
        %v4585 = vpack.c.b16 %v4584, %v4583
        %v4588 = vunpack.c.l.b16 %v2137
        %v4589 = vunpack.c.l.b16 %v2138
        %v4590 = vpack.c.b16 %v4589, %v4588
        %v4593 = vsel %vm3112, %v4585, 0
        %4595 = vmatpush.bf16.msra.mxu0 0
        %4596 = vmatpush.bf16.msra.mxu0 0
        %4597 = vmatpush.bf16.msra.mxu0 0
        %4598 = vmatpush.bf16.msra.mxu0 0
        %4599 = vmatpush.bf16.msra.mxu0 0
        %4600 = vmatpush.bf16.msra.mxu0 0
        %4601 = vmatpush.bf16.msra.mxu0 0
        %4602 = vmatpush.bf16.msra.mxu0 %v4590
        %4603 = vmatmul.bf16.gmra.mxu0 %v4593
        %v4604 = vpop.f32.mrf.mxu0
        %v4605 = vadd.f32 0.0, %v4604
        %v4606 = vpop.f32.mrf.mxu0
        %v4607 = vadd.f32 0.0, %v4606
        %4608 = vdwg.mxu0
        %v4611 = vunpack.c.l.b16 %v3869
        %v4612 = vunpack.c.l.b16 %v3870
        %v4613 = vpack.c.b16 %v4612, %v4611
        %v4616 = vunpack.c.l.b16 %v2139
        %v4617 = vunpack.c.l.b16 %v2140
        %v4618 = vpack.c.b16 %v4617, %v4616
        %v4621 = vsel %vm3112, %v4613, 0
        %4623 = vmatpush.bf16.msra.mxu0 0
        %4624 = vmatpush.bf16.msra.mxu0 0
        %4625 = vmatpush.bf16.msra.mxu0 0
        %4626 = vmatpush.bf16.msra.mxu0 0
        %4627 = vmatpush.bf16.msra.mxu0 0
        %4628 = vmatpush.bf16.msra.mxu0 0
        %4629 = vmatpush.bf16.msra.mxu0 0
        %4630 = vmatpush.bf16.msra.mxu0 %v4618
        %4631 = vmatmul.bf16.gmra.mxu0 %v4621
        %v4632 = vpop.f32.mrf.mxu0
        %v4633 = vadd.f32 0.0, %v4632
        %v4634 = vpop.f32.mrf.mxu0
        %v4635 = vadd.f32 0.0, %v4634
        %4636 = vdwg.mxu0
        %v4639 = vunpack.c.l.b16 %v3871
        %v4640 = vunpack.c.l.b16 %v3872
        %v4641 = vpack.c.b16 %v4640, %v4639
        %v4644 = vunpack.c.l.b16 %v2141
        %v4645 = vunpack.c.l.b16 %v2142
        %v4646 = vpack.c.b16 %v4645, %v4644
        %v4649 = vsel %vm3112, %v4641, 0
        %4651 = vmatpush.bf16.msra.mxu0 0
        %4652 = vmatpush.bf16.msra.mxu0 0
        %4653 = vmatpush.bf16.msra.mxu0 0
        %4654 = vmatpush.bf16.msra.mxu0 0
        %4655 = vmatpush.bf16.msra.mxu0 0
        %4656 = vmatpush.bf16.msra.mxu0 0
        %4657 = vmatpush.bf16.msra.mxu0 0
        %4658 = vmatpush.bf16.msra.mxu0 %v4646
        %4659 = vmatmul.bf16.gmra.mxu0 %v4649
        %v4660 = vpop.f32.mrf.mxu0
        %v4661 = vadd.f32 0.0, %v4660
        %v4662 = vpop.f32.mrf.mxu0
        %v4663 = vadd.f32 0.0, %v4662
        %4664 = vdwg.mxu0
        %v4667 = vunpack.c.l.b16 %v3873
        %v4668 = vunpack.c.l.b16 %v3874
        %v4669 = vpack.c.b16 %v4668, %v4667
        %v4672 = vunpack.c.l.b16 %v2143
        %v4673 = vunpack.c.l.b16 %v2144
        %v4674 = vpack.c.b16 %v4673, %v4672
        %v4677 = vsel %vm3112, %v4669, 0
        %4679 = vmatpush.bf16.msra.mxu0 0
        %4680 = vmatpush.bf16.msra.mxu0 0
        %4681 = vmatpush.bf16.msra.mxu0 0
        %4682 = vmatpush.bf16.msra.mxu0 0
        %4683 = vmatpush.bf16.msra.mxu0 0
        %4684 = vmatpush.bf16.msra.mxu0 0
        %4685 = vmatpush.bf16.msra.mxu0 0
        %4686 = vmatpush.bf16.msra.mxu0 %v4674
        %4687 = vmatmul.bf16.gmra.mxu0 %v4677
        %v4688 = vpop.f32.mrf.mxu0
        %v4689 = vadd.f32 0.0, %v4688
        %v4690 = vpop.f32.mrf.mxu0
        %v4691 = vadd.f32 0.0, %v4690
        %4692 = vdwg.mxu0
        %v4695 = vunpack.c.l.b16 %v3875
        %v4696 = vunpack.c.l.b16 %v3876
        %v4697 = vpack.c.b16 %v4696, %v4695
        %v4700 = vunpack.c.l.b16 %v2145
        %v4701 = vunpack.c.l.b16 %v2146
        %v4702 = vpack.c.b16 %v4701, %v4700
        %v4705 = vsel %vm3112, %v4697, 0
        %4707 = vmatpush.bf16.msra.mxu0 0
        %4708 = vmatpush.bf16.msra.mxu0 0
        %4709 = vmatpush.bf16.msra.mxu0 0
        %4710 = vmatpush.bf16.msra.mxu0 0
        %4711 = vmatpush.bf16.msra.mxu0 0
        %4712 = vmatpush.bf16.msra.mxu0 0
        %4713 = vmatpush.bf16.msra.mxu0 0
        %4714 = vmatpush.bf16.msra.mxu0 %v4702
        %4715 = vmatmul.bf16.gmra.mxu0 %v4705
        %v4716 = vpop.f32.mrf.mxu0
        %v4717 = vadd.f32 0.0, %v4716
        %v4718 = vpop.f32.mrf.mxu0
        %v4719 = vadd.f32 0.0, %v4718
        %4720 = vdwg.mxu0
        %v4723 = vunpack.c.l.b16 %v3877
        %v4724 = vunpack.c.l.b16 %v3878
        %v4725 = vpack.c.b16 %v4724, %v4723
        %v4728 = vunpack.c.l.b16 %v2147
        %v4729 = vunpack.c.l.b16 %v2148
        %v4730 = vpack.c.b16 %v4729, %v4728
        %v4733 = vsel %vm3112, %v4725, 0
        %4735 = vmatpush.bf16.msra.mxu0 0
        %4736 = vmatpush.bf16.msra.mxu0 0
        %4737 = vmatpush.bf16.msra.mxu0 0
        %4738 = vmatpush.bf16.msra.mxu0 0
        %4739 = vmatpush.bf16.msra.mxu0 0
        %4740 = vmatpush.bf16.msra.mxu0 0
        %4741 = vmatpush.bf16.msra.mxu0 0
        %4742 = vmatpush.bf16.msra.mxu0 %v4730
        %4743 = vmatmul.bf16.gmra.mxu0 %v4733
        %v4744 = vpop.f32.mrf.mxu0
        %v4745 = vadd.f32 0.0, %v4744
        %v4746 = vpop.f32.mrf.mxu0
        %v4747 = vadd.f32 0.0, %v4746
        %4748 = vdwg.mxu0
        %v4751 = vunpack.c.l.b16 %v3879
        %v4752 = vunpack.c.l.b16 %v3880
        %v4753 = vpack.c.b16 %v4752, %v4751
        %v4756 = vunpack.c.l.b16 %v2149
        %v4757 = vunpack.c.l.b16 %v2150
        %v4758 = vpack.c.b16 %v4757, %v4756
        %v4761 = vsel %vm3112, %v4753, 0
        %4763 = vmatpush.bf16.msra.mxu0 0
        %4764 = vmatpush.bf16.msra.mxu0 0
        %4765 = vmatpush.bf16.msra.mxu0 0
        %4766 = vmatpush.bf16.msra.mxu0 0
        %4767 = vmatpush.bf16.msra.mxu0 0
        %4768 = vmatpush.bf16.msra.mxu0 0
        %4769 = vmatpush.bf16.msra.mxu0 0
        %4770 = vmatpush.bf16.msra.mxu0 %v4758
        %4771 = vmatmul.bf16.gmra.mxu0 %v4761
        %v4772 = vpop.f32.mrf.mxu0
        %v4773 = vadd.f32 0.0, %v4772
        %v4774 = vpop.f32.mrf.mxu0
        %v4775 = vadd.f32 0.0, %v4774
        %4776 = vdwg.mxu0
        %4793 = vrot.lane.b32.xlu0 %v4129, 8
        %v4794 = vpop.permute.xlu0 %4793
        %4795 = vrot.lane.b32.xlu0 %v4131, 8
        %v4796 = vpop.permute.xlu0 %4795
        %4797 = vrot.lane.b32.xlu0 %v4157, 8
        %v4798 = vpop.permute.xlu0 %4797
        %4799 = vrot.lane.b32.xlu0 %v4159, 8
        %v4800 = vpop.permute.xlu0 %4799
        %4801 = vrot.lane.b32.xlu0 %v4185, 8
        %v4802 = vpop.permute.xlu0 %4801
        %4803 = vrot.lane.b32.xlu0 %v4187, 8
        %v4804 = vpop.permute.xlu0 %4803
        %4805 = vrot.lane.b32.xlu0 %v4213, 8
        %v4806 = vpop.permute.xlu0 %4805
        %4807 = vrot.lane.b32.xlu0 %v4215, 8
        %v4808 = vpop.permute.xlu0 %4807
        %4809 = vrot.lane.b32.xlu0 %v4241, 8
        %v4810 = vpop.permute.xlu0 %4809
        %4811 = vrot.lane.b32.xlu0 %v4243, 8
        %v4812 = vpop.permute.xlu0 %4811
        %4813 = vrot.lane.b32.xlu0 %v4269, 8
        %v4814 = vpop.permute.xlu0 %4813
        %4815 = vrot.lane.b32.xlu0 %v4271, 8
        %v4816 = vpop.permute.xlu0 %4815
        %4817 = vrot.lane.b32.xlu0 %v4297, 8
        %v4818 = vpop.permute.xlu0 %4817
        %4819 = vrot.lane.b32.xlu0 %v4299, 8
        %v4820 = vpop.permute.xlu0 %4819
        %4821 = vrot.lane.b32.xlu0 %v4325, 8
        %v4822 = vpop.permute.xlu0 %4821
        %4823 = vrot.lane.b32.xlu0 %v4327, 8
        %v4824 = vpop.permute.xlu0 %4823
        %4857 = vrot.lane.b32.xlu0 %v4353, 16
        %v4858 = vpop.permute.xlu0 %4857
        %4859 = vrot.lane.b32.xlu0 %v4355, 16
        %v4860 = vpop.permute.xlu0 %4859
        %4861 = vrot.lane.b32.xlu0 %v4381, 16
        %v4862 = vpop.permute.xlu0 %4861
        %4863 = vrot.lane.b32.xlu0 %v4383, 16
        %v4864 = vpop.permute.xlu0 %4863
        %4865 = vrot.lane.b32.xlu0 %v4409, 16
        %v4866 = vpop.permute.xlu0 %4865
        %4867 = vrot.lane.b32.xlu0 %v4411, 16
        %v4868 = vpop.permute.xlu0 %4867
        %4869 = vrot.lane.b32.xlu0 %v4437, 16
        %v4870 = vpop.permute.xlu0 %4869
        %4871 = vrot.lane.b32.xlu0 %v4439, 16
        %v4872 = vpop.permute.xlu0 %4871
        %4873 = vrot.lane.b32.xlu0 %v4465, 16
        %v4874 = vpop.permute.xlu0 %4873
        %4875 = vrot.lane.b32.xlu0 %v4467, 16
        %v4876 = vpop.permute.xlu0 %4875
        %4877 = vrot.lane.b32.xlu0 %v4493, 16
        %v4878 = vpop.permute.xlu0 %4877
        %4879 = vrot.lane.b32.xlu0 %v4495, 16
        %v4880 = vpop.permute.xlu0 %4879
        %4881 = vrot.lane.b32.xlu0 %v4521, 16
        %v4882 = vpop.permute.xlu0 %4881
        %4883 = vrot.lane.b32.xlu0 %v4523, 16
        %v4884 = vpop.permute.xlu0 %4883
        %4885 = vrot.lane.b32.xlu0 %v4549, 16
        %v4886 = vpop.permute.xlu0 %4885
        %4887 = vrot.lane.b32.xlu0 %v4551, 16
        %v4888 = vpop.permute.xlu0 %4887
        %4921 = vrot.lane.b32.xlu0 %v4577, 24
        %v4922 = vpop.permute.xlu0 %4921
        %4923 = vrot.lane.b32.xlu0 %v4579, 24
        %v4924 = vpop.permute.xlu0 %4923
        %4925 = vrot.lane.b32.xlu0 %v4605, 24
        %v4926 = vpop.permute.xlu0 %4925
        %4927 = vrot.lane.b32.xlu0 %v4607, 24
        %v4928 = vpop.permute.xlu0 %4927
        %4929 = vrot.lane.b32.xlu0 %v4633, 24
        %v4930 = vpop.permute.xlu0 %4929
        %4931 = vrot.lane.b32.xlu0 %v4635, 24
        %v4932 = vpop.permute.xlu0 %4931
        %4933 = vrot.lane.b32.xlu0 %v4661, 24
        %v4934 = vpop.permute.xlu0 %4933
        %4935 = vrot.lane.b32.xlu0 %v4663, 24
        %v4936 = vpop.permute.xlu0 %4935
        %4937 = vrot.lane.b32.xlu0 %v4689, 24
        %v4938 = vpop.permute.xlu0 %4937
        %4939 = vrot.lane.b32.xlu0 %v4691, 24
        %v4940 = vpop.permute.xlu0 %4939
        %4941 = vrot.lane.b32.xlu0 %v4717, 24
        %v4942 = vpop.permute.xlu0 %4941
        %4943 = vrot.lane.b32.xlu0 %v4719, 24
        %v4944 = vpop.permute.xlu0 %4943
        %4945 = vrot.lane.b32.xlu0 %v4745, 24
        %v4946 = vpop.permute.xlu0 %4945
        %4947 = vrot.lane.b32.xlu0 %v4747, 24
        %v4948 = vpop.permute.xlu0 %4947
        %4949 = vrot.lane.b32.xlu0 %v4773, 24
        %v4950 = vpop.permute.xlu0 %4949
        %4951 = vrot.lane.b32.xlu0 %v4775, 24
        %v4952 = vpop.permute.xlu0 %4951
        %v4969 = vsel %vm2161, %v3905, %v4794
        %v4970 = vsel %vm2161, %v3907, %v4796
        %v4971 = vsel %vm2161, %v3933, %v4798
        %v4972 = vsel %vm2161, %v3935, %v4800
        %v4973 = vsel %vm2161, %v3961, %v4802
        %v4974 = vsel %vm2161, %v3963, %v4804
        %v4975 = vsel %vm2161, %v3989, %v4806
        %v4976 = vsel %vm2161, %v3991, %v4808
        %v4977 = vsel %vm2161, %v4017, %v4810
        %v4978 = vsel %vm2161, %v4019, %v4812
        %v4979 = vsel %vm2161, %v4045, %v4814
        %v4980 = vsel %vm2161, %v4047, %v4816
        %v4981 = vsel %vm2161, %v4073, %v4818
        %v4982 = vsel %vm2161, %v4075, %v4820
        %v4983 = vsel %vm2161, %v4101, %v4822
        %v4984 = vsel %vm2161, %v4103, %v4824
        %v4985 = vsel %vm3112, %v4969, %v4858
        %v4986 = vsel %vm3112, %v4970, %v4860
        %v4987 = vsel %vm3112, %v4971, %v4862
        %v4988 = vsel %vm3112, %v4972, %v4864
        %v4989 = vsel %vm3112, %v4973, %v4866
        %v4990 = vsel %vm3112, %v4974, %v4868
        %v4991 = vsel %vm3112, %v4975, %v4870
        %v4992 = vsel %vm3112, %v4976, %v4872
        %v4993 = vsel %vm3112, %v4977, %v4874
        %v4994 = vsel %vm3112, %v4978, %v4876
        %v4995 = vsel %vm3112, %v4979, %v4878
        %v4996 = vsel %vm3112, %v4980, %v4880
        %v4997 = vsel %vm3112, %v4981, %v4882
        %v4998 = vsel %vm3112, %v4982, %v4884
        %v4999 = vsel %vm3112, %v4983, %v4886
        %v5000 = vsel %vm3112, %v4984, %v4888
        %vm5001 = vcmask 195584
        %v5002 = vsel %vm5001, %v4985, %v4922
        %v5003 = vsel %vm5001, %v4986, %v4924
        %v5004 = vsel %vm5001, %v4987, %v4926
        %v5005 = vsel %vm5001, %v4988, %v4928
        %v5006 = vsel %vm5001, %v4989, %v4930
        %v5007 = vsel %vm5001, %v4990, %v4932
        %v5008 = vsel %vm5001, %v4991, %v4934
        %v5009 = vsel %vm5001, %v4992, %v4936
        %v5010 = vsel %vm5001, %v4993, %v4938
        %v5011 = vsel %vm5001, %v4994, %v4940
        %v5012 = vsel %vm5001, %v4995, %v4942
        %v5013 = vsel %vm5001, %v4996, %v4944
        %v5014 = vsel %vm5001, %v4997, %v4946
        %v5015 = vsel %vm5001, %v4998, %v4948
        %v5016 = vsel %vm5001, %v4999, %v4950
        %v5017 = vsel %vm5001, %v5000, %v4952
        %v5018 = vpack.c.bf16 %v5003, %v5002
        %v5019 = vpack.c.bf16 %v5005, %v5004
        %v5020 = vpack.c.bf16 %v5007, %v5006
        %v5021 = vpack.c.bf16 %v5009, %v5008
        %v5022 = vpack.c.bf16 %v5011, %v5010
        %v5023 = vpack.c.bf16 %v5013, %v5012
        %v5024 = vpack.c.bf16 %v5015, %v5014
        %v5025 = vpack.c.bf16 %v5017, %v5016
        %v5026 = vld [vmem:[%s7] sm:$0x1]
        %v5028 = vperm.slane %v5026, 0
        %v5031 = vsel %vm1243, %v5018, 0
        %v5034 = vsel %vm1243, %v5019, 0
        %v5037 = vsel %vm1243, %v5020, 0
        %v5040 = vsel %vm1243, %v5021, 0
        %v5043 = vsel %vm1243, %v5022, 0
        %v5046 = vsel %vm1243, %v5023, 0
        %v5049 = vsel %vm1243, %v5024, 0
        %v5052 = vsel %vm1243, %v5025, 0
        %5054 = vmatpush.bf16.msra.mxu0 0
        %5055 = vmatpush.bf16.msra.mxu0 0
        %5056 = vmatpush.bf16.msra.mxu0 0
        %5057 = vmatpush.bf16.msra.mxu0 0
        %5058 = vmatpush.bf16.msra.mxu0 0
        %5059 = vmatpush.bf16.msra.mxu0 0
        %5060 = vmatpush.bf16.msra.mxu0 %v497
        %5061 = vmatpush.bf16.msra.mxu0 %v496
        %5062 = vmatmul.bf16.gmra.mxu0 %v5031
        %v5063 = vpop.f32.mrf.mxu0
        %v5064 = vadd.f32 %v5028, %v5063
        %v5065 = vpop.f32.mrf.mxu0
        %v5066 = vadd.f32 %v5028, %v5065
        %5067 = vmatmul.bf16.gmra.mxu0 %v5034
        %v5068 = vpop.f32.mrf.mxu0
        %v5069 = vadd.f32 %v5028, %v5068
        %v5070 = vpop.f32.mrf.mxu0
        %v5071 = vadd.f32 %v5028, %v5070
        %5072 = vmatmul.bf16.gmra.mxu0 %v5037
        %v5073 = vpop.f32.mrf.mxu0
        %v5074 = vadd.f32 %v5028, %v5073
        %v5075 = vpop.f32.mrf.mxu0
        %v5076 = vadd.f32 %v5028, %v5075
        %5077 = vmatmul.bf16.gmra.mxu0 %v5040
        %v5078 = vpop.f32.mrf.mxu0
        %v5079 = vadd.f32 %v5028, %v5078
        %v5080 = vpop.f32.mrf.mxu0
        %v5081 = vadd.f32 %v5028, %v5080
        %5082 = vmatmul.bf16.gmra.mxu0 %v5043
        %v5083 = vpop.f32.mrf.mxu0
        %v5084 = vadd.f32 %v5028, %v5083
        %v5085 = vpop.f32.mrf.mxu0
        %v5086 = vadd.f32 %v5028, %v5085
        %5087 = vmatmul.bf16.gmra.mxu0 %v5046
        %v5088 = vpop.f32.mrf.mxu0
        %v5089 = vadd.f32 %v5028, %v5088
        %v5090 = vpop.f32.mrf.mxu0
        %v5091 = vadd.f32 %v5028, %v5090
        %5092 = vmatmul.bf16.gmra.mxu0 %v5049
        %v5093 = vpop.f32.mrf.mxu0
        %v5094 = vadd.f32 %v5028, %v5093
        %v5095 = vpop.f32.mrf.mxu0
        %v5096 = vadd.f32 %v5028, %v5095
        %5097 = vmatmul.bf16.gmra.mxu0 %v5052
        %v5098 = vpop.f32.mrf.mxu0
        %v5099 = vadd.f32 %v5028, %v5098
        %v5100 = vpop.f32.mrf.mxu0
        %v5101 = vadd.f32 %v5028, %v5100
        %5102 = vdwg.mxu0
        %v5103 = vrot.slane %v5074, 4
        %v5104 = vsel %vm515, %v5103, %v5064
        %v5105 = vrot.slane %v5064, 4
        %v5106 = vsel %vm515, %v5074, %v5105
        %v5108 = vunpack.c.l.s4 1983009808
        %v5109 = vunpack.c.0.s8 %v5108
        %v5110 = vperm.slane %v5104, %v5109
        %v5112 = vunpack.c.l.s4 1983009808
        %v5113 = vunpack.c.0.s8 %v5112
        %v5114 = vperm.slane %v5106, %v5113
        %v5115 = vrot.slane %v5079, 4
        %v5116 = vsel %vm515, %v5115, %v5069
        %v5117 = vrot.slane %v5069, 4
        %v5118 = vsel %vm515, %v5079, %v5117
        %v5120 = vunpack.c.l.s4 1983009808
        %v5121 = vunpack.c.0.s8 %v5120
        %v5122 = vperm.slane %v5116, %v5121
        %v5124 = vunpack.c.l.s4 1983009808
        %v5125 = vunpack.c.0.s8 %v5124
        %v5126 = vperm.slane %v5118, %v5125
        %v5127 = vrot.slane %v5094, 4
        %v5128 = vsel %vm515, %v5127, %v5084
        %v5129 = vrot.slane %v5084, 4
        %v5130 = vsel %vm515, %v5094, %v5129
        %v5132 = vunpack.c.l.s4 1983009808
        %v5133 = vunpack.c.0.s8 %v5132
        %v5134 = vperm.slane %v5128, %v5133
        %v5136 = vunpack.c.l.s4 1983009808
        %v5137 = vunpack.c.0.s8 %v5136
        %v5138 = vperm.slane %v5130, %v5137
        %v5139 = vrot.slane %v5099, 4
        %v5140 = vsel %vm515, %v5139, %v5089
        %v5141 = vrot.slane %v5089, 4
        %v5142 = vsel %vm515, %v5099, %v5141
        %v5144 = vunpack.c.l.s4 1983009808
        %v5145 = vunpack.c.0.s8 %v5144
        %v5146 = vperm.slane %v5140, %v5145
        %v5148 = vunpack.c.l.s4 1983009808
        %v5149 = vunpack.c.0.s8 %v5148
        %v5150 = vperm.slane %v5142, %v5149
        %v5151 = vrot.slane %v5122, 4
        %v5152 = vsel %vm515, %v5151, %v5110
        %v5153 = vrot.slane %v5110, 4
        %v5154 = vsel %vm515, %v5122, %v5153
        %v5156 = vunpack.c.l.s4 1934713408
        %v5157 = vunpack.c.0.s8 %v5156
        %v5158 = vperm.slane %v5152, %v5157
        %v5160 = vunpack.c.l.s4 1934713408
        %v5161 = vunpack.c.0.s8 %v5160
        %v5162 = vperm.slane %v5154, %v5161
        %v5163 = vrot.slane %v5126, 4
        %v5164 = vsel %vm515, %v5163, %v5114
        %v5165 = vrot.slane %v5114, 4
        %v5166 = vsel %vm515, %v5126, %v5165
        %v5168 = vunpack.c.l.s4 1934713408
        %v5169 = vunpack.c.0.s8 %v5168
        %v5170 = vperm.slane %v5164, %v5169
        %v5172 = vunpack.c.l.s4 1934713408
        %v5173 = vunpack.c.0.s8 %v5172
        %v5174 = vperm.slane %v5166, %v5173
        %v5175 = vrot.slane %v5146, 4
        %v5176 = vsel %vm515, %v5175, %v5134
        %v5177 = vrot.slane %v5134, 4
        %v5178 = vsel %vm515, %v5146, %v5177
        %v5180 = vunpack.c.l.s4 1934713408
        %v5181 = vunpack.c.0.s8 %v5180
        %v5182 = vperm.slane %v5176, %v5181
        %v5184 = vunpack.c.l.s4 1934713408
        %v5185 = vunpack.c.0.s8 %v5184
        %v5186 = vperm.slane %v5178, %v5185
        %v5187 = vrot.slane %v5150, 4
        %v5188 = vsel %vm515, %v5187, %v5138
        %v5189 = vrot.slane %v5138, 4
        %v5190 = vsel %vm515, %v5150, %v5189
        %v5192 = vunpack.c.l.s4 1934713408
        %v5193 = vunpack.c.0.s8 %v5192
        %v5194 = vperm.slane %v5188, %v5193
        %v5196 = vunpack.c.l.s4 1934713408
        %v5197 = vunpack.c.0.s8 %v5196
        %v5198 = vperm.slane %v5190, %v5197
        %v5199 = vrot.slane %v5182, 4
        %v5200 = vsel %vm515, %v5199, %v5158
        %v5201 = vrot.slane %v5158, 4
        %v5202 = vsel %vm515, %v5182, %v5201
        %v5203 = vrot.slane %v5186, 4
        %v5204 = vsel %vm515, %v5203, %v5162
        %v5205 = vrot.slane %v5162, 4
        %v5206 = vsel %vm515, %v5186, %v5205
        %v5207 = vrot.slane %v5194, 4
        %v5208 = vsel %vm515, %v5207, %v5170
        %v5209 = vrot.slane %v5170, 4
        %v5210 = vsel %vm515, %v5194, %v5209
        %v5211 = vrot.slane %v5198, 4
        %v5212 = vsel %vm515, %v5211, %v5174
        %v5213 = vrot.slane %v5174, 4
        %v5214 = vsel %vm515, %v5198, %v5213
        %v5215 = vrot.slane %v5076, 4
        %v5216 = vsel %vm515, %v5215, %v5066
        %v5217 = vrot.slane %v5066, 4
        %v5218 = vsel %vm515, %v5076, %v5217
        %v5220 = vunpack.c.l.s4 1983009808
        %v5221 = vunpack.c.0.s8 %v5220
        %v5222 = vperm.slane %v5216, %v5221
        %v5224 = vunpack.c.l.s4 1983009808
        %v5225 = vunpack.c.0.s8 %v5224
        %v5226 = vperm.slane %v5218, %v5225
        %v5227 = vrot.slane %v5081, 4
        %v5228 = vsel %vm515, %v5227, %v5071
        %v5229 = vrot.slane %v5071, 4
        %v5230 = vsel %vm515, %v5081, %v5229
        %v5232 = vunpack.c.l.s4 1983009808
        %v5233 = vunpack.c.0.s8 %v5232
        %v5234 = vperm.slane %v5228, %v5233
        %v5236 = vunpack.c.l.s4 1983009808
        %v5237 = vunpack.c.0.s8 %v5236
        %v5238 = vperm.slane %v5230, %v5237
        %v5239 = vrot.slane %v5096, 4
        %v5240 = vsel %vm515, %v5239, %v5086
        %v5241 = vrot.slane %v5086, 4
        %v5242 = vsel %vm515, %v5096, %v5241
        %v5244 = vunpack.c.l.s4 1983009808
        %v5245 = vunpack.c.0.s8 %v5244
        %v5246 = vperm.slane %v5240, %v5245
        %v5248 = vunpack.c.l.s4 1983009808
        %v5249 = vunpack.c.0.s8 %v5248
        %v5250 = vperm.slane %v5242, %v5249
        %v5251 = vrot.slane %v5101, 4
        %v5252 = vsel %vm515, %v5251, %v5091
        %v5253 = vrot.slane %v5091, 4
        %v5254 = vsel %vm515, %v5101, %v5253
        %v5256 = vunpack.c.l.s4 1983009808
        %v5257 = vunpack.c.0.s8 %v5256
        %v5258 = vperm.slane %v5252, %v5257
        %v5260 = vunpack.c.l.s4 1983009808
        %v5261 = vunpack.c.0.s8 %v5260
        %v5262 = vperm.slane %v5254, %v5261
        %v5263 = vrot.slane %v5234, 4
        %v5264 = vsel %vm515, %v5263, %v5222
        %v5265 = vrot.slane %v5222, 4
        %v5266 = vsel %vm515, %v5234, %v5265
        %v5268 = vunpack.c.l.s4 1934713408
        %v5269 = vunpack.c.0.s8 %v5268
        %v5270 = vperm.slane %v5264, %v5269
        %v5272 = vunpack.c.l.s4 1934713408
        %v5273 = vunpack.c.0.s8 %v5272
        %v5274 = vperm.slane %v5266, %v5273
        %v5275 = vrot.slane %v5238, 4
        %v5276 = vsel %vm515, %v5275, %v5226
        %v5277 = vrot.slane %v5226, 4
        %v5278 = vsel %vm515, %v5238, %v5277
        %v5280 = vunpack.c.l.s4 1934713408
        %v5281 = vunpack.c.0.s8 %v5280
        %v5282 = vperm.slane %v5276, %v5281
        %v5284 = vunpack.c.l.s4 1934713408
        %v5285 = vunpack.c.0.s8 %v5284
        %v5286 = vperm.slane %v5278, %v5285
        %v5287 = vrot.slane %v5258, 4
        %v5288 = vsel %vm515, %v5287, %v5246
        %v5289 = vrot.slane %v5246, 4
        %v5290 = vsel %vm515, %v5258, %v5289
        %v5292 = vunpack.c.l.s4 1934713408
        %v5293 = vunpack.c.0.s8 %v5292
        %v5294 = vperm.slane %v5288, %v5293
        %v5296 = vunpack.c.l.s4 1934713408
        %v5297 = vunpack.c.0.s8 %v5296
        %v5298 = vperm.slane %v5290, %v5297
        %v5299 = vrot.slane %v5262, 4
        %v5300 = vsel %vm515, %v5299, %v5250
        %v5301 = vrot.slane %v5250, 4
        %v5302 = vsel %vm515, %v5262, %v5301
        %v5304 = vunpack.c.l.s4 1934713408
        %v5305 = vunpack.c.0.s8 %v5304
        %v5306 = vperm.slane %v5300, %v5305
        %v5308 = vunpack.c.l.s4 1934713408
        %v5309 = vunpack.c.0.s8 %v5308
        %v5310 = vperm.slane %v5302, %v5309
        %v5311 = vrot.slane %v5294, 4
        %v5312 = vsel %vm515, %v5311, %v5270
        %v5313 = vrot.slane %v5270, 4
        %v5314 = vsel %vm515, %v5294, %v5313
        %v5315 = vrot.slane %v5298, 4
        %v5316 = vsel %vm515, %v5315, %v5274
        %v5317 = vrot.slane %v5274, 4
        %v5318 = vsel %vm515, %v5298, %v5317
        %v5319 = vrot.slane %v5306, 4
        %v5320 = vsel %vm515, %v5319, %v5282
        %v5321 = vrot.slane %v5282, 4
        %v5322 = vsel %vm515, %v5306, %v5321
        %v5323 = vrot.slane %v5310, 4
        %v5324 = vsel %vm515, %v5323, %v5286
        %v5325 = vrot.slane %v5286, 4
        %v5326 = vsel %vm515, %v5310, %v5325
        %5327 = vst.msk [vmem:[%s472] sm:$0xff] %vm1243, %v5200
        %5328 = vst.msk [vmem:[%s472 + $0x8] sm:$0xff] %vm1243, %v5202
        %5329 = vst.msk [vmem:[%s472 + $0x10] sm:$0xff] %vm1243, %v5204
        %5330 = vst.msk [vmem:[%s472 + $0x18] sm:$0xff] %vm1243, %v5206
        %5331 = vst.msk [vmem:[%s472 + $0x20] sm:$0xff] %vm1243, %v5208
        %5332 = vst.msk [vmem:[%s472 + $0x28] sm:$0xff] %vm1243, %v5210
        %5333 = vst.msk [vmem:[%s472 + $0x30] sm:$0xff] %vm1243, %v5212
        %5334 = vst.msk [vmem:[%s472 + $0x38] sm:$0xff] %vm1243, %v5214
        %5335 = vst.msk [vmem:[%s472 + $0x40] sm:$0xff] %vm1243, %v5312
        %5336 = vst.msk [vmem:[%s472 + $0x48] sm:$0xff] %vm1243, %v5314
        %5337 = vst.msk [vmem:[%s472 + $0x50] sm:$0xff] %vm1243, %v5316
        %5338 = vst.msk [vmem:[%s472 + $0x58] sm:$0xff] %vm1243, %v5318
        %5339 = vst.msk [vmem:[%s472 + $0x60] sm:$0xff] %vm1243, %v5320
        %5340 = vst.msk [vmem:[%s472 + $0x68] sm:$0xff] %vm1243, %v5322
        %5341 = vst.msk [vmem:[%s472 + $0x70] sm:$0xff] %vm1243, %v5324
        %5342 = vst.msk [vmem:[%s472 + $0x78] sm:$0xff] %vm1243, %v5326
        %s5343 = sand.u32 %s221, 1
        %s5344 = scalar_lea.sflag [#allocation4], %s5343
        %s5345 = sand.u32 %s221, 1
        %s5346 = smul.addr %s5345, 128
        %s5347 = scalar_lea.vmem [#allocation14], %s5346
        // Predicated region
        $region81: #{spatial_mha_forward.1} parent=51 // pred_check
          %p5348 = pneg %p231
        $region82: #{spatial_mha_forward.1} parent=51 // pred_check_branch
          %5350 = sbr.rel (%p5348) target = $region84
        $region83: #{spatial_mha_forward.1} parent=51 // pred_region
          %5352 = vsyncadd %s5344, 0
          %s5353 = smul.addr %s30, 16
          %s5354 = smul.addr %s5353, 8
          %s5355 = scalar_lea.hbm %s8, %s5354
          %s5356 = sshll.u32 %s5347, 4
          %s5357 = int_to_ptr.vmem [resolvable:$true] %s5356
          %s5358 = sshll.u32 %s5355, 4
          %s5359 = int_to_ptr.hbm [resolvable:$true] %s5358
          %5364 = dma.vmem_to_hbm [thread:$0]  %s5357, 2048, %s5359, %s5344, 128, 128, 8
        $region84: #{spatial_mha_forward.1} parent=51 // pred_fallthru
          _
      $region52: #{spatial_mha_forward.1} parent=5 // pred_fallthru
        _
      %p5365 = scmp.le.s32.totalorder 2, %s25
      // Predicated region
      $region85: #{spatial_mha_forward.1} parent=5 // pred_check
        %p5366 = pneg %p5365
      $region86: #{spatial_mha_forward.1} parent=5 // pred_check_branch
        %5368 = sbr.rel (%p5366) target = $region88
      $region87: #{spatial_mha_forward.1} parent=5 // pred_region
        %s5369 = ssub.s32 %s25, 2
        // Predicated region
        $region89: #{spatial_mha_forward.1} parent=87 // pred_check
          %p5370 = pneg %p237
        $region90: #{spatial_mha_forward.1} parent=87 // pred_check_branch
          %5372 = sbr.rel (%p5370) target = $region92
        $region91: #{spatial_mha_forward.1} parent=87 // pred_region
          %s5373 = sand.u32 %s222, 1
          %s5374 = scalar_lea.sflag [#allocation4], %s5373
          %s5375 = sand.u32 %s222, 1
          %s5376 = smul.addr %s5375, 128
          %s5377 = scalar_lea.vmem [#allocation14], %s5376
          %5379 = dma.done %s5374, 2048
        $region92: #{spatial_mha_forward.1} parent=87 // pred_fallthru
          _
      $region88: #{spatial_mha_forward.1} parent=5 // pred_fallthru
        _
    $region6: #{spatial_mha_forward.1} parent=1 // loop_footer
      %s29 = sadd.s32 1, %s25
    $region7: #{spatial_mha_forward.1} parent=1 // loop_footer_branch
      %24 = sbr.rel target = $region3
    $region8: #{spatial_mha_forward.1} parent=1 // loop_exit
      _
    %5380 = vsyncpa [#allocation3], 1
    %s5381 = scalar_lea.sflag [#allocation3], 1
    %5382 = vsyncpa %s5381, 1
    %5383 = vsyncpa [#allocation6], 1
    %s5384 = scalar_lea.sflag [#allocation6], 1
    %5385 = vsyncpa %s5384, 1
    %5386 = vsyncpa [#allocation9], 1
    %5387 = vsyncpa [#allocation12], 1
    %5388 = vsyncpa [#allocation4], 1
    %s5389 = scalar_lea.sflag [#allocation4], 1
    %5390 = vsyncpa %s5389, 1

</llo_original>
